<compile_context>
chip_gen: v5e
topology: v5e:2x2
jax: 0.10.0
libtpu: 0.0.40
codegen_flags: <defaults>
</compile_context>

<pallas_src>
import functools

import jax
import jax.numpy as jnp
from jax.experimental import pallas as pl
from jax.experimental.pallas import tpu as pltpu

BN_EPS = 1e-5
N_STYLES = 18


def _round_up(x, m):
    return ((x + m - 1) // m) * m


def _vmem_capacity_bytes():
    try:
        return int(pltpu.get_tpu_info().vmem_capacity_bytes)
    except Exception:
        return 64 * 1024 * 1024


_VMEM_CAP = _vmem_capacity_bytes()
_BIG_VMEM = _VMEM_CAP >= 100 * 1024 * 1024           # v5e / v6e (128 MiB parts)
_VMEM_LIMIT = min(96 * 1024 * 1024, (_VMEM_CAP * 3) // 4)
_A_TILE_BUDGET = (8 if _BIG_VMEM else 4) * 1024 * 1024


# ============================================================================
# Kernel 1: fused full-K matmul  out = [prelu](A @ W * scale + shift) [+ res]
#   A (tm, K) bf16, W (K, tn) bf16, ep (8, tn) f32 rows: [scale, shift, alpha]
# Used for: stem (K=32), the 5 stride-2 convs (im2col), 1x1 downsamples, head.
# ============================================================================
def _mm_kernel(a_ref, b_ref, ep_ref, *rest, has_prelu, has_res):
    o_ref = rest[-1]
    acc = jnp.dot(a_ref[...], b_ref[...], preferred_element_type=jnp.float32)
    y = acc * ep_ref[0:1, :] + ep_ref[1:2, :]
    if has_prelu:
        y = jnp.where(y > 0, y, y * ep_ref[2:3, :])
    if has_res:
        y = y + rest[0][...].astype(jnp.float32)
    o_ref[...] = y.astype(o_ref.dtype)


def _pick_tm(M, K):
    """Largest power-of-two row tile <= 2048 keeping the A tile within budget."""
    if M < 256:
        return _round_up(max(M, 1), 8)
    budget = _A_TILE_BUDGET // (2 * max(K, 1))
    cap = min(M, max(budget, 256), 2048)
    tm = 256
    while tm * 2 <= cap:
        tm *= 2
    return tm


def matmul_fused(a, w, ep, res=None, *, has_prelu=False, out_dtype=jnp.bfloat16):
    """a: (M, K) bf16, w: (K, N) bf16, ep: (8, N) f32, res: (M, N) bf16 or None."""
    M, K = a.shape
    Kw, N = w.shape
    assert Kw == K, (Kw, K)
    tn = min(N, 512) if N % 128 == 0 else N
    tm = _pick_tm(M, K)
    Mp = _round_up(M, tm)
    # guarantee >=2 grid steps when the M grid collapses to 1 (v7x megacore,
    # weight-DMA overlap)
    if Mp // tm == 1 and N % 256 == 0 and N // tn < 2:
        tn = max(128, tn // 2)
    if Mp != M:
        a = jnp.pad(a, ((0, Mp - M), (0, 0)))

    inputs = [a, w, ep]
    in_specs = [
        pl.BlockSpec((tm, K), lambda i, j: (i, 0)),     # full-K A tile
        pl.BlockSpec((K, tn), lambda i, j: (0, j)),     # full-K weight tile
        pl.BlockSpec((8, tn), lambda i, j: (0, j)),     # epilogue params
    ]
    has_res = res is not None
    if has_res:
        if Mp != M:
            res = jnp.pad(res, ((0, Mp - M), (0, 0)))
        inputs.append(res)
        in_specs.append(pl.BlockSpec((tm, tn), lambda i, j: (i, j)))

    out = pl.pallas_call(
        functools.partial(_mm_kernel, has_prelu=has_prelu, has_res=has_res),
        out_shape=jax.ShapeDtypeStruct((Mp, N), out_dtype),
        grid_spec=pltpu.PrefetchScalarGridSpec(
            num_scalar_prefetch=0,
            grid=(Mp // tm, N // tn),
            in_specs=in_specs,
            out_specs=pl.BlockSpec((tm, tn), lambda i, j: (i, j)),
        ),
        compiler_params=pltpu.CompilerParams(
            dimension_semantics=("parallel", "parallel"),
            vmem_limit_bytes=_VMEM_LIMIT),
    )(*inputs)
    return out[:M] if Mp != M else out


# ============================================================================
# Kernel 2: implicit-GEMM stride-1 3x3 conv + fused BN [+PReLU] [+residual].
#   * activation stays in HBM (pl.ANY); 3 column-shifted halo row-slabs are
#     DMA'd into a double-buffered VMEM scratch (next tile prefetched while
#     computing the current one);
#   * 9 shifted-tap dots accumulate in an f32 VMEM scratch;
#   * Cout=64 outputs are packed 2 pixels / 128 lanes for unmasked stores.
# ============================================================================
def _conv_s1_kernel(x_hbm, w_ref, ep_ref, *rest, tr, W, Cin, pack, mt_per_b,
                    has_prelu, has_res):
    if has_res:
        res_ref, o_ref, slab, sem, acc = rest
    else:
        res_ref = None
        o_ref, slab, sem, acc = rest

    m = pl.program_id(0)
    n_steps = pl.num_programs(0)
    slot = m % 2

    def slab_copies(step, slot_):
        b = step // mt_per_b
        r0 = (step % mt_per_b) * tr
        cps = []
        for dj in range(3):
            idx = slot_ * 3 + dj
            cps.append(pltpu.make_async_copy(
                x_hbm.at[b, pl.ds(r0, tr + 2), pl.ds(dj, W), :],
                slab.at[idx],
                sem.at[idx]))
        return cps

    @pl.when(m == 0)
    def _():
        for c in slab_copies(m, 0):          # prime the first row-tile
            c.start()

    for c in slab_copies(m, slot):           # wait current slabs
        c.wait()

    @pl.when(m + 1 < n_steps)
    def _():
        for c in slab_copies(m + 1, 1 - slot):   # prefetch next row-tile
            c.start()

    # 9 shifted-tap matmuls with f32 accumulation
    first = True
    for di in range(3):
        for dj in range(3):
            a = slab[slot * 3 + dj, di:di + tr, :, :]          # (tr, W, Cin)
            a2 = a.reshape(tr * W, Cin)                        # layout-free fold
            wt = w_ref[(di * 3 + dj) * Cin:(di * 3 + dj + 1) * Cin, :]
            contrib = jnp.dot(a2, wt, preferred_element_type=jnp.float32)
            if first:
                acc[...] = contrib
                first = False
            else:
                acc[...] += contrib

    y = acc[...]
    if pack > 1:                                               # lane-dense store
        co = acc.shape[-1]
        y = y.reshape((tr * W) // pack, co * pack)
    y = y * ep_ref[0:1, :] + ep_ref[1:2, :]
    if has_prelu:
        y = jnp.where(y > 0, y, y * ep_ref[2:3, :])
    if has_res:
        y = y + res_ref[...].astype(jnp.float32)
    o_ref[...] = y.astype(o_ref.dtype)


def _pick_tr(Ho, Wo):
    """Rows per grid step: target ~2048 output pixels, keep >=2 grid steps."""
    tr = 1
    while (tr * 2 * Wo <= 2048) and (Ho % (tr * 2) == 0) and (Ho // (tr * 2) >= 2):
        tr *= 2
    return tr


def conv3x3_s1_implicit(x, w, ep, *, has_prelu=False, residual=None,
                        out_dtype=jnp.bfloat16):
    """x: (B,H,W,Cin) bf16; w: (9*Cin, Cout) bf16; ep: (8, Cout) f32;
    residual: (B,H,W,Cout) bf16 or None.  3x3 stride-1 pad-1 conv."""
    B, H, W, Cin = x.shape
    K, Cout = w.shape
    if (W % 8 != 0) or (K != 9 * Cin) or (H % 2 != 0):
        res2 = None if residual is None else residual.reshape(-1, Cout)
        return conv3x3_im2col(x, w, ep, stride=1, has_prelu=has_prelu,
                              residual=res2, out_dtype=out_dtype)

    pack = 2 if Cout == 64 else 1             # lane-dense (128-wide) stores
    Np = Cout * pack
    tr = _pick_tr(H, W)
    mt_per_b = H // tr
    n_steps = B * mt_per_b
    Mtile = tr * W
    M = B * H * W

    xp = jnp.pad(x, ((0, 0), (1, 1), (1, 1), (0, 0)))          # (B, H+2, W+2, Cin)
    ep_p = jnp.tile(ep, (1, pack)) if pack > 1 else ep

    inputs = [xp, w, ep_p]
    in_specs = [
        pl.BlockSpec(memory_space=pl.ANY),                     # activation, manual DMA
        pl.BlockSpec((K, Cout), lambda m: (0, 0)),             # full weight, resident
        pl.BlockSpec((8, Np), lambda m: (0, 0)),               # epilogue params
    ]
    has_res = residual is not None
    if has_res:
        inputs.append(residual.reshape(M // pack, Np).astype(jnp.bfloat16))
        in_specs.append(pl.BlockSpec((Mtile // pack, Np), lambda m: (m, 0)))

    kernel = functools.partial(
        _conv_s1_kernel, tr=tr, W=W, Cin=Cin, pack=pack, mt_per_b=mt_per_b,
        has_prelu=has_prelu, has_res=has_res)

    out = pl.pallas_call(
        kernel,
        out_shape=jax.ShapeDtypeStruct((M // pack, Np), out_dtype),
        grid_spec=pltpu.PrefetchScalarGridSpec(
            num_scalar_prefetch=0,
            grid=(n_steps,),
            in_specs=in_specs,
            out_specs=pl.BlockSpec((Mtile // pack, Np), lambda m: (m, 0)),
            scratch_shapes=[
                pltpu.VMEM((6, tr + 2, W, Cin), jnp.bfloat16),   # 2 slots x 3 taps
                pltpu.SemaphoreType.DMA((6,)),
                pltpu.VMEM((Mtile, Cout), jnp.float32),          # f32 accumulator
            ]),
        compiler_params=pltpu.CompilerParams(
            # serial: the cross-step slab prefetch carries state in scratch
            dimension_semantics=("arbitrary",),
            vmem_limit_bytes=_VMEM_LIMIT),
    )(*inputs)
    return out.reshape(B, H, W, Cout)


# ----------------------------------------------------------------------------
# Conv / pooling glue (plain JAX, fused inside the jitted chunks)
# ----------------------------------------------------------------------------
def conv3x3_im2col(x, w_packed, ep, *, stride=1, has_prelu=False, residual=None,
                   out_dtype=jnp.bfloat16):
    """im2col path (only used for the stem and the 5 stride-2 convs).
    x: (B,H,W,C) bf16; w_packed: (Kp, Cout) bf16 rows=(kh,kw,cin), zero-padded."""
    B, H, W, C = x.shape
    Kp, Cout = w_packed.shape
    Ho = (H - 1) // stride + 1
    Wo = (W - 1) // stride + 1
    xp = jnp.pad(x, ((0, 0), (1, 1), (1, 1), (0, 0)))
    cols = []
    for di in range(3):
        for dj in range(3):
            cols.append(xp[:, di:di + (Ho - 1) * stride + 1:stride,
                           dj:dj + (Wo - 1) * stride + 1:stride, :])
    patches = jnp.concatenate(cols, axis=-1).reshape(B * Ho * Wo, 9 * C)
    if Kp != 9 * C:
        patches = jnp.pad(patches, ((0, 0), (0, Kp - 9 * C)))
    out = matmul_fused(patches, w_packed, ep, res=residual,
                       has_prelu=has_prelu, out_dtype=out_dtype)
    return out.reshape(B, Ho, Wo, Cout)


def _adaptive_avg_pool_3x3(x):
    """torch AdaptiveAvgPool2d((3,3)); x (B,H,W,C) -> (B,3,3,C) f32."""
    B, H, W, C = x.shape
    xf = x.astype(jnp.float32)
    rows = []
    for i in range(3):
        h0, h1 = (i * H) // 3, -(-((i + 1) * H) // 3)
        cols = []
        for j in range(3):
            w0, w1 = (j * W) // 3, -(-((j + 1) * W) // 3)
            cols.append(jnp.mean(xf[:, h0:h1, w0:w1, :], axis=(1, 2)))
        rows.append(jnp.stack(cols, axis=1))
    return jnp.stack(rows, axis=1)


# ----------------------------------------------------------------------------
# Parameters (deterministic synthetic init, pre-packed for the kernels)
# ----------------------------------------------------------------------------
class _KeyGen:
    def __init__(self, key):
        self._key = key

    def __call__(self):
        self._key, k = jax.random.split(self._key)
        return k


def _bn_affine(c):
    gamma = jnp.ones((c,), jnp.float32)
    beta = jnp.zeros((c,), jnp.float32)
    rm = jnp.zeros((c,), jnp.float32)
    rv = jnp.ones((c,), jnp.float32)
    scale = gamma / jnp.sqrt(rv + BN_EPS)
    shift = beta - rm * scale
    return scale, shift


def _ep_pack(scale, shift, alpha=None):
    c = scale.shape[0]
    zeros = jnp.zeros((c,), jnp.float32)
    rows = [scale.astype(jnp.float32), shift.astype(jnp.float32),
            (alpha.astype(jnp.float32) if alpha is not None else zeros)]
    rows += [zeros] * 5
    return jnp.stack(rows, axis=0)                       # (8, C) f32


def _pack_conv3x3(key, cout, cin):
    w = (jax.random.normal(key, (cout, cin, 3, 3), jnp.float32)
         / jnp.sqrt(float(cin * 9)))
    wm = jnp.transpose(w, (2, 3, 1, 0)).reshape(9 * cin, cout)
    Kp = _round_up(9 * cin, 8)
    if Kp != 9 * cin:
        wm = jnp.pad(wm, ((0, Kp - 9 * cin), (0, 0)))
    return wm.astype(jnp.bfloat16)                       # (Kp, Cout)


def _pack_conv1x1(key, cout, cin):
    w = jax.random.normal(key, (cout, cin, 1, 1), jnp.float32) / jnp.sqrt(float(cin))
    return jnp.transpose(w[:, :, 0, 0], (1, 0)).astype(jnp.bfloat16)   # (Cin, Cout)


def _make_block(kg, cin, cout, stride):
    prelu = 0.25 * jnp.ones((cout,), jnp.float32)
    p = {
        "bn1": jnp.stack(_bn_affine(cin), axis=0),        # (2, Cin) f32
        "conv1_w": _pack_conv3x3(kg(), cout, cin),
        "conv1_ep": _ep_pack(*_bn_affine(cout), prelu),   # bn2 + prelu
        "conv2_w": _pack_conv3x3(kg(), cout, cout),
        "conv2_ep": _ep_pack(*_bn_affine(cout)),          # bn3
    }
    if stride != 1 or cin != cout:
        p["ds_w"] = _pack_conv1x1(kg(), cout, cin)
        p["ds_ep"] = _ep_pack(*_bn_affine(cout))
    return p


def _make_layer(kg, cin, cout, n_blocks, stride):
    first = _make_block(kg, cin, cout, stride)
    tail = [_make_block(kg, cout, cout, 1) for _ in range(n_blocks - 1)]
    tail_stacked = jax.tree_util.tree_map(lambda *xs: jnp.stack(xs, axis=0), *tail)
    return {"first": first, "tail": tail_stacked}


def init_params(key):
    kg = _KeyGen(key)
    p = {}
    # stem: Conv2d(3,64,3,1,1) + BN + PReLU (im2col path, K padded 27->32)
    p["stem"] = {
        "w": _pack_conv3x3(kg(), 64, 3),
        "ep": _ep_pack(*_bn_affine(64), 0.25 * jnp.ones((64,), jnp.float32)),
    }
    # iresnet50 layers [3, 4, 14, 3], all stride-2 first blocks
    p["layer1"] = _make_layer(kg, 64, 64, 3, 2)
    p["layer2"] = _make_layer(kg, 64, 128, 4, 2)
    p["layer3"] = _make_layer(kg, 128, 256, 14, 2)
    p["layer4"] = _make_layer(kg, 256, 512, 3, 2)
    # content layer for fs_layers=(5,), ranks=None: 3x3 kernels, conv2 stride (2,2)
    prelu_c = 0.25 * jnp.ones((512,), jnp.float32)
    p["content"] = {
        "bn0": jnp.stack(_bn_affine(256), axis=0),
        "conv1_w": _pack_conv3x3(kg(), 512, 256),
        "conv1_ep": _ep_pack(*_bn_affine(512), prelu_c),
        "conv2_w": _pack_conv3x3(kg(), 512, 512),
        "conv2_ep": _ep_pack(*_bn_affine(512)),
    }
    # 18 style heads Linear(960*9 -> 512) packed as one (8640, 9216) matmul
    # TODO(synk): quantize head_w to int8 (v5e/v6e) / fp8 (v7x) with per-column
    #             scales folded into head_ep to halve the weight stream.
    feat_dim = 960 * 9
    hw = (jax.random.normal(kg(), (feat_dim, N_STYLES * 512), jnp.float32)
          / jnp.sqrt(float(feat_dim)))
    p["head_w"] = hw.astype(jnp.bfloat16)
    p["head_ep"] = _ep_pack(jnp.ones((N_STYLES * 512,), jnp.float32),
                            jnp.zeros((N_STYLES * 512,), jnp.float32))
    return p


# ----------------------------------------------------------------------------
# Forward pass (jitted per stem / layer / pool / content / head)
# ----------------------------------------------------------------------------
def _stem_impl(x_nchw, stem):
    B = x_nchw.shape[0]
    # transform_to_256: Resize((256, 256)), bilinear
    x = jax.image.resize(x_nchw.astype(jnp.float32), (B, 3, 256, 256),
                         method="bilinear")
    x = jnp.transpose(x, (0, 2, 3, 1)).astype(jnp.bfloat16)      # -> NHWC bf16
    return conv3x3_im2col(x, stem["w"], stem["ep"], stride=1, has_prelu=True)


def _block_impl(x, p, *, stride):
    """IBasicBlock: bn1 -> conv1 -> bn2 -> prelu -> conv2(stride) -> bn3 (+identity)."""
    B, H, W, Cin = x.shape
    s1, t1 = p["bn1"][0], p["bn1"][1]
    # bn1 applied pre-pad (exact w.r.t. the conv's zero padding); fuses with the pad
    xb = (x.astype(jnp.float32) * s1 + t1).astype(jnp.bfloat16)
    h = conv3x3_s1_implicit(xb, p["conv1_w"], p["conv1_ep"], has_prelu=True)
    if "ds_w" in p:
        xi = x[:, ::stride, ::stride, :]                         # 1x1 conv, stride s
        identity = matmul_fused(xi.reshape(-1, Cin), p["ds_w"], p["ds_ep"])
        return conv3x3_im2col(h, p["conv2_w"], p["conv2_ep"], stride=stride,
                              residual=identity)
    return conv3x3_s1_implicit(h, p["conv2_w"], p["conv2_ep"], residual=x)


def _layer_impl(x, first_params, tail_params, *, first_stride):
    x = _block_impl(x, first_params, stride=first_stride)
    if tail_params is not None:
        def body(h, bp):
            return _block_impl(h, bp, stride=1), None
        x, _ = jax.lax.scan(body, x, tail_params)
    return x


def _content_impl(x, p):
    s0, t0 = p["bn0"][0], p["bn0"][1]
    xb = (x.astype(jnp.float32) * s0 + t0).astype(jnp.bfloat16)
    h = conv3x3_s1_implicit(xb, p["conv1_w"], p["conv1_ep"], has_prelu=True)
    out = conv3x3_im2col(h, p["conv2_w"], p["conv2_ep"], stride=2,
                         out_dtype=jnp.float32)
    return jnp.transpose(out, (0, 3, 1, 2))                      # NCHW like torch


def _head_impl(feats, head_w, head_ep):
    B = feats[0].shape[0]
    # torch: cat (B,C,3,3) features on channel dim then flatten -> order (c, h, w)
    flat = jnp.concatenate(
        [jnp.transpose(f, (0, 3, 1, 2)).reshape(B, -1) for f in feats], axis=1)
    lat = matmul_fused(flat.astype(jnp.bfloat16), head_w, head_ep,
                       out_dtype=jnp.float32)
    return lat.reshape(B, N_STYLES, 512)


_stem_fwd = jax.jit(_stem_impl)
_layer_fwd = jax.jit(_layer_impl, static_argnames=("first_stride",))
_pool_fwd = jax.jit(_adaptive_avg_pool_3x3)
_content_fwd = jax.jit(_content_impl)
_head_fwd = jax.jit(_head_impl)


def feature_encoder_mult_forward(params, x_nchw):
    """FeatureEncoderMult.forward with fs_layers=(5,), ranks=None (inference BN)."""
    x = _stem_fwd(x_nchw, params["stem"])
    feats = []
    x = _layer_fwd(x, params["layer1"]["first"], params["layer1"]["tail"],
                   first_stride=2)
    feats.append(_pool_fwd(x))
    x = _layer_fwd(x, params["layer2"]["first"], params["layer2"]["tail"],
                   first_stride=2)
    feats.append(_pool_fwd(x))
    x = _layer_fwd(x, params["layer3"]["first"], params["layer3"]["tail"],
                   first_stride=2)
    content = [_content_fwd(x, params["content"])]     # max(fs_layers)=5 <= 7
    feats.append(_pool_fwd(x))
    x = _layer_fwd(x, params["layer4"]["first"], params["layer4"]["tail"],
                   first_stride=2)
    feats.append(_pool_fwd(x))
    latents = _head_fwd(tuple(feats), params["head_w"], params["head_ep"])
    return latents, content


# ----------------------------------------------------------------------------
if __name__ == "__main__":
    key = jax.random.PRNGKey(0)
    kp, kx = jax.random.split(key)
    params = init_params(kp)

    # small NCHW input; forward resizes it to 256x256 (as transform_to_256 does)
    x = jax.random.normal(kx, (1, 3, 64, 64), jnp.float32)

    latents, content = feature_encoder_mult_forward(params, x)
    jax.block_until_ready(latents)
    jax.block_until_ready(content[0])

    assert latents.shape == (1, N_STYLES, 512), latents.shape
    assert content[0].shape == (1, 512, 16, 16), content[0].shape
    assert bool(jnp.all(jnp.isfinite(latents)))
    assert bool(jnp.all(jnp.isfinite(content[0])))
    print("KERNEL_OK")
</pallas_src>

<mosaic_0001>
module attributes {stable_mosaic.version = 11 : i64} {
  func.func @_mm_kernel(%arg0: i32, %arg1: i32, %arg2: memref<2048x32xbf16, #tpu.memory_space<vmem>>, %arg3: memref<32x64xbf16, #tpu.memory_space<vmem>>, %arg4: memref<8x64xf32, #tpu.memory_space<vmem>>, %arg5: memref<2048x64xbf16, #tpu.memory_space<vmem>>) attributes {dimension_semantics = [#tpu.dimension_semantics<parallel>, #tpu.dimension_semantics<parallel>], iteration_bounds = array<i64: 32, 1>, scalar_prefetch = 0 : i64, scratch_operands = 0 : i64, tpu.core_type = #tpu.core_type<tc>, window_params = [{transform_indices = @transform_0, window_bounds = array<i64: 2048, 32>}, {transform_indices = @transform_1, window_bounds = array<i64: 32, 64>}, {transform_indices = @transform_2, window_bounds = array<i64: 8, 64>}, {transform_indices = @transform_3, window_bounds = array<i64: 2048, 64>}]} {
    %c0 = arith.constant 0 : index
    %c0_0 = arith.constant 0 : index
    %0 = vector.load %arg2[%c0, %c0_0] : memref<2048x32xbf16, #tpu.memory_space<vmem>>, vector<2048x32xbf16>
    %c0_1 = arith.constant 0 : index
    %c0_2 = arith.constant 0 : index
    %1 = vector.load %arg3[%c0_1, %c0_2] : memref<32x64xbf16, #tpu.memory_space<vmem>>, vector<32x64xbf16>
    %cst = arith.constant dense<0.000000e+00> : vector<2048x64xf32>
    %2 = tpu.matmul %0, %1, %cst {dimension_numbers = #tpu.dot_dimension_numbers<[1], [0], [0], [1], [0, 0, 1, 1], [], []>} : vector<2048x32xbf16>, vector<32x64xbf16>, vector<2048x64xf32> -> vector<2048x64xf32>
    %c0_3 = arith.constant 0 : index
    %c0_4 = arith.constant 0 : index
    %3 = vector.load %arg4[%c0_3, %c0_4] : memref<8x64xf32, #tpu.memory_space<vmem>>, vector<1x64xf32>
    %4 = vector.broadcast %3 : vector<1x64xf32> to vector<2048x64xf32>
    %5 = arith.mulf %2, %4 : vector<2048x64xf32>
    %c1 = arith.constant 1 : index
    %c0_5 = arith.constant 0 : index
    %6 = vector.load %arg4[%c1, %c0_5] : memref<8x64xf32, #tpu.memory_space<vmem>>, vector<1x64xf32>
    %7 = vector.broadcast %6 : vector<1x64xf32> to vector<2048x64xf32>
    %8 = arith.addf %5, %7 : vector<2048x64xf32>
    %cst_6 = arith.constant 0.000000e+00 : f32
    %9 = vector.broadcast %cst_6 : f32 to vector<2048x64xf32>
    %10 = arith.cmpf ogt, %8, %9 : vector<2048x64xf32>
    %c2 = arith.constant 2 : index
    %c0_7 = arith.constant 0 : index
    %11 = vector.load %arg4[%c2, %c0_7] : memref<8x64xf32, #tpu.memory_space<vmem>>, vector<1x64xf32>
    %12 = vector.broadcast %11 : vector<1x64xf32> to vector<2048x64xf32>
    %13 = arith.mulf %8, %12 : vector<2048x64xf32>
    %14 = arith.select %10, %8, %13 : vector<2048x64xi1>, vector<2048x64xf32>
    %15 = arith.truncf %14 : vector<2048x64xf32> to vector<2048x64xbf16>
    %c0_8 = arith.constant 0 : index
    %c0_9 = arith.constant 0 : index
    %16 = vector.load %arg5[%c0_8, %c0_9] : memref<2048x64xbf16, #tpu.memory_space<vmem>>, vector<2048x64xbf16>
    tpu.vector_store %arg5[%c0_8, %c0_9], %15 {strides = array<i32>} : memref<2048x64xbf16, #tpu.memory_space<vmem>>, vector<2048x64xbf16>,
    return
  }
  func.func @transform_0(%arg0: i32, %arg1: i32) -> (i32, i32) {
    %c0_i32 = arith.constant 0 : i32
    %c0_i32_0 = arith.constant 0 : i32
    return %arg0, %c0_i32 : i32, i32
  }
  func.func @transform_1(%arg0: i32, %arg1: i32) -> (i32, i32) {
    %c0_i32 = arith.constant 0 : i32
    %c0_i32_0 = arith.constant 0 : i32
    return %c0_i32, %arg1 : i32, i32
  }
  func.func @transform_2(%arg0: i32, %arg1: i32) -> (i32, i32) {
    %c0_i32 = arith.constant 0 : i32
    %c0_i32_0 = arith.constant 0 : i32
    return %c0_i32, %arg1 : i32, i32
  }
  func.func @transform_3(%arg0: i32, %arg1: i32) -> (i32, i32) {
    %c0_i32 = arith.constant 0 : i32
    return %arg0, %arg1 : i32, i32
  }
}

</mosaic_0001>

<llo_original>
// kernel: _stem_impl.1
$region0: #{_stem_impl.1}
  #allocation0 [shape = 'u32[]', space=smem, size = 0x4, offset = 0x4, fixed_abs, tag = 'smem constant byte address 0x4 - core index']
  #allocation1 [shape = 'u32[72,128]{1,0:T(1,128)}', space=vmem, size = 0x9000, scoped, tag = 'internal scratch']
  %s0 = inlined_call_operand.vmem [shape: bf16[65536,32], index: 0, kind: input, shape index: {}]
  %s1 = inlined_call_operand.vmem [shape: bf16[32,64], index: 1, kind: input, shape index: {}]
  %s2 = inlined_call_operand.vmem [shape: f32[8,64], index: 2, kind: input, shape index: {}]
  %s3 = inlined_call_operand.vmem [shape: bf16[65536,64], index: 3, kind: output, shape index: {}]
  %s4 = sld [smem:[#allocation0]]
  $region45: #{_stem_impl.1} parent=0
    _
  %s6 = ssub.s32 1, %s4
  %s7 = scalar_select 0, %s6, %s4
  loop: start=0, step=1, limit=34
  $region2: #{_stem_impl.1} parent=0 // loop_pre_header
    _
  $region3: #{_stem_impl.1} parent=0 // loop_header
    %s9 = sphi 0, %s13
    %p10 = scmp.ge.s32.totalorder %s9, 34
    %s16 = sphi 0, %s28
    %s17 = sphi 0, %s24
    %s18 = sphi 0, %s16
    %s19 = sphi 0, %s17
    %s20 = sphi 0, %s18
    %s21 = sphi 0, %s19
    %s31 = sphi 0, %s33
    %s34 = sphi 0, %s31
    %s35 = sphi 0, %s34
    %s51 = sphi 0, %s35
    %s57 = sphi 0, %s59
    %s60 = sphi 0, %s57
    %s61 = sphi 0, %s60
    %s77 = sphi 0, %s61
    %s83 = sphi 0, %s85
    %s86 = sphi 0, %s83
    %s87 = sphi 0, %s86
    %s103 = sphi 0, %s87
    %s111 = sphi 0, %s113
    %s114 = sphi 0, %s111
    %s115 = sphi 0, %s114
    %s131 = sphi 0, %s115
  $region4: #{_stem_impl.1} parent=0 // loop_header_branch
    %12 = sbr.rel (%p10) target = $region8
  $region5: #{_stem_impl.1} parent=0 // loop_body
    %s14 = ssub.s32 %s9, 1
    %s15 = ssub.s32 %s9, 2
    %s22 = sadd.s32 1, %s17
    %p23 = scmp.ge.s32.totalorder %s22, 1
    %s24 = scalar_select %p23, 0, %s22
    %s25 = sadd.s32 1, %s16
    %s26 = scalar_select %p23, %s25, %s16
    %p27 = scmp.ge.s32.totalorder %s26, 32
    %s28 = scalar_select %p27, 0, %s26
    %s29 = ssub.s32 %s16, %s28
    %p30 = scmp.eq.s32.totalorder %s29, 0
    %s32 = sadd.s32 %s31, 1
    %s33 = scalar_select %p30, %s31, %s32
    %p36 = pneg %p30
    %p37 = scmp.eq.s32.totalorder %s9, 31
    %p38 = por %p36, %p37
    %p39 = scmp.ne.s32.totalorder %s31, %s34
    %p40 = scmp.eq.s32.totalorder %s9, 0
    %p41 = por %p39, %p40
    %p42 = scmp.ne.s32.totalorder %s31, %s34
    %p43 = scmp.eq.s32.totalorder %s14, 31
    %p44 = por %p42, %p43
    %p45 = scmp.ne.s32.totalorder %s34, %s35
    %p46 = scmp.eq.s32.totalorder %s14, 0
    %p47 = por %p45, %p46
    %p48 = scmp.ne.s32.totalorder %s34, %s35
    %p49 = scmp.eq.s32.totalorder %s15, 31
    %p50 = por %p48, %p49
    %p52 = scmp.ne.s32.totalorder %s35, %s51
    %p53 = scmp.eq.s32.totalorder %s15, 0
    %p54 = por %p52, %p53
    %s55 = ssub.s32 %s17, %s24
    %p56 = scmp.eq.s32.totalorder %s55, 0
    %s58 = sadd.s32 %s57, 1
    %s59 = scalar_select %p56, %s57, %s58
    %p62 = pneg %p56
    %p63 = scmp.eq.s32.totalorder %s9, 31
    %p64 = por %p62, %p63
    %p65 = scmp.ne.s32.totalorder %s57, %s60
    %p66 = scmp.eq.s32.totalorder %s9, 0
    %p67 = por %p65, %p66
    %p68 = scmp.ne.s32.totalorder %s57, %s60
    %p69 = scmp.eq.s32.totalorder %s14, 31
    %p70 = por %p68, %p69
    %p71 = scmp.ne.s32.totalorder %s60, %s61
    %p72 = scmp.eq.s32.totalorder %s14, 0
    %p73 = por %p71, %p72
    %p74 = scmp.ne.s32.totalorder %s60, %s61
    %p75 = scmp.eq.s32.totalorder %s15, 31
    %p76 = por %p74, %p75
    %p78 = scmp.ne.s32.totalorder %s61, %s77
    %p79 = scmp.eq.s32.totalorder %s15, 0
    %p80 = por %p78, %p79
    %s81 = ssub.s32 %s17, %s24
    %p82 = scmp.eq.s32.totalorder %s81, 0
    %s84 = sadd.s32 %s83, 1
    %s85 = scalar_select %p82, %s83, %s84
    %p88 = pneg %p82
    %p89 = scmp.eq.s32.totalorder %s9, 31
    %p90 = por %p88, %p89
    %p91 = scmp.ne.s32.totalorder %s83, %s86
    %p92 = scmp.eq.s32.totalorder %s9, 0
    %p93 = por %p91, %p92
    %p94 = scmp.ne.s32.totalorder %s83, %s86
    %p95 = scmp.eq.s32.totalorder %s14, 31
    %p96 = por %p94, %p95
    %p97 = scmp.ne.s32.totalorder %s86, %s87
    %p98 = scmp.eq.s32.totalorder %s14, 0
    %p99 = por %p97, %p98
    %p100 = scmp.ne.s32.totalorder %s86, %s87
    %p101 = scmp.eq.s32.totalorder %s15, 31
    %p102 = por %p100, %p101
    %p104 = scmp.ne.s32.totalorder %s87, %s103
    %p105 = scmp.eq.s32.totalorder %s15, 0
    %p106 = por %p104, %p105
    %s107 = ssub.s32 %s16, %s28
    %s108 = ssub.s32 %s17, %s24
    %s109 = sor.u32 %s107, %s108
    %p110 = scmp.eq.s32.totalorder %s109, 0
    %s112 = sadd.s32 %s111, 1
    %s113 = scalar_select %p110, %s111, %s112
    %p116 = pneg %p110
    %p117 = scmp.eq.s32.totalorder %s9, 31
    %p118 = por %p116, %p117
    %p119 = scmp.ne.s32.totalorder %s111, %s114
    %p120 = scmp.eq.s32.totalorder %s9, 0
    %p121 = por %p119, %p120
    %p122 = scmp.ne.s32.totalorder %s111, %s114
    %p123 = scmp.eq.s32.totalorder %s14, 31
    %p124 = por %p122, %p123
    %p125 = scmp.ne.s32.totalorder %s114, %s115
    %p126 = scmp.eq.s32.totalorder %s14, 0
    %p127 = por %p125, %p126
    %p128 = scmp.ne.s32.totalorder %s114, %s115
    %p129 = scmp.eq.s32.totalorder %s15, 31
    %p130 = por %p128, %p129
    %p132 = scmp.ne.s32.totalorder %s115, %s131
    %p133 = scmp.eq.s32.totalorder %s15, 0
    %p134 = por %p132, %p133
    %p135 = scmp.le.s32.totalorder 1, %s9
    %p136 = scmp.lt.s32.totalorder %s9, 33
    %p137 = pnand %p135, %p136
    %p138 = pneg %p137
    // Predicated region
    $region9: #{_stem_impl.1} parent=5 // pred_check
      _
    $region10: #{_stem_impl.1} parent=5 // pred_check_branch
      %140 = sbr.rel (%p137) target = $region12
    $region11: #{_stem_impl.1} parent=5 // pred_region
      %s141 = ssub.s32 %s9, 1
      // Predicated region
      $region13: #{_stem_impl.1} parent=11 // pred_check
        %p142 = pneg %p73
      $region14: #{_stem_impl.1} parent=11 // pred_check_branch
        %144 = sbr.rel (%p142) target = $region16
      $region15: #{_stem_impl.1} parent=11 // pred_region
        %p145 = scmp.lt.s32.totalorder %s19, 0
        %s146 = scalar_select %p145, %s19, 0
        %s147 = smul.addr %s146, 4
        %s148 = scalar_lea.vmem %s1, %s147
      $region16: #{_stem_impl.1} parent=11 // pred_fallthru
        _
      // Predicated region
      $region17: #{_stem_impl.1} parent=11 // pred_check
        %p149 = pneg %p99
      $region18: #{_stem_impl.1} parent=11 // pred_check_branch
        %151 = sbr.rel (%p149) target = $region20
      $region19: #{_stem_impl.1} parent=11 // pred_region
        %p152 = scmp.lt.s32.totalorder %s19, 0
        %s153 = scalar_select %p152, %s19, 0
        %s154 = smul.addr %s153, 8
        %s155 = scalar_lea.vmem %s2, %s154
      $region20: #{_stem_impl.1} parent=11 // pred_fallthru
        _
    $region12: #{_stem_impl.1} parent=5 // pred_fallthru
      _
    %p156 = scmp.lt.s32.totalorder %s9, 32
    // Predicated region
    $region21: #{_stem_impl.1} parent=5 // pred_check
      %p157 = pneg %p156
    $region22: #{_stem_impl.1} parent=5 // pred_check_branch
      %159 = sbr.rel (%p157) target = $region24
    $region23: #{_stem_impl.1} parent=5 // pred_region
      // Predicated region
      $region25: #{_stem_impl.1} parent=23 // pred_check
        %p160 = pneg %p41
      $region26: #{_stem_impl.1} parent=23 // pred_check_branch
        %162 = sbr.rel (%p160) target = $region28
      $region27: #{_stem_impl.1} parent=23 // pred_region
        %s163 = smul.u32 256, %s16
        %p164 = scmp.lt.s32.totalorder %s163, 8191
        %s165 = scalar_select %p164, %s163, 8191
        %s166 = smul.addr %s165, 4
        %s167 = scalar_lea.vmem %s0, %s166
        %s168 = smul.u32 256, %s16
      $region28: #{_stem_impl.1} parent=23 // pred_fallthru
        _
    $region24: #{_stem_impl.1} parent=5 // pred_fallthru
      _
    %p169 = scmp.le.s32.totalorder 1, %s9
    %p170 = scmp.lt.s32.totalorder %s9, 33
    %p171 = pnand %p169, %p170
    %p172 = pneg %p171
    // Predicated region
    $region29: #{_stem_impl.1} parent=5 // pred_check
      _
    $region30: #{_stem_impl.1} parent=5 // pred_check_branch
      %174 = sbr.rel (%p171) target = $region32
    $region31: #{_stem_impl.1} parent=5 // pred_region
      %s175 = ssub.s32 %s9, 1
      %s176 = smul.u32 256, %s18
      %p177 = scmp.lt.s32.totalorder %s176, 8191
      %s178 = scalar_select %p177, %s176, 8191
      %s179 = smul.addr %s178, 4
      %s180 = scalar_lea.vmem %s0, %s179
      %p181 = pneg %p47
      %p182 = pneg %p44
      %p183 = scmp.lt.s32.totalorder %s19, 0
      %s184 = scalar_select %p183, %s19, 0
      %s185 = smul.addr %s184, 4
      %s186 = scalar_lea.vmem %s1, %s185
      %p187 = pneg %p73
      %p188 = pneg %p70
      %p189 = scmp.lt.s32.totalorder %s19, 0
      %s190 = scalar_select %p189, %s19, 0
      %s191 = smul.addr %s190, 8
      %s192 = scalar_lea.vmem %s2, %s191
      %p193 = pneg %p99
      %p194 = pneg %p96
      %p195 = pneg %p127
      %p196 = pneg %p124
      %s197 = smul.u32 256, %s18
      %p198 = scmp.lt.s32.totalorder %s197, 8191
      %s199 = scalar_select %p198, %s197, 8191
      %p200 = scmp.lt.s32.totalorder %s19, 0
      %s201 = scalar_select %p200, %s19, 0
      %s202 = sadd.s32 %s201, %s199
      %s203 = smul.addr %s202, 4
      %s204 = scalar_lea.vmem %s3, %s203
      %s205 = smul.u32 256, %s18
      %p206 = scmp.lt.s32.totalorder %s205, 8191
      %s207 = scalar_select %p206, %s205, 8191
      %s208 = smul.addr %s207, 4
      %s209 = scalar_lea.vmem %s0, %s208
      %s210 = smul.u32 256, %s18
      %p211 = scmp.lt.s32.totalorder %s19, 0
      %s212 = scalar_select %p211, %s19, 0
      %s213 = smul.addr %s212, 4
      %s214 = scalar_lea.vmem %s1, %s213
      %p215 = scmp.lt.s32.totalorder %s19, 0
      %s216 = scalar_select %p215, %s19, 0
      %s217 = smul.addr %s216, 8
      %s218 = scalar_lea.vmem %s2, %s217
      %s219 = smul.u32 256, %s18
      %p220 = scmp.lt.s32.totalorder %s219, 8191
      %s221 = scalar_select %p220, %s219, 8191
      %p222 = scmp.lt.s32.totalorder %s19, 0
      %s223 = scalar_select %p222, %s19, 0
      %s224 = sadd.s32 %s223, %s221
      %s225 = smul.addr %s224, 4
      %s226 = scalar_lea.vmem %s3, %s225
      %s227 = smul.u32 256, %s18
      %v229 = vld [vmem:[%s209] sm:$0xf]
      %v230 = vld [vmem:[%s209 + $0x4] sm:$0xf]
      %v231 = vld [vmem:[%s209 + $0x8] sm:$0xf]
      %v232 = vld [vmem:[%s209 + $0xc] sm:$0xf]
      %v233 = vld [vmem:[%s209 + $0x10] sm:$0xf]
      %v234 = vld [vmem:[%s209 + $0x14] sm:$0xf]
      %v235 = vld [vmem:[%s209 + $0x18] sm:$0xf]
      %v236 = vld [vmem:[%s209 + $0x1c] sm:$0xf]
      %v237 = vld [vmem:[%s209 + $0x20] sm:$0xf]
      %v238 = vld [vmem:[%s209 + $0x24] sm:$0xf]
      %v239 = vld [vmem:[%s209 + $0x28] sm:$0xf]
      %v240 = vld [vmem:[%s209 + $0x2c] sm:$0xf]
      %v241 = vld [vmem:[%s209 + $0x30] sm:$0xf]
      %v242 = vld [vmem:[%s209 + $0x34] sm:$0xf]
      %v243 = vld [vmem:[%s209 + $0x38] sm:$0xf]
      %v244 = vld [vmem:[%s209 + $0x3c] sm:$0xf]
      %v245 = vld [vmem:[%s209 + $0x40] sm:$0xf]
      %v246 = vld [vmem:[%s209 + $0x44] sm:$0xf]
      %v247 = vld [vmem:[%s209 + $0x48] sm:$0xf]
      %v248 = vld [vmem:[%s209 + $0x4c] sm:$0xf]
      %v249 = vld [vmem:[%s209 + $0x50] sm:$0xf]
      %v250 = vld [vmem:[%s209 + $0x54] sm:$0xf]
      %v251 = vld [vmem:[%s209 + $0x58] sm:$0xf]
      %v252 = vld [vmem:[%s209 + $0x5c] sm:$0xf]
      %v253 = vld [vmem:[%s209 + $0x60] sm:$0xf]
      %v254 = vld [vmem:[%s209 + $0x64] sm:$0xf]
      %v255 = vld [vmem:[%s209 + $0x68] sm:$0xf]
      %v256 = vld [vmem:[%s209 + $0x6c] sm:$0xf]
      %v257 = vld [vmem:[%s209 + $0x70] sm:$0xf]
      %v258 = vld [vmem:[%s209 + $0x74] sm:$0xf]
      %v259 = vld [vmem:[%s209 + $0x78] sm:$0xf]
      %v260 = vld [vmem:[%s209 + $0x7c] sm:$0xf]
      %v261 = vld [vmem:[%s209 + $0x80] sm:$0xf]
      %v262 = vld [vmem:[%s209 + $0x84] sm:$0xf]
      %v263 = vld [vmem:[%s209 + $0x88] sm:$0xf]
      %v264 = vld [vmem:[%s209 + $0x8c] sm:$0xf]
      %v265 = vld [vmem:[%s209 + $0x90] sm:$0xf]
      %v266 = vld [vmem:[%s209 + $0x94] sm:$0xf]
      %v267 = vld [vmem:[%s209 + $0x98] sm:$0xf]
      %v268 = vld [vmem:[%s209 + $0x9c] sm:$0xf]
      %v269 = vld [vmem:[%s209 + $0xa0] sm:$0xf]
      %v270 = vld [vmem:[%s209 + $0xa4] sm:$0xf]
      %v271 = vld [vmem:[%s209 + $0xa8] sm:$0xf]
      %v272 = vld [vmem:[%s209 + $0xac] sm:$0xf]
      %v273 = vld [vmem:[%s209 + $0xb0] sm:$0xf]
      %v274 = vld [vmem:[%s209 + $0xb4] sm:$0xf]
      %v275 = vld [vmem:[%s209 + $0xb8] sm:$0xf]
      %v276 = vld [vmem:[%s209 + $0xbc] sm:$0xf]
      %v277 = vld [vmem:[%s209 + $0xc0] sm:$0xf]
      %v278 = vld [vmem:[%s209 + $0xc4] sm:$0xf]
      %v279 = vld [vmem:[%s209 + $0xc8] sm:$0xf]
      %v280 = vld [vmem:[%s209 + $0xcc] sm:$0xf]
      %v281 = vld [vmem:[%s209 + $0xd0] sm:$0xf]
      %v282 = vld [vmem:[%s209 + $0xd4] sm:$0xf]
      %v283 = vld [vmem:[%s209 + $0xd8] sm:$0xf]
      %v284 = vld [vmem:[%s209 + $0xdc] sm:$0xf]
      %v285 = vld [vmem:[%s209 + $0xe0] sm:$0xf]
      %v286 = vld [vmem:[%s209 + $0xe4] sm:$0xf]
      %v287 = vld [vmem:[%s209 + $0xe8] sm:$0xf]
      %v288 = vld [vmem:[%s209 + $0xec] sm:$0xf]
      %v289 = vld [vmem:[%s209 + $0xf0] sm:$0xf]
      %v290 = vld [vmem:[%s209 + $0xf4] sm:$0xf]
      %v291 = vld [vmem:[%s209 + $0xf8] sm:$0xf]
      %v292 = vld [vmem:[%s209 + $0xfc] sm:$0xf]
      %v293 = vld [vmem:[%s209 + $0x100] sm:$0xf]
      %v294 = vld [vmem:[%s209 + $0x104] sm:$0xf]
      %v295 = vld [vmem:[%s209 + $0x108] sm:$0xf]
      %v296 = vld [vmem:[%s209 + $0x10c] sm:$0xf]
      %v297 = vld [vmem:[%s209 + $0x110] sm:$0xf]
      %v298 = vld [vmem:[%s209 + $0x114] sm:$0xf]
      %v299 = vld [vmem:[%s209 + $0x118] sm:$0xf]
      %v300 = vld [vmem:[%s209 + $0x11c] sm:$0xf]
      %v301 = vld [vmem:[%s209 + $0x120] sm:$0xf]
      %v302 = vld [vmem:[%s209 + $0x124] sm:$0xf]
      %v303 = vld [vmem:[%s209 + $0x128] sm:$0xf]
      %v304 = vld [vmem:[%s209 + $0x12c] sm:$0xf]
      %v305 = vld [vmem:[%s209 + $0x130] sm:$0xf]
      %v306 = vld [vmem:[%s209 + $0x134] sm:$0xf]
      %v307 = vld [vmem:[%s209 + $0x138] sm:$0xf]
      %v308 = vld [vmem:[%s209 + $0x13c] sm:$0xf]
      %v309 = vld [vmem:[%s209 + $0x140] sm:$0xf]
      %v310 = vld [vmem:[%s209 + $0x144] sm:$0xf]
      %v311 = vld [vmem:[%s209 + $0x148] sm:$0xf]
      %v312 = vld [vmem:[%s209 + $0x14c] sm:$0xf]
      %v313 = vld [vmem:[%s209 + $0x150] sm:$0xf]
      %v314 = vld [vmem:[%s209 + $0x154] sm:$0xf]
      %v315 = vld [vmem:[%s209 + $0x158] sm:$0xf]
      %v316 = vld [vmem:[%s209 + $0x15c] sm:$0xf]
      %v317 = vld [vmem:[%s209 + $0x160] sm:$0xf]
      %v318 = vld [vmem:[%s209 + $0x164] sm:$0xf]
      %v319 = vld [vmem:[%s209 + $0x168] sm:$0xf]
      %v320 = vld [vmem:[%s209 + $0x16c] sm:$0xf]
      %v321 = vld [vmem:[%s209 + $0x170] sm:$0xf]
      %v322 = vld [vmem:[%s209 + $0x174] sm:$0xf]
      %v323 = vld [vmem:[%s209 + $0x178] sm:$0xf]
      %v324 = vld [vmem:[%s209 + $0x17c] sm:$0xf]
      %v325 = vld [vmem:[%s209 + $0x180] sm:$0xf]
      %v326 = vld [vmem:[%s209 + $0x184] sm:$0xf]
      %v327 = vld [vmem:[%s209 + $0x188] sm:$0xf]
      %v328 = vld [vmem:[%s209 + $0x18c] sm:$0xf]
      %v329 = vld [vmem:[%s209 + $0x190] sm:$0xf]
      %v330 = vld [vmem:[%s209 + $0x194] sm:$0xf]
      %v331 = vld [vmem:[%s209 + $0x198] sm:$0xf]
      %v332 = vld [vmem:[%s209 + $0x19c] sm:$0xf]
      %v333 = vld [vmem:[%s209 + $0x1a0] sm:$0xf]
      %v334 = vld [vmem:[%s209 + $0x1a4] sm:$0xf]
      %v335 = vld [vmem:[%s209 + $0x1a8] sm:$0xf]
      %v336 = vld [vmem:[%s209 + $0x1ac] sm:$0xf]
      %v337 = vld [vmem:[%s209 + $0x1b0] sm:$0xf]
      %v338 = vld [vmem:[%s209 + $0x1b4] sm:$0xf]
      %v339 = vld [vmem:[%s209 + $0x1b8] sm:$0xf]
      %v340 = vld [vmem:[%s209 + $0x1bc] sm:$0xf]
      %v341 = vld [vmem:[%s209 + $0x1c0] sm:$0xf]
      %v342 = vld [vmem:[%s209 + $0x1c4] sm:$0xf]
      %v343 = vld [vmem:[%s209 + $0x1c8] sm:$0xf]
      %v344 = vld [vmem:[%s209 + $0x1cc] sm:$0xf]
      %v345 = vld [vmem:[%s209 + $0x1d0] sm:$0xf]
      %v346 = vld [vmem:[%s209 + $0x1d4] sm:$0xf]
      %v347 = vld [vmem:[%s209 + $0x1d8] sm:$0xf]
      %v348 = vld [vmem:[%s209 + $0x1dc] sm:$0xf]
      %v349 = vld [vmem:[%s209 + $0x1e0] sm:$0xf]
      %v350 = vld [vmem:[%s209 + $0x1e4] sm:$0xf]
      %v351 = vld [vmem:[%s209 + $0x1e8] sm:$0xf]
      %v352 = vld [vmem:[%s209 + $0x1ec] sm:$0xf]
      %v353 = vld [vmem:[%s209 + $0x1f0] sm:$0xf]
      %v354 = vld [vmem:[%s209 + $0x1f4] sm:$0xf]
      %v355 = vld [vmem:[%s209 + $0x1f8] sm:$0xf]
      %v356 = vld [vmem:[%s209 + $0x1fc] sm:$0xf]
      %v357 = vld [vmem:[%s209 + $0x200] sm:$0xf]
      %v358 = vld [vmem:[%s209 + $0x204] sm:$0xf]
      %v359 = vld [vmem:[%s209 + $0x208] sm:$0xf]
      %v360 = vld [vmem:[%s209 + $0x20c] sm:$0xf]
      %v361 = vld [vmem:[%s209 + $0x210] sm:$0xf]
      %v362 = vld [vmem:[%s209 + $0x214] sm:$0xf]
      %v363 = vld [vmem:[%s209 + $0x218] sm:$0xf]
      %v364 = vld [vmem:[%s209 + $0x21c] sm:$0xf]
      %v365 = vld [vmem:[%s209 + $0x220] sm:$0xf]
      %v366 = vld [vmem:[%s209 + $0x224] sm:$0xf]
      %v367 = vld [vmem:[%s209 + $0x228] sm:$0xf]
      %v368 = vld [vmem:[%s209 + $0x22c] sm:$0xf]
      %v369 = vld [vmem:[%s209 + $0x230] sm:$0xf]
      %v370 = vld [vmem:[%s209 + $0x234] sm:$0xf]
      %v371 = vld [vmem:[%s209 + $0x238] sm:$0xf]
      %v372 = vld [vmem:[%s209 + $0x23c] sm:$0xf]
      %v373 = vld [vmem:[%s209 + $0x240] sm:$0xf]
      %v374 = vld [vmem:[%s209 + $0x244] sm:$0xf]
      %v375 = vld [vmem:[%s209 + $0x248] sm:$0xf]
      %v376 = vld [vmem:[%s209 + $0x24c] sm:$0xf]
      %v377 = vld [vmem:[%s209 + $0x250] sm:$0xf]
      %v378 = vld [vmem:[%s209 + $0x254] sm:$0xf]
      %v379 = vld [vmem:[%s209 + $0x258] sm:$0xf]
      %v380 = vld [vmem:[%s209 + $0x25c] sm:$0xf]
      %v381 = vld [vmem:[%s209 + $0x260] sm:$0xf]
      %v382 = vld [vmem:[%s209 + $0x264] sm:$0xf]
      %v383 = vld [vmem:[%s209 + $0x268] sm:$0xf]
      %v384 = vld [vmem:[%s209 + $0x26c] sm:$0xf]
      %v385 = vld [vmem:[%s209 + $0x270] sm:$0xf]
      %v386 = vld [vmem:[%s209 + $0x274] sm:$0xf]
      %v387 = vld [vmem:[%s209 + $0x278] sm:$0xf]
      %v388 = vld [vmem:[%s209 + $0x27c] sm:$0xf]
      %v389 = vld [vmem:[%s209 + $0x280] sm:$0xf]
      %v390 = vld [vmem:[%s209 + $0x284] sm:$0xf]
      %v391 = vld [vmem:[%s209 + $0x288] sm:$0xf]
      %v392 = vld [vmem:[%s209 + $0x28c] sm:$0xf]
      %v393 = vld [vmem:[%s209 + $0x290] sm:$0xf]
      %v394 = vld [vmem:[%s209 + $0x294] sm:$0xf]
      %v395 = vld [vmem:[%s209 + $0x298] sm:$0xf]
      %v396 = vld [vmem:[%s209 + $0x29c] sm:$0xf]
      %v397 = vld [vmem:[%s209 + $0x2a0] sm:$0xf]
      %v398 = vld [vmem:[%s209 + $0x2a4] sm:$0xf]
      %v399 = vld [vmem:[%s209 + $0x2a8] sm:$0xf]
      %v400 = vld [vmem:[%s209 + $0x2ac] sm:$0xf]
      %v401 = vld [vmem:[%s209 + $0x2b0] sm:$0xf]
      %v402 = vld [vmem:[%s209 + $0x2b4] sm:$0xf]
      %v403 = vld [vmem:[%s209 + $0x2b8] sm:$0xf]
      %v404 = vld [vmem:[%s209 + $0x2bc] sm:$0xf]
      %v405 = vld [vmem:[%s209 + $0x2c0] sm:$0xf]
      %v406 = vld [vmem:[%s209 + $0x2c4] sm:$0xf]
      %v407 = vld [vmem:[%s209 + $0x2c8] sm:$0xf]
      %v408 = vld [vmem:[%s209 + $0x2cc] sm:$0xf]
      %v409 = vld [vmem:[%s209 + $0x2d0] sm:$0xf]
      %v410 = vld [vmem:[%s209 + $0x2d4] sm:$0xf]
      %v411 = vld [vmem:[%s209 + $0x2d8] sm:$0xf]
      %v412 = vld [vmem:[%s209 + $0x2dc] sm:$0xf]
      %v413 = vld [vmem:[%s209 + $0x2e0] sm:$0xf]
      %v414 = vld [vmem:[%s209 + $0x2e4] sm:$0xf]
      %v415 = vld [vmem:[%s209 + $0x2e8] sm:$0xf]
      %v416 = vld [vmem:[%s209 + $0x2ec] sm:$0xf]
      %v417 = vld [vmem:[%s209 + $0x2f0] sm:$0xf]
      %v418 = vld [vmem:[%s209 + $0x2f4] sm:$0xf]
      %v419 = vld [vmem:[%s209 + $0x2f8] sm:$0xf]
      %v420 = vld [vmem:[%s209 + $0x2fc] sm:$0xf]
      %v421 = vld [vmem:[%s209 + $0x300] sm:$0xf]
      %v422 = vld [vmem:[%s209 + $0x304] sm:$0xf]
      %v423 = vld [vmem:[%s209 + $0x308] sm:$0xf]
      %v424 = vld [vmem:[%s209 + $0x30c] sm:$0xf]
      %v425 = vld [vmem:[%s209 + $0x310] sm:$0xf]
      %v426 = vld [vmem:[%s209 + $0x314] sm:$0xf]
      %v427 = vld [vmem:[%s209 + $0x318] sm:$0xf]
      %v428 = vld [vmem:[%s209 + $0x31c] sm:$0xf]
      %v429 = vld [vmem:[%s209 + $0x320] sm:$0xf]
      %v430 = vld [vmem:[%s209 + $0x324] sm:$0xf]
      %v431 = vld [vmem:[%s209 + $0x328] sm:$0xf]
      %v432 = vld [vmem:[%s209 + $0x32c] sm:$0xf]
      %v433 = vld [vmem:[%s209 + $0x330] sm:$0xf]
      %v434 = vld [vmem:[%s209 + $0x334] sm:$0xf]
      %v435 = vld [vmem:[%s209 + $0x338] sm:$0xf]
      %v436 = vld [vmem:[%s209 + $0x33c] sm:$0xf]
      %v437 = vld [vmem:[%s209 + $0x340] sm:$0xf]
      %v438 = vld [vmem:[%s209 + $0x344] sm:$0xf]
      %v439 = vld [vmem:[%s209 + $0x348] sm:$0xf]
      %v440 = vld [vmem:[%s209 + $0x34c] sm:$0xf]
      %v441 = vld [vmem:[%s209 + $0x350] sm:$0xf]
      %v442 = vld [vmem:[%s209 + $0x354] sm:$0xf]
      %v443 = vld [vmem:[%s209 + $0x358] sm:$0xf]
      %v444 = vld [vmem:[%s209 + $0x35c] sm:$0xf]
      %v445 = vld [vmem:[%s209 + $0x360] sm:$0xf]
      %v446 = vld [vmem:[%s209 + $0x364] sm:$0xf]
      %v447 = vld [vmem:[%s209 + $0x368] sm:$0xf]
      %v448 = vld [vmem:[%s209 + $0x36c] sm:$0xf]
      %v449 = vld [vmem:[%s209 + $0x370] sm:$0xf]
      %v450 = vld [vmem:[%s209 + $0x374] sm:$0xf]
      %v451 = vld [vmem:[%s209 + $0x378] sm:$0xf]
      %v452 = vld [vmem:[%s209 + $0x37c] sm:$0xf]
      %v453 = vld [vmem:[%s209 + $0x380] sm:$0xf]
      %v454 = vld [vmem:[%s209 + $0x384] sm:$0xf]
      %v455 = vld [vmem:[%s209 + $0x388] sm:$0xf]
      %v456 = vld [vmem:[%s209 + $0x38c] sm:$0xf]
      %v457 = vld [vmem:[%s209 + $0x390] sm:$0xf]
      %v458 = vld [vmem:[%s209 + $0x394] sm:$0xf]
      %v459 = vld [vmem:[%s209 + $0x398] sm:$0xf]
      %v460 = vld [vmem:[%s209 + $0x39c] sm:$0xf]
      %v461 = vld [vmem:[%s209 + $0x3a0] sm:$0xf]
      %v462 = vld [vmem:[%s209 + $0x3a4] sm:$0xf]
      %v463 = vld [vmem:[%s209 + $0x3a8] sm:$0xf]
      %v464 = vld [vmem:[%s209 + $0x3ac] sm:$0xf]
      %v465 = vld [vmem:[%s209 + $0x3b0] sm:$0xf]
      %v466 = vld [vmem:[%s209 + $0x3b4] sm:$0xf]
      %v467 = vld [vmem:[%s209 + $0x3b8] sm:$0xf]
      %v468 = vld [vmem:[%s209 + $0x3bc] sm:$0xf]
      %v469 = vld [vmem:[%s209 + $0x3c0] sm:$0xf]
      %v470 = vld [vmem:[%s209 + $0x3c4] sm:$0xf]
      %v471 = vld [vmem:[%s209 + $0x3c8] sm:$0xf]
      %v472 = vld [vmem:[%s209 + $0x3cc] sm:$0xf]
      %v473 = vld [vmem:[%s209 + $0x3d0] sm:$0xf]
      %v474 = vld [vmem:[%s209 + $0x3d4] sm:$0xf]
      %v475 = vld [vmem:[%s209 + $0x3d8] sm:$0xf]
      %v476 = vld [vmem:[%s209 + $0x3dc] sm:$0xf]
      %v477 = vld [vmem:[%s209 + $0x3e0] sm:$0xf]
      %v478 = vld [vmem:[%s209 + $0x3e4] sm:$0xf]
      %v479 = vld [vmem:[%s209 + $0x3e8] sm:$0xf]
      %v480 = vld [vmem:[%s209 + $0x3ec] sm:$0xf]
      %v481 = vld [vmem:[%s209 + $0x3f0] sm:$0xf]
      %v482 = vld [vmem:[%s209 + $0x3f4] sm:$0xf]
      %v483 = vld [vmem:[%s209 + $0x3f8] sm:$0xf]
      %v484 = vld [vmem:[%s209 + $0x3fc] sm:$0xf]
      %v485 = vld [vmem:[%s214] sm:$0xf]
      %v486 = vld [vmem:[%s214 + $0x4] sm:$0xf]
      %v487 = vld [vmem:[%s214 + $0x8] sm:$0xf]
      %v488 = vld [vmem:[%s214 + $0xc] sm:$0xf]
      %v745 = vunpack.c.l.b16 %v229
      %v746 = vunpack.c.l.b16 %v230
      %v747 = vunpack.c.l.b16 %v231
      %v748 = vunpack.c.l.b16 %v232
      %v749 = vunpack.c.l.b16 %v233
      %v750 = vunpack.c.l.b16 %v234
      %v751 = vunpack.c.l.b16 %v235
      %v752 = vunpack.c.l.b16 %v236
      %v753 = vunpack.c.l.b16 %v237
      %v754 = vunpack.c.l.b16 %v238
      %v755 = vunpack.c.l.b16 %v239
      %v756 = vunpack.c.l.b16 %v240
      %v757 = vunpack.c.l.b16 %v241
      %v758 = vunpack.c.l.b16 %v242
      %v759 = vunpack.c.l.b16 %v243
      %v760 = vunpack.c.l.b16 %v244
      %v761 = vunpack.c.l.b16 %v245
      %v762 = vunpack.c.l.b16 %v246
      %v763 = vunpack.c.l.b16 %v247
      %v764 = vunpack.c.l.b16 %v248
      %v765 = vunpack.c.l.b16 %v249
      %v766 = vunpack.c.l.b16 %v250
      %v767 = vunpack.c.l.b16 %v251
      %v768 = vunpack.c.l.b16 %v252
      %v769 = vunpack.c.l.b16 %v253
      %v770 = vunpack.c.l.b16 %v254
      %v771 = vunpack.c.l.b16 %v255
      %v772 = vunpack.c.l.b16 %v256
      %v773 = vunpack.c.l.b16 %v257
      %v774 = vunpack.c.l.b16 %v258
      %v775 = vunpack.c.l.b16 %v259
      %v776 = vunpack.c.l.b16 %v260
      %v777 = vunpack.c.l.b16 %v261
      %v778 = vunpack.c.l.b16 %v262
      %v779 = vunpack.c.l.b16 %v263
      %v780 = vunpack.c.l.b16 %v264
      %v781 = vunpack.c.l.b16 %v265
      %v782 = vunpack.c.l.b16 %v266
      %v783 = vunpack.c.l.b16 %v267
      %v784 = vunpack.c.l.b16 %v268
      %v785 = vunpack.c.l.b16 %v269
      %v786 = vunpack.c.l.b16 %v270
      %v787 = vunpack.c.l.b16 %v271
      %v788 = vunpack.c.l.b16 %v272
      %v789 = vunpack.c.l.b16 %v273
      %v790 = vunpack.c.l.b16 %v274
      %v791 = vunpack.c.l.b16 %v275
      %v792 = vunpack.c.l.b16 %v276
      %v793 = vunpack.c.l.b16 %v277
      %v794 = vunpack.c.l.b16 %v278
      %v795 = vunpack.c.l.b16 %v279
      %v796 = vunpack.c.l.b16 %v280
      %v797 = vunpack.c.l.b16 %v281
      %v798 = vunpack.c.l.b16 %v282
      %v799 = vunpack.c.l.b16 %v283
      %v800 = vunpack.c.l.b16 %v284
      %v801 = vunpack.c.l.b16 %v285
      %v802 = vunpack.c.l.b16 %v286
      %v803 = vunpack.c.l.b16 %v287
      %v804 = vunpack.c.l.b16 %v288
      %v805 = vunpack.c.l.b16 %v289
      %v806 = vunpack.c.l.b16 %v290
      %v807 = vunpack.c.l.b16 %v291
      %v808 = vunpack.c.l.b16 %v292
      %v809 = vunpack.c.l.b16 %v293
      %v810 = vunpack.c.l.b16 %v294
      %v811 = vunpack.c.l.b16 %v295
      %v812 = vunpack.c.l.b16 %v296
      %v813 = vunpack.c.l.b16 %v297
      %v814 = vunpack.c.l.b16 %v298
      %v815 = vunpack.c.l.b16 %v299
      %v816 = vunpack.c.l.b16 %v300
      %v817 = vunpack.c.l.b16 %v301
      %v818 = vunpack.c.l.b16 %v302
      %v819 = vunpack.c.l.b16 %v303
      %v820 = vunpack.c.l.b16 %v304
      %v821 = vunpack.c.l.b16 %v305
      %v822 = vunpack.c.l.b16 %v306
      %v823 = vunpack.c.l.b16 %v307
      %v824 = vunpack.c.l.b16 %v308
      %v825 = vunpack.c.l.b16 %v309
      %v826 = vunpack.c.l.b16 %v310
      %v827 = vunpack.c.l.b16 %v311
      %v828 = vunpack.c.l.b16 %v312
      %v829 = vunpack.c.l.b16 %v313
      %v830 = vunpack.c.l.b16 %v314
      %v831 = vunpack.c.l.b16 %v315
      %v832 = vunpack.c.l.b16 %v316
      %v833 = vunpack.c.l.b16 %v317
      %v834 = vunpack.c.l.b16 %v318
      %v835 = vunpack.c.l.b16 %v319
      %v836 = vunpack.c.l.b16 %v320
      %v837 = vunpack.c.l.b16 %v321
      %v838 = vunpack.c.l.b16 %v322
      %v839 = vunpack.c.l.b16 %v323
      %v840 = vunpack.c.l.b16 %v324
      %v841 = vunpack.c.l.b16 %v325
      %v842 = vunpack.c.l.b16 %v326
      %v843 = vunpack.c.l.b16 %v327
      %v844 = vunpack.c.l.b16 %v328
      %v845 = vunpack.c.l.b16 %v329
      %v846 = vunpack.c.l.b16 %v330
      %v847 = vunpack.c.l.b16 %v331
      %v848 = vunpack.c.l.b16 %v332
      %v849 = vunpack.c.l.b16 %v333
      %v850 = vunpack.c.l.b16 %v334
      %v851 = vunpack.c.l.b16 %v335
      %v852 = vunpack.c.l.b16 %v336
      %v853 = vunpack.c.l.b16 %v337
      %v854 = vunpack.c.l.b16 %v338
      %v855 = vunpack.c.l.b16 %v339
      %v856 = vunpack.c.l.b16 %v340
      %v857 = vunpack.c.l.b16 %v341
      %v858 = vunpack.c.l.b16 %v342
      %v859 = vunpack.c.l.b16 %v343
      %v860 = vunpack.c.l.b16 %v344
      %v861 = vunpack.c.l.b16 %v345
      %v862 = vunpack.c.l.b16 %v346
      %v863 = vunpack.c.l.b16 %v347
      %v864 = vunpack.c.l.b16 %v348
      %v865 = vunpack.c.l.b16 %v349
      %v866 = vunpack.c.l.b16 %v350
      %v867 = vunpack.c.l.b16 %v351
      %v868 = vunpack.c.l.b16 %v352
      %v869 = vunpack.c.l.b16 %v353
      %v870 = vunpack.c.l.b16 %v354
      %v871 = vunpack.c.l.b16 %v355
      %v872 = vunpack.c.l.b16 %v356
      %v873 = vunpack.c.l.b16 %v357
      %v874 = vunpack.c.l.b16 %v358
      %v875 = vunpack.c.l.b16 %v359
      %v876 = vunpack.c.l.b16 %v360
      %v877 = vunpack.c.l.b16 %v361
      %v878 = vunpack.c.l.b16 %v362
      %v879 = vunpack.c.l.b16 %v363
      %v880 = vunpack.c.l.b16 %v364
      %v881 = vunpack.c.l.b16 %v365
      %v882 = vunpack.c.l.b16 %v366
      %v883 = vunpack.c.l.b16 %v367
      %v884 = vunpack.c.l.b16 %v368
      %v885 = vunpack.c.l.b16 %v369
      %v886 = vunpack.c.l.b16 %v370
      %v887 = vunpack.c.l.b16 %v371
      %v888 = vunpack.c.l.b16 %v372
      %v889 = vunpack.c.l.b16 %v373
      %v890 = vunpack.c.l.b16 %v374
      %v891 = vunpack.c.l.b16 %v375
      %v892 = vunpack.c.l.b16 %v376
      %v893 = vunpack.c.l.b16 %v377
      %v894 = vunpack.c.l.b16 %v378
      %v895 = vunpack.c.l.b16 %v379
      %v896 = vunpack.c.l.b16 %v380
      %v897 = vunpack.c.l.b16 %v381
      %v898 = vunpack.c.l.b16 %v382
      %v899 = vunpack.c.l.b16 %v383
      %v900 = vunpack.c.l.b16 %v384
      %v901 = vunpack.c.l.b16 %v385
      %v902 = vunpack.c.l.b16 %v386
      %v903 = vunpack.c.l.b16 %v387
      %v904 = vunpack.c.l.b16 %v388
      %v905 = vunpack.c.l.b16 %v389
      %v906 = vunpack.c.l.b16 %v390
      %v907 = vunpack.c.l.b16 %v391
      %v908 = vunpack.c.l.b16 %v392
      %v909 = vunpack.c.l.b16 %v393
      %v910 = vunpack.c.l.b16 %v394
      %v911 = vunpack.c.l.b16 %v395
      %v912 = vunpack.c.l.b16 %v396
      %v913 = vunpack.c.l.b16 %v397
      %v914 = vunpack.c.l.b16 %v398
      %v915 = vunpack.c.l.b16 %v399
      %v916 = vunpack.c.l.b16 %v400
      %v917 = vunpack.c.l.b16 %v401
      %v918 = vunpack.c.l.b16 %v402
      %v919 = vunpack.c.l.b16 %v403
      %v920 = vunpack.c.l.b16 %v404
      %v921 = vunpack.c.l.b16 %v405
      %v922 = vunpack.c.l.b16 %v406
      %v923 = vunpack.c.l.b16 %v407
      %v924 = vunpack.c.l.b16 %v408
      %v925 = vunpack.c.l.b16 %v409
      %v926 = vunpack.c.l.b16 %v410
      %v927 = vunpack.c.l.b16 %v411
      %v928 = vunpack.c.l.b16 %v412
      %v929 = vunpack.c.l.b16 %v413
      %v930 = vunpack.c.l.b16 %v414
      %v931 = vunpack.c.l.b16 %v415
      %v932 = vunpack.c.l.b16 %v416
      %v933 = vunpack.c.l.b16 %v417
      %v934 = vunpack.c.l.b16 %v418
      %v935 = vunpack.c.l.b16 %v419
      %v936 = vunpack.c.l.b16 %v420
      %v937 = vunpack.c.l.b16 %v421
      %v938 = vunpack.c.l.b16 %v422
      %v939 = vunpack.c.l.b16 %v423
      %v940 = vunpack.c.l.b16 %v424
      %v941 = vunpack.c.l.b16 %v425
      %v942 = vunpack.c.l.b16 %v426
      %v943 = vunpack.c.l.b16 %v427
      %v944 = vunpack.c.l.b16 %v428
      %v945 = vunpack.c.l.b16 %v429
      %v946 = vunpack.c.l.b16 %v430
      %v947 = vunpack.c.l.b16 %v431
      %v948 = vunpack.c.l.b16 %v432
      %v949 = vunpack.c.l.b16 %v433
      %v950 = vunpack.c.l.b16 %v434
      %v951 = vunpack.c.l.b16 %v435
      %v952 = vunpack.c.l.b16 %v436
      %v953 = vunpack.c.l.b16 %v437
      %v954 = vunpack.c.l.b16 %v438
      %v955 = vunpack.c.l.b16 %v439
      %v956 = vunpack.c.l.b16 %v440
      %v957 = vunpack.c.l.b16 %v441
      %v958 = vunpack.c.l.b16 %v442
      %v959 = vunpack.c.l.b16 %v443
      %v960 = vunpack.c.l.b16 %v444
      %v961 = vunpack.c.l.b16 %v445
      %v962 = vunpack.c.l.b16 %v446
      %v963 = vunpack.c.l.b16 %v447
      %v964 = vunpack.c.l.b16 %v448
      %v965 = vunpack.c.l.b16 %v449
      %v966 = vunpack.c.l.b16 %v450
      %v967 = vunpack.c.l.b16 %v451
      %v968 = vunpack.c.l.b16 %v452
      %v969 = vunpack.c.l.b16 %v453
      %v970 = vunpack.c.l.b16 %v454
      %v971 = vunpack.c.l.b16 %v455
      %v972 = vunpack.c.l.b16 %v456
      %v973 = vunpack.c.l.b16 %v457
      %v974 = vunpack.c.l.b16 %v458
      %v975 = vunpack.c.l.b16 %v459
      %v976 = vunpack.c.l.b16 %v460
      %v977 = vunpack.c.l.b16 %v461
      %v978 = vunpack.c.l.b16 %v462
      %v979 = vunpack.c.l.b16 %v463
      %v980 = vunpack.c.l.b16 %v464
      %v981 = vunpack.c.l.b16 %v465
      %v982 = vunpack.c.l.b16 %v466
      %v983 = vunpack.c.l.b16 %v467
      %v984 = vunpack.c.l.b16 %v468
      %v985 = vunpack.c.l.b16 %v469
      %v986 = vunpack.c.l.b16 %v470
      %v987 = vunpack.c.l.b16 %v471
      %v988 = vunpack.c.l.b16 %v472
      %v989 = vunpack.c.l.b16 %v473
      %v990 = vunpack.c.l.b16 %v474
      %v991 = vunpack.c.l.b16 %v475
      %v992 = vunpack.c.l.b16 %v476
      %v993 = vunpack.c.l.b16 %v477
      %v994 = vunpack.c.l.b16 %v478
      %v995 = vunpack.c.l.b16 %v479
      %v996 = vunpack.c.l.b16 %v480
      %v997 = vunpack.c.l.b16 %v481
      %v998 = vunpack.c.l.b16 %v482
      %v999 = vunpack.c.l.b16 %v483
      %v1000 = vunpack.c.l.b16 %v484
      %v1001 = vpack.c.b16 %v746, %v745
      %v1002 = vpack.c.b16 %v748, %v747
      %v1003 = vpack.c.b16 %v750, %v749
      %v1004 = vpack.c.b16 %v752, %v751
      %v1005 = vpack.c.b16 %v754, %v753
      %v1006 = vpack.c.b16 %v756, %v755
      %v1007 = vpack.c.b16 %v758, %v757
      %v1008 = vpack.c.b16 %v760, %v759
      %v1009 = vpack.c.b16 %v762, %v761
      %v1010 = vpack.c.b16 %v764, %v763
      %v1011 = vpack.c.b16 %v766, %v765
      %v1012 = vpack.c.b16 %v768, %v767
      %v1013 = vpack.c.b16 %v770, %v769
      %v1014 = vpack.c.b16 %v772, %v771
      %v1015 = vpack.c.b16 %v774, %v773
      %v1016 = vpack.c.b16 %v776, %v775
      %v1017 = vpack.c.b16 %v778, %v777
      %v1018 = vpack.c.b16 %v780, %v779
      %v1019 = vpack.c.b16 %v782, %v781
      %v1020 = vpack.c.b16 %v784, %v783
      %v1021 = vpack.c.b16 %v786, %v785
      %v1022 = vpack.c.b16 %v788, %v787
      %v1023 = vpack.c.b16 %v790, %v789
      %v1024 = vpack.c.b16 %v792, %v791
      %v1025 = vpack.c.b16 %v794, %v793
      %v1026 = vpack.c.b16 %v796, %v795
      %v1027 = vpack.c.b16 %v798, %v797
      %v1028 = vpack.c.b16 %v800, %v799
      %v1029 = vpack.c.b16 %v802, %v801
      %v1030 = vpack.c.b16 %v804, %v803
      %v1031 = vpack.c.b16 %v806, %v805
      %v1032 = vpack.c.b16 %v808, %v807
      %v1033 = vpack.c.b16 %v810, %v809
      %v1034 = vpack.c.b16 %v812, %v811
      %v1035 = vpack.c.b16 %v814, %v813
      %v1036 = vpack.c.b16 %v816, %v815
      %v1037 = vpack.c.b16 %v818, %v817
      %v1038 = vpack.c.b16 %v820, %v819
      %v1039 = vpack.c.b16 %v822, %v821
      %v1040 = vpack.c.b16 %v824, %v823
      %v1041 = vpack.c.b16 %v826, %v825
      %v1042 = vpack.c.b16 %v828, %v827
      %v1043 = vpack.c.b16 %v830, %v829
      %v1044 = vpack.c.b16 %v832, %v831
      %v1045 = vpack.c.b16 %v834, %v833
      %v1046 = vpack.c.b16 %v836, %v835
      %v1047 = vpack.c.b16 %v838, %v837
      %v1048 = vpack.c.b16 %v840, %v839
      %v1049 = vpack.c.b16 %v842, %v841
      %v1050 = vpack.c.b16 %v844, %v843
      %v1051 = vpack.c.b16 %v846, %v845
      %v1052 = vpack.c.b16 %v848, %v847
      %v1053 = vpack.c.b16 %v850, %v849
      %v1054 = vpack.c.b16 %v852, %v851
      %v1055 = vpack.c.b16 %v854, %v853
      %v1056 = vpack.c.b16 %v856, %v855
      %v1057 = vpack.c.b16 %v858, %v857
      %v1058 = vpack.c.b16 %v860, %v859
      %v1059 = vpack.c.b16 %v862, %v861
      %v1060 = vpack.c.b16 %v864, %v863
      %v1061 = vpack.c.b16 %v866, %v865
      %v1062 = vpack.c.b16 %v868, %v867
      %v1063 = vpack.c.b16 %v870, %v869
      %v1064 = vpack.c.b16 %v872, %v871
      %v1065 = vpack.c.b16 %v874, %v873
      %v1066 = vpack.c.b16 %v876, %v875
      %v1067 = vpack.c.b16 %v878, %v877
      %v1068 = vpack.c.b16 %v880, %v879
      %v1069 = vpack.c.b16 %v882, %v881
      %v1070 = vpack.c.b16 %v884, %v883
      %v1071 = vpack.c.b16 %v886, %v885
      %v1072 = vpack.c.b16 %v888, %v887
      %v1073 = vpack.c.b16 %v890, %v889
      %v1074 = vpack.c.b16 %v892, %v891
      %v1075 = vpack.c.b16 %v894, %v893
      %v1076 = vpack.c.b16 %v896, %v895
      %v1077 = vpack.c.b16 %v898, %v897
      %v1078 = vpack.c.b16 %v900, %v899
      %v1079 = vpack.c.b16 %v902, %v901
      %v1080 = vpack.c.b16 %v904, %v903
      %v1081 = vpack.c.b16 %v906, %v905
      %v1082 = vpack.c.b16 %v908, %v907
      %v1083 = vpack.c.b16 %v910, %v909
      %v1084 = vpack.c.b16 %v912, %v911
      %v1085 = vpack.c.b16 %v914, %v913
      %v1086 = vpack.c.b16 %v916, %v915
      %v1087 = vpack.c.b16 %v918, %v917
      %v1088 = vpack.c.b16 %v920, %v919
      %v1089 = vpack.c.b16 %v922, %v921
      %v1090 = vpack.c.b16 %v924, %v923
      %v1091 = vpack.c.b16 %v926, %v925
      %v1092 = vpack.c.b16 %v928, %v927
      %v1093 = vpack.c.b16 %v930, %v929
      %v1094 = vpack.c.b16 %v932, %v931
      %v1095 = vpack.c.b16 %v934, %v933
      %v1096 = vpack.c.b16 %v936, %v935
      %v1097 = vpack.c.b16 %v938, %v937
      %v1098 = vpack.c.b16 %v940, %v939
      %v1099 = vpack.c.b16 %v942, %v941
      %v1100 = vpack.c.b16 %v944, %v943
      %v1101 = vpack.c.b16 %v946, %v945
      %v1102 = vpack.c.b16 %v948, %v947
      %v1103 = vpack.c.b16 %v950, %v949
      %v1104 = vpack.c.b16 %v952, %v951
      %v1105 = vpack.c.b16 %v954, %v953
      %v1106 = vpack.c.b16 %v956, %v955
      %v1107 = vpack.c.b16 %v958, %v957
      %v1108 = vpack.c.b16 %v960, %v959
      %v1109 = vpack.c.b16 %v962, %v961
      %v1110 = vpack.c.b16 %v964, %v963
      %v1111 = vpack.c.b16 %v966, %v965
      %v1112 = vpack.c.b16 %v968, %v967
      %v1113 = vpack.c.b16 %v970, %v969
      %v1114 = vpack.c.b16 %v972, %v971
      %v1115 = vpack.c.b16 %v974, %v973
      %v1116 = vpack.c.b16 %v976, %v975
      %v1117 = vpack.c.b16 %v978, %v977
      %v1118 = vpack.c.b16 %v980, %v979
      %v1119 = vpack.c.b16 %v982, %v981
      %v1120 = vpack.c.b16 %v984, %v983
      %v1121 = vpack.c.b16 %v986, %v985
      %v1122 = vpack.c.b16 %v988, %v987
      %v1123 = vpack.c.b16 %v990, %v989
      %v1124 = vpack.c.b16 %v992, %v991
      %v1125 = vpack.c.b16 %v994, %v993
      %v1126 = vpack.c.b16 %v996, %v995
      %v1127 = vpack.c.b16 %v998, %v997
      %v1128 = vpack.c.b16 %v1000, %v999
      %v1133 = vunpack.c.l.b16 %v485
      %v1134 = vunpack.c.l.b16 %v486
      %v1135 = vunpack.c.l.b16 %v487
      %v1136 = vunpack.c.l.b16 %v488
      %v1137 = vpack.c.b16 %v1134, %v1133
      %v1138 = vpack.c.b16 %v1136, %v1135
      %vm1141 = vcmask 261120
      %v1143 = vsel %vm1141, %v1001, 0
      %v1146 = vsel %vm1141, %v1002, 0
      %v1149 = vsel %vm1141, %v1003, 0
      %v1152 = vsel %vm1141, %v1004, 0
      %v1155 = vsel %vm1141, %v1005, 0
      %v1158 = vsel %vm1141, %v1006, 0
      %v1161 = vsel %vm1141, %v1007, 0
      %v1164 = vsel %vm1141, %v1008, 0
      %v1167 = vsel %vm1141, %v1009, 0
      %v1170 = vsel %vm1141, %v1010, 0
      %v1173 = vsel %vm1141, %v1011, 0
      %v1176 = vsel %vm1141, %v1012, 0
      %v1179 = vsel %vm1141, %v1013, 0
      %v1182 = vsel %vm1141, %v1014, 0
      %v1185 = vsel %vm1141, %v1015, 0
      %v1188 = vsel %vm1141, %v1016, 0
      %v1191 = vsel %vm1141, %v1017, 0
      %v1194 = vsel %vm1141, %v1018, 0
      %v1197 = vsel %vm1141, %v1019, 0
      %v1200 = vsel %vm1141, %v1020, 0
      %v1203 = vsel %vm1141, %v1021, 0
      %v1206 = vsel %vm1141, %v1022, 0
      %v1209 = vsel %vm1141, %v1023, 0
      %v1212 = vsel %vm1141, %v1024, 0
      %v1215 = vsel %vm1141, %v1025, 0
      %v1218 = vsel %vm1141, %v1026, 0
      %v1221 = vsel %vm1141, %v1027, 0
      %v1224 = vsel %vm1141, %v1028, 0
      %v1227 = vsel %vm1141, %v1029, 0
      %v1230 = vsel %vm1141, %v1030, 0
      %v1233 = vsel %vm1141, %v1031, 0
      %v1236 = vsel %vm1141, %v1032, 0
      %v1239 = vsel %vm1141, %v1033, 0
      %v1242 = vsel %vm1141, %v1034, 0
      %v1245 = vsel %vm1141, %v1035, 0
      %v1248 = vsel %vm1141, %v1036, 0
      %v1251 = vsel %vm1141, %v1037, 0
      %v1254 = vsel %vm1141, %v1038, 0
      %v1257 = vsel %vm1141, %v1039, 0
      %v1260 = vsel %vm1141, %v1040, 0
      %v1263 = vsel %vm1141, %v1041, 0
      %v1266 = vsel %vm1141, %v1042, 0
      %v1269 = vsel %vm1141, %v1043, 0
      %v1272 = vsel %vm1141, %v1044, 0
      %v1275 = vsel %vm1141, %v1045, 0
      %v1278 = vsel %vm1141, %v1046, 0
      %v1281 = vsel %vm1141, %v1047, 0
      %v1284 = vsel %vm1141, %v1048, 0
      %v1287 = vsel %vm1141, %v1049, 0
      %v1290 = vsel %vm1141, %v1050, 0
      %v1293 = vsel %vm1141, %v1051, 0
      %v1296 = vsel %vm1141, %v1052, 0
      %v1299 = vsel %vm1141, %v1053, 0
      %v1302 = vsel %vm1141, %v1054, 0
      %v1305 = vsel %vm1141, %v1055, 0
      %v1308 = vsel %vm1141, %v1056, 0
      %v1311 = vsel %vm1141, %v1057, 0
      %v1314 = vsel %vm1141, %v1058, 0
      %v1317 = vsel %vm1141, %v1059, 0
      %v1320 = vsel %vm1141, %v1060, 0
      %v1323 = vsel %vm1141, %v1061, 0
      %v1326 = vsel %vm1141, %v1062, 0
      %v1329 = vsel %vm1141, %v1063, 0
      %v1332 = vsel %vm1141, %v1064, 0
      %v1335 = vsel %vm1141, %v1065, 0
      %v1338 = vsel %vm1141, %v1066, 0
      %v1341 = vsel %vm1141, %v1067, 0
      %v1344 = vsel %vm1141, %v1068, 0
      %v1347 = vsel %vm1141, %v1069, 0
      %v1350 = vsel %vm1141, %v1070, 0
      %v1353 = vsel %vm1141, %v1071, 0
      %v1356 = vsel %vm1141, %v1072, 0
      %v1359 = vsel %vm1141, %v1073, 0
      %v1362 = vsel %vm1141, %v1074, 0
      %v1365 = vsel %vm1141, %v1075, 0
      %v1368 = vsel %vm1141, %v1076, 0
      %v1371 = vsel %vm1141, %v1077, 0
      %v1374 = vsel %vm1141, %v1078, 0
      %v1377 = vsel %vm1141, %v1079, 0
      %v1380 = vsel %vm1141, %v1080, 0
      %v1383 = vsel %vm1141, %v1081, 0
      %v1386 = vsel %vm1141, %v1082, 0
      %v1389 = vsel %vm1141, %v1083, 0
      %v1392 = vsel %vm1141, %v1084, 0
      %v1395 = vsel %vm1141, %v1085, 0
      %v1398 = vsel %vm1141, %v1086, 0
      %v1401 = vsel %vm1141, %v1087, 0
      %v1404 = vsel %vm1141, %v1088, 0
      %v1407 = vsel %vm1141, %v1089, 0
      %v1410 = vsel %vm1141, %v1090, 0
      %v1413 = vsel %vm1141, %v1091, 0
      %v1416 = vsel %vm1141, %v1092, 0
      %v1419 = vsel %vm1141, %v1093, 0
      %v1422 = vsel %vm1141, %v1094, 0
      %v1425 = vsel %vm1141, %v1095, 0
      %v1428 = vsel %vm1141, %v1096, 0
      %v1431 = vsel %vm1141, %v1097, 0
      %v1434 = vsel %vm1141, %v1098, 0
      %v1437 = vsel %vm1141, %v1099, 0
      %v1440 = vsel %vm1141, %v1100, 0
      %v1443 = vsel %vm1141, %v1101, 0
      %v1446 = vsel %vm1141, %v1102, 0
      %v1449 = vsel %vm1141, %v1103, 0
      %v1452 = vsel %vm1141, %v1104, 0
      %v1455 = vsel %vm1141, %v1105, 0
      %v1458 = vsel %vm1141, %v1106, 0
      %v1461 = vsel %vm1141, %v1107, 0
      %v1464 = vsel %vm1141, %v1108, 0
      %v1467 = vsel %vm1141, %v1109, 0
      %v1470 = vsel %vm1141, %v1110, 0
      %v1473 = vsel %vm1141, %v1111, 0
      %v1476 = vsel %vm1141, %v1112, 0
      %v1479 = vsel %vm1141, %v1113, 0
      %v1482 = vsel %vm1141, %v1114, 0
      %v1485 = vsel %vm1141, %v1115, 0
      %v1488 = vsel %vm1141, %v1116, 0
      %v1491 = vsel %vm1141, %v1117, 0
      %v1494 = vsel %vm1141, %v1118, 0
      %v1497 = vsel %vm1141, %v1119, 0
      %v1500 = vsel %vm1141, %v1120, 0
      %v1503 = vsel %vm1141, %v1121, 0
      %v1506 = vsel %vm1141, %v1122, 0
      %v1509 = vsel %vm1141, %v1123, 0
      %v1512 = vsel %vm1141, %v1124, 0
      %v1515 = vsel %vm1141, %v1125, 0
      %v1518 = vsel %vm1141, %v1126, 0
      %v1521 = vsel %vm1141, %v1127, 0
      %v1524 = vsel %vm1141, %v1128, 0
      %1526 = vmatpush.bf16.msra.mxu0 0
      %1527 = vmatpush.bf16.msra.mxu0 0
      %1528 = vmatpush.bf16.msra.mxu0 0
      %1529 = vmatpush.bf16.msra.mxu0 0
      %1530 = vmatpush.bf16.msra.mxu0 0
      %1531 = vmatpush.bf16.msra.mxu0 0
      %1532 = vmatpush.bf16.msra.mxu0 %v1138
      %1533 = vmatpush.bf16.msra.mxu0 %v1137
      %1534 = vmatmul.bf16.gmra.mxu0 %v1143
      %v1535 = vpop.f32.mrf.mxu0
      %v1536 = vadd.f32 0.0, %v1535
      %v1537 = vpop.f32.mrf.mxu0
      %v1538 = vadd.f32 0.0, %v1537
      %1539 = vmatmul.bf16.gmra.mxu0 %v1146
      %v1540 = vpop.f32.mrf.mxu0
      %v1541 = vadd.f32 0.0, %v1540
      %v1542 = vpop.f32.mrf.mxu0
      %v1543 = vadd.f32 0.0, %v1542
      %1544 = vmatmul.bf16.gmra.mxu0 %v1149
      %v1545 = vpop.f32.mrf.mxu0
      %v1546 = vadd.f32 0.0, %v1545
      %v1547 = vpop.f32.mrf.mxu0
      %v1548 = vadd.f32 0.0, %v1547
      %1549 = vmatmul.bf16.gmra.mxu0 %v1152
      %v1550 = vpop.f32.mrf.mxu0
      %v1551 = vadd.f32 0.0, %v1550
      %v1552 = vpop.f32.mrf.mxu0
      %v1553 = vadd.f32 0.0, %v1552
      %1554 = vmatmul.bf16.gmra.mxu0 %v1155
      %v1555 = vpop.f32.mrf.mxu0
      %v1556 = vadd.f32 0.0, %v1555
      %v1557 = vpop.f32.mrf.mxu0
      %v1558 = vadd.f32 0.0, %v1557
      %1559 = vmatmul.bf16.gmra.mxu0 %v1158
      %v1560 = vpop.f32.mrf.mxu0
      %v1561 = vadd.f32 0.0, %v1560
      %v1562 = vpop.f32.mrf.mxu0
      %v1563 = vadd.f32 0.0, %v1562
      %1564 = vmatmul.bf16.gmra.mxu0 %v1161
      %v1565 = vpop.f32.mrf.mxu0
      %v1566 = vadd.f32 0.0, %v1565
      %v1567 = vpop.f32.mrf.mxu0
      %v1568 = vadd.f32 0.0, %v1567
      %1569 = vmatmul.bf16.gmra.mxu0 %v1164
      %v1570 = vpop.f32.mrf.mxu0
      %v1571 = vadd.f32 0.0, %v1570
      %v1572 = vpop.f32.mrf.mxu0
      %v1573 = vadd.f32 0.0, %v1572
      %1574 = vmatmul.bf16.gmra.mxu0 %v1167
      %v1575 = vpop.f32.mrf.mxu0
      %v1576 = vadd.f32 0.0, %v1575
      %v1577 = vpop.f32.mrf.mxu0
      %v1578 = vadd.f32 0.0, %v1577
      %1579 = vmatmul.bf16.gmra.mxu0 %v1170
      %v1580 = vpop.f32.mrf.mxu0
      %v1581 = vadd.f32 0.0, %v1580
      %v1582 = vpop.f32.mrf.mxu0
      %v1583 = vadd.f32 0.0, %v1582
      %1584 = vmatmul.bf16.gmra.mxu0 %v1173
      %v1585 = vpop.f32.mrf.mxu0
      %v1586 = vadd.f32 0.0, %v1585
      %v1587 = vpop.f32.mrf.mxu0
      %v1588 = vadd.f32 0.0, %v1587
      %1589 = vmatmul.bf16.gmra.mxu0 %v1176
      %v1590 = vpop.f32.mrf.mxu0
      %v1591 = vadd.f32 0.0, %v1590
      %v1592 = vpop.f32.mrf.mxu0
      %v1593 = vadd.f32 0.0, %v1592
      %1594 = vmatmul.bf16.gmra.mxu0 %v1179
      %v1595 = vpop.f32.mrf.mxu0
      %v1596 = vadd.f32 0.0, %v1595
      %v1597 = vpop.f32.mrf.mxu0
      %v1598 = vadd.f32 0.0, %v1597
      %1599 = vmatmul.bf16.gmra.mxu0 %v1182
      %v1600 = vpop.f32.mrf.mxu0
      %v1601 = vadd.f32 0.0, %v1600
      %v1602 = vpop.f32.mrf.mxu0
      %v1603 = vadd.f32 0.0, %v1602
      %1604 = vmatmul.bf16.gmra.mxu0 %v1185
      %v1605 = vpop.f32.mrf.mxu0
      %v1606 = vadd.f32 0.0, %v1605
      %v1607 = vpop.f32.mrf.mxu0
      %v1608 = vadd.f32 0.0, %v1607
      %1609 = vmatmul.bf16.gmra.mxu0 %v1188
      %v1610 = vpop.f32.mrf.mxu0
      %v1611 = vadd.f32 0.0, %v1610
      %v1612 = vpop.f32.mrf.mxu0
      %v1613 = vadd.f32 0.0, %v1612
      %1614 = vmatmul.bf16.gmra.mxu0 %v1191
      %v1615 = vpop.f32.mrf.mxu0
      %v1616 = vadd.f32 0.0, %v1615
      %v1617 = vpop.f32.mrf.mxu0
      %v1618 = vadd.f32 0.0, %v1617
      %1619 = vmatmul.bf16.gmra.mxu0 %v1194
      %v1620 = vpop.f32.mrf.mxu0
      %v1621 = vadd.f32 0.0, %v1620
      %v1622 = vpop.f32.mrf.mxu0
      %v1623 = vadd.f32 0.0, %v1622
      %1624 = vmatmul.bf16.gmra.mxu0 %v1197
      %v1625 = vpop.f32.mrf.mxu0
      %v1626 = vadd.f32 0.0, %v1625
      %v1627 = vpop.f32.mrf.mxu0
      %v1628 = vadd.f32 0.0, %v1627
      %1629 = vmatmul.bf16.gmra.mxu0 %v1200
      %v1630 = vpop.f32.mrf.mxu0
      %v1631 = vadd.f32 0.0, %v1630
      %v1632 = vpop.f32.mrf.mxu0
      %v1633 = vadd.f32 0.0, %v1632
      %1634 = vmatmul.bf16.gmra.mxu0 %v1203
      %v1635 = vpop.f32.mrf.mxu0
      %v1636 = vadd.f32 0.0, %v1635
      %v1637 = vpop.f32.mrf.mxu0
      %v1638 = vadd.f32 0.0, %v1637
      %1639 = vmatmul.bf16.gmra.mxu0 %v1206
      %v1640 = vpop.f32.mrf.mxu0
      %v1641 = vadd.f32 0.0, %v1640
      %v1642 = vpop.f32.mrf.mxu0
      %v1643 = vadd.f32 0.0, %v1642
      %1644 = vmatmul.bf16.gmra.mxu0 %v1209
      %v1645 = vpop.f32.mrf.mxu0
      %v1646 = vadd.f32 0.0, %v1645
      %v1647 = vpop.f32.mrf.mxu0
      %v1648 = vadd.f32 0.0, %v1647
      %1649 = vmatmul.bf16.gmra.mxu0 %v1212
      %v1650 = vpop.f32.mrf.mxu0
      %v1651 = vadd.f32 0.0, %v1650
      %v1652 = vpop.f32.mrf.mxu0
      %v1653 = vadd.f32 0.0, %v1652
      %1654 = vmatmul.bf16.gmra.mxu0 %v1215
      %v1655 = vpop.f32.mrf.mxu0
      %v1656 = vadd.f32 0.0, %v1655
      %v1657 = vpop.f32.mrf.mxu0
      %v1658 = vadd.f32 0.0, %v1657
      %1659 = vmatmul.bf16.gmra.mxu0 %v1218
      %v1660 = vpop.f32.mrf.mxu0
      %v1661 = vadd.f32 0.0, %v1660
      %v1662 = vpop.f32.mrf.mxu0
      %v1663 = vadd.f32 0.0, %v1662
      %1664 = vmatmul.bf16.gmra.mxu0 %v1221
      %v1665 = vpop.f32.mrf.mxu0
      %v1666 = vadd.f32 0.0, %v1665
      %v1667 = vpop.f32.mrf.mxu0
      %v1668 = vadd.f32 0.0, %v1667
      %1669 = vmatmul.bf16.gmra.mxu0 %v1224
      %v1670 = vpop.f32.mrf.mxu0
      %v1671 = vadd.f32 0.0, %v1670
      %v1672 = vpop.f32.mrf.mxu0
      %v1673 = vadd.f32 0.0, %v1672
      %1674 = vmatmul.bf16.gmra.mxu0 %v1227
      %v1675 = vpop.f32.mrf.mxu0
      %v1676 = vadd.f32 0.0, %v1675
      %v1677 = vpop.f32.mrf.mxu0
      %v1678 = vadd.f32 0.0, %v1677
      %1679 = vmatmul.bf16.gmra.mxu0 %v1230
      %v1680 = vpop.f32.mrf.mxu0
      %v1681 = vadd.f32 0.0, %v1680
      %v1682 = vpop.f32.mrf.mxu0
      %v1683 = vadd.f32 0.0, %v1682
      %1684 = vmatmul.bf16.gmra.mxu0 %v1233
      %v1685 = vpop.f32.mrf.mxu0
      %v1686 = vadd.f32 0.0, %v1685
      %v1687 = vpop.f32.mrf.mxu0
      %v1688 = vadd.f32 0.0, %v1687
      %1689 = vmatmul.bf16.gmra.mxu0 %v1236
      %v1690 = vpop.f32.mrf.mxu0
      %v1691 = vadd.f32 0.0, %v1690
      %v1692 = vpop.f32.mrf.mxu0
      %v1693 = vadd.f32 0.0, %v1692
      %1694 = vmatmul.bf16.gmra.mxu0 %v1239
      %v1695 = vpop.f32.mrf.mxu0
      %v1696 = vadd.f32 0.0, %v1695
      %v1697 = vpop.f32.mrf.mxu0
      %v1698 = vadd.f32 0.0, %v1697
      %1699 = vmatmul.bf16.gmra.mxu0 %v1242
      %v1700 = vpop.f32.mrf.mxu0
      %v1701 = vadd.f32 0.0, %v1700
      %v1702 = vpop.f32.mrf.mxu0
      %v1703 = vadd.f32 0.0, %v1702
      %1704 = vmatmul.bf16.gmra.mxu0 %v1245
      %v1705 = vpop.f32.mrf.mxu0
      %v1706 = vadd.f32 0.0, %v1705
      %v1707 = vpop.f32.mrf.mxu0
      %v1708 = vadd.f32 0.0, %v1707
      %1709 = vmatmul.bf16.gmra.mxu0 %v1248
      %v1710 = vpop.f32.mrf.mxu0
      %v1711 = vadd.f32 0.0, %v1710
      %v1712 = vpop.f32.mrf.mxu0
      %v1713 = vadd.f32 0.0, %v1712
      %1714 = vmatmul.bf16.gmra.mxu0 %v1251
      %v1715 = vpop.f32.mrf.mxu0
      %v1716 = vadd.f32 0.0, %v1715
      %v1717 = vpop.f32.mrf.mxu0
      %v1718 = vadd.f32 0.0, %v1717
      %1719 = vmatmul.bf16.gmra.mxu0 %v1254
      %v1720 = vpop.f32.mrf.mxu0
      %v1721 = vadd.f32 0.0, %v1720
      %v1722 = vpop.f32.mrf.mxu0
      %v1723 = vadd.f32 0.0, %v1722
      %1724 = vmatmul.bf16.gmra.mxu0 %v1257
      %v1725 = vpop.f32.mrf.mxu0
      %v1726 = vadd.f32 0.0, %v1725
      %v1727 = vpop.f32.mrf.mxu0
      %v1728 = vadd.f32 0.0, %v1727
      %1729 = vmatmul.bf16.gmra.mxu0 %v1260
      %v1730 = vpop.f32.mrf.mxu0
      %v1731 = vadd.f32 0.0, %v1730
      %v1732 = vpop.f32.mrf.mxu0
      %v1733 = vadd.f32 0.0, %v1732
      %1734 = vmatmul.bf16.gmra.mxu0 %v1263
      %v1735 = vpop.f32.mrf.mxu0
      %v1736 = vadd.f32 0.0, %v1735
      %v1737 = vpop.f32.mrf.mxu0
      %v1738 = vadd.f32 0.0, %v1737
      %1739 = vmatmul.bf16.gmra.mxu0 %v1266
      %v1740 = vpop.f32.mrf.mxu0
      %v1741 = vadd.f32 0.0, %v1740
      %v1742 = vpop.f32.mrf.mxu0
      %v1743 = vadd.f32 0.0, %v1742
      %1744 = vmatmul.bf16.gmra.mxu0 %v1269
      %v1745 = vpop.f32.mrf.mxu0
      %v1746 = vadd.f32 0.0, %v1745
      %v1747 = vpop.f32.mrf.mxu0
      %v1748 = vadd.f32 0.0, %v1747
      %1749 = vmatmul.bf16.gmra.mxu0 %v1272
      %v1750 = vpop.f32.mrf.mxu0
      %v1751 = vadd.f32 0.0, %v1750
      %v1752 = vpop.f32.mrf.mxu0
      %v1753 = vadd.f32 0.0, %v1752
      %1754 = vmatmul.bf16.gmra.mxu0 %v1275
      %v1755 = vpop.f32.mrf.mxu0
      %v1756 = vadd.f32 0.0, %v1755
      %v1757 = vpop.f32.mrf.mxu0
      %v1758 = vadd.f32 0.0, %v1757
      %1759 = vmatmul.bf16.gmra.mxu0 %v1278
      %v1760 = vpop.f32.mrf.mxu0
      %v1761 = vadd.f32 0.0, %v1760
      %v1762 = vpop.f32.mrf.mxu0
      %v1763 = vadd.f32 0.0, %v1762
      %1764 = vmatmul.bf16.gmra.mxu0 %v1281
      %v1765 = vpop.f32.mrf.mxu0
      %v1766 = vadd.f32 0.0, %v1765
      %v1767 = vpop.f32.mrf.mxu0
      %v1768 = vadd.f32 0.0, %v1767
      %1769 = vmatmul.bf16.gmra.mxu0 %v1284
      %v1770 = vpop.f32.mrf.mxu0
      %v1771 = vadd.f32 0.0, %v1770
      %v1772 = vpop.f32.mrf.mxu0
      %v1773 = vadd.f32 0.0, %v1772
      %1774 = vmatmul.bf16.gmra.mxu0 %v1287
      %v1775 = vpop.f32.mrf.mxu0
      %v1776 = vadd.f32 0.0, %v1775
      %v1777 = vpop.f32.mrf.mxu0
      %v1778 = vadd.f32 0.0, %v1777
      %1779 = vmatmul.bf16.gmra.mxu0 %v1290
      %v1780 = vpop.f32.mrf.mxu0
      %v1781 = vadd.f32 0.0, %v1780
      %v1782 = vpop.f32.mrf.mxu0
      %v1783 = vadd.f32 0.0, %v1782
      %1784 = vmatmul.bf16.gmra.mxu0 %v1293
      %v1785 = vpop.f32.mrf.mxu0
      %v1786 = vadd.f32 0.0, %v1785
      %v1787 = vpop.f32.mrf.mxu0
      %v1788 = vadd.f32 0.0, %v1787
      %1789 = vmatmul.bf16.gmra.mxu0 %v1296
      %v1790 = vpop.f32.mrf.mxu0
      %v1791 = vadd.f32 0.0, %v1790
      %v1792 = vpop.f32.mrf.mxu0
      %v1793 = vadd.f32 0.0, %v1792
      %1794 = vmatmul.bf16.gmra.mxu0 %v1299
      %v1795 = vpop.f32.mrf.mxu0
      %v1796 = vadd.f32 0.0, %v1795
      %v1797 = vpop.f32.mrf.mxu0
      %v1798 = vadd.f32 0.0, %v1797
      %1799 = vmatmul.bf16.gmra.mxu0 %v1302
      %v1800 = vpop.f32.mrf.mxu0
      %v1801 = vadd.f32 0.0, %v1800
      %v1802 = vpop.f32.mrf.mxu0
      %v1803 = vadd.f32 0.0, %v1802
      %1804 = vmatmul.bf16.gmra.mxu0 %v1305
      %v1805 = vpop.f32.mrf.mxu0
      %v1806 = vadd.f32 0.0, %v1805
      %v1807 = vpop.f32.mrf.mxu0
      %v1808 = vadd.f32 0.0, %v1807
      %1809 = vmatmul.bf16.gmra.mxu0 %v1308
      %v1810 = vpop.f32.mrf.mxu0
      %v1811 = vadd.f32 0.0, %v1810
      %v1812 = vpop.f32.mrf.mxu0
      %v1813 = vadd.f32 0.0, %v1812
      %1814 = vmatmul.bf16.gmra.mxu0 %v1311
      %v1815 = vpop.f32.mrf.mxu0
      %v1816 = vadd.f32 0.0, %v1815
      %v1817 = vpop.f32.mrf.mxu0
      %v1818 = vadd.f32 0.0, %v1817
      %1819 = vmatmul.bf16.gmra.mxu0 %v1314
      %v1820 = vpop.f32.mrf.mxu0
      %v1821 = vadd.f32 0.0, %v1820
      %v1822 = vpop.f32.mrf.mxu0
      %v1823 = vadd.f32 0.0, %v1822
      %1824 = vmatmul.bf16.gmra.mxu0 %v1317
      %v1825 = vpop.f32.mrf.mxu0
      %v1826 = vadd.f32 0.0, %v1825
      %v1827 = vpop.f32.mrf.mxu0
      %v1828 = vadd.f32 0.0, %v1827
      %1829 = vmatmul.bf16.gmra.mxu0 %v1320
      %v1830 = vpop.f32.mrf.mxu0
      %v1831 = vadd.f32 0.0, %v1830
      %v1832 = vpop.f32.mrf.mxu0
      %v1833 = vadd.f32 0.0, %v1832
      %1834 = vmatmul.bf16.gmra.mxu0 %v1323
      %v1835 = vpop.f32.mrf.mxu0
      %v1836 = vadd.f32 0.0, %v1835
      %v1837 = vpop.f32.mrf.mxu0
      %v1838 = vadd.f32 0.0, %v1837
      %1839 = vmatmul.bf16.gmra.mxu0 %v1326
      %v1840 = vpop.f32.mrf.mxu0
      %v1841 = vadd.f32 0.0, %v1840
      %v1842 = vpop.f32.mrf.mxu0
      %v1843 = vadd.f32 0.0, %v1842
      %1844 = vmatmul.bf16.gmra.mxu0 %v1329
      %v1845 = vpop.f32.mrf.mxu0
      %v1846 = vadd.f32 0.0, %v1845
      %v1847 = vpop.f32.mrf.mxu0
      %v1848 = vadd.f32 0.0, %v1847
      %1849 = vmatmul.bf16.gmra.mxu0 %v1332
      %v1850 = vpop.f32.mrf.mxu0
      %v1851 = vadd.f32 0.0, %v1850
      %v1852 = vpop.f32.mrf.mxu0
      %v1853 = vadd.f32 0.0, %v1852
      %1854 = vmatmul.bf16.gmra.mxu0 %v1335
      %v1855 = vpop.f32.mrf.mxu0
      %v1856 = vadd.f32 0.0, %v1855
      %v1857 = vpop.f32.mrf.mxu0
      %v1858 = vadd.f32 0.0, %v1857
      %1859 = vmatmul.bf16.gmra.mxu0 %v1338
      %v1860 = vpop.f32.mrf.mxu0
      %v1861 = vadd.f32 0.0, %v1860
      %v1862 = vpop.f32.mrf.mxu0
      %v1863 = vadd.f32 0.0, %v1862
      %1864 = vmatmul.bf16.gmra.mxu0 %v1341
      %v1865 = vpop.f32.mrf.mxu0
      %v1866 = vadd.f32 0.0, %v1865
      %v1867 = vpop.f32.mrf.mxu0
      %v1868 = vadd.f32 0.0, %v1867
      %1869 = vmatmul.bf16.gmra.mxu0 %v1344
      %v1870 = vpop.f32.mrf.mxu0
      %v1871 = vadd.f32 0.0, %v1870
      %v1872 = vpop.f32.mrf.mxu0
      %v1873 = vadd.f32 0.0, %v1872
      %1874 = vmatmul.bf16.gmra.mxu0 %v1347
      %v1875 = vpop.f32.mrf.mxu0
      %v1876 = vadd.f32 0.0, %v1875
      %v1877 = vpop.f32.mrf.mxu0
      %v1878 = vadd.f32 0.0, %v1877
      %1879 = vmatmul.bf16.gmra.mxu0 %v1350
      %v1880 = vpop.f32.mrf.mxu0
      %v1881 = vadd.f32 0.0, %v1880
      %v1882 = vpop.f32.mrf.mxu0
      %v1883 = vadd.f32 0.0, %v1882
      %1884 = vmatmul.bf16.gmra.mxu0 %v1353
      %v1885 = vpop.f32.mrf.mxu0
      %v1886 = vadd.f32 0.0, %v1885
      %v1887 = vpop.f32.mrf.mxu0
      %v1888 = vadd.f32 0.0, %v1887
      %1889 = vmatmul.bf16.gmra.mxu0 %v1356
      %v1890 = vpop.f32.mrf.mxu0
      %v1891 = vadd.f32 0.0, %v1890
      %v1892 = vpop.f32.mrf.mxu0
      %v1893 = vadd.f32 0.0, %v1892
      %1894 = vmatmul.bf16.gmra.mxu0 %v1359
      %v1895 = vpop.f32.mrf.mxu0
      %v1896 = vadd.f32 0.0, %v1895
      %v1897 = vpop.f32.mrf.mxu0
      %v1898 = vadd.f32 0.0, %v1897
      %1899 = vmatmul.bf16.gmra.mxu0 %v1362
      %v1900 = vpop.f32.mrf.mxu0
      %v1901 = vadd.f32 0.0, %v1900
      %v1902 = vpop.f32.mrf.mxu0
      %v1903 = vadd.f32 0.0, %v1902
      %1904 = vmatmul.bf16.gmra.mxu0 %v1365
      %v1905 = vpop.f32.mrf.mxu0
      %v1906 = vadd.f32 0.0, %v1905
      %v1907 = vpop.f32.mrf.mxu0
      %v1908 = vadd.f32 0.0, %v1907
      %1909 = vmatmul.bf16.gmra.mxu0 %v1368
      %v1910 = vpop.f32.mrf.mxu0
      %v1911 = vadd.f32 0.0, %v1910
      %v1912 = vpop.f32.mrf.mxu0
      %v1913 = vadd.f32 0.0, %v1912
      %1914 = vmatmul.bf16.gmra.mxu0 %v1371
      %v1915 = vpop.f32.mrf.mxu0
      %v1916 = vadd.f32 0.0, %v1915
      %v1917 = vpop.f32.mrf.mxu0
      %v1918 = vadd.f32 0.0, %v1917
      %1919 = vmatmul.bf16.gmra.mxu0 %v1374
      %v1920 = vpop.f32.mrf.mxu0
      %v1921 = vadd.f32 0.0, %v1920
      %v1922 = vpop.f32.mrf.mxu0
      %v1923 = vadd.f32 0.0, %v1922
      %1924 = vmatmul.bf16.gmra.mxu0 %v1377
      %v1925 = vpop.f32.mrf.mxu0
      %v1926 = vadd.f32 0.0, %v1925
      %v1927 = vpop.f32.mrf.mxu0
      %v1928 = vadd.f32 0.0, %v1927
      %1929 = vmatmul.bf16.gmra.mxu0 %v1380
      %v1930 = vpop.f32.mrf.mxu0
      %v1931 = vadd.f32 0.0, %v1930
      %v1932 = vpop.f32.mrf.mxu0
      %v1933 = vadd.f32 0.0, %v1932
      %1934 = vmatmul.bf16.gmra.mxu0 %v1383
      %v1935 = vpop.f32.mrf.mxu0
      %v1936 = vadd.f32 0.0, %v1935
      %v1937 = vpop.f32.mrf.mxu0
      %v1938 = vadd.f32 0.0, %v1937
      %1939 = vmatmul.bf16.gmra.mxu0 %v1386
      %v1940 = vpop.f32.mrf.mxu0
      %v1941 = vadd.f32 0.0, %v1940
      %v1942 = vpop.f32.mrf.mxu0
      %v1943 = vadd.f32 0.0, %v1942
      %1944 = vmatmul.bf16.gmra.mxu0 %v1389
      %v1945 = vpop.f32.mrf.mxu0
      %v1946 = vadd.f32 0.0, %v1945
      %v1947 = vpop.f32.mrf.mxu0
      %v1948 = vadd.f32 0.0, %v1947
      %1949 = vmatmul.bf16.gmra.mxu0 %v1392
      %v1950 = vpop.f32.mrf.mxu0
      %v1951 = vadd.f32 0.0, %v1950
      %v1952 = vpop.f32.mrf.mxu0
      %v1953 = vadd.f32 0.0, %v1952
      %1954 = vmatmul.bf16.gmra.mxu0 %v1395
      %v1955 = vpop.f32.mrf.mxu0
      %v1956 = vadd.f32 0.0, %v1955
      %v1957 = vpop.f32.mrf.mxu0
      %v1958 = vadd.f32 0.0, %v1957
      %1959 = vmatmul.bf16.gmra.mxu0 %v1398
      %v1960 = vpop.f32.mrf.mxu0
      %v1961 = vadd.f32 0.0, %v1960
      %v1962 = vpop.f32.mrf.mxu0
      %v1963 = vadd.f32 0.0, %v1962
      %1964 = vmatmul.bf16.gmra.mxu0 %v1401
      %v1965 = vpop.f32.mrf.mxu0
      %v1966 = vadd.f32 0.0, %v1965
      %v1967 = vpop.f32.mrf.mxu0
      %v1968 = vadd.f32 0.0, %v1967
      %1969 = vmatmul.bf16.gmra.mxu0 %v1404
      %v1970 = vpop.f32.mrf.mxu0
      %v1971 = vadd.f32 0.0, %v1970
      %v1972 = vpop.f32.mrf.mxu0
      %v1973 = vadd.f32 0.0, %v1972
      %1974 = vmatmul.bf16.gmra.mxu0 %v1407
      %v1975 = vpop.f32.mrf.mxu0
      %v1976 = vadd.f32 0.0, %v1975
      %v1977 = vpop.f32.mrf.mxu0
      %v1978 = vadd.f32 0.0, %v1977
      %1979 = vmatmul.bf16.gmra.mxu0 %v1410
      %v1980 = vpop.f32.mrf.mxu0
      %v1981 = vadd.f32 0.0, %v1980
      %v1982 = vpop.f32.mrf.mxu0
      %v1983 = vadd.f32 0.0, %v1982
      %1984 = vmatmul.bf16.gmra.mxu0 %v1413
      %v1985 = vpop.f32.mrf.mxu0
      %v1986 = vadd.f32 0.0, %v1985
      %v1987 = vpop.f32.mrf.mxu0
      %v1988 = vadd.f32 0.0, %v1987
      %1989 = vmatmul.bf16.gmra.mxu0 %v1416
      %v1990 = vpop.f32.mrf.mxu0
      %v1991 = vadd.f32 0.0, %v1990
      %v1992 = vpop.f32.mrf.mxu0
      %v1993 = vadd.f32 0.0, %v1992
      %1994 = vmatmul.bf16.gmra.mxu0 %v1419
      %v1995 = vpop.f32.mrf.mxu0
      %v1996 = vadd.f32 0.0, %v1995
      %v1997 = vpop.f32.mrf.mxu0
      %v1998 = vadd.f32 0.0, %v1997
      %1999 = vmatmul.bf16.gmra.mxu0 %v1422
      %v2000 = vpop.f32.mrf.mxu0
      %v2001 = vadd.f32 0.0, %v2000
      %v2002 = vpop.f32.mrf.mxu0
      %v2003 = vadd.f32 0.0, %v2002
      %2004 = vmatmul.bf16.gmra.mxu0 %v1425
      %v2005 = vpop.f32.mrf.mxu0
      %v2006 = vadd.f32 0.0, %v2005
      %v2007 = vpop.f32.mrf.mxu0
      %v2008 = vadd.f32 0.0, %v2007
      %2009 = vmatmul.bf16.gmra.mxu0 %v1428
      %v2010 = vpop.f32.mrf.mxu0
      %v2011 = vadd.f32 0.0, %v2010
      %v2012 = vpop.f32.mrf.mxu0
      %v2013 = vadd.f32 0.0, %v2012
      %2014 = vmatmul.bf16.gmra.mxu0 %v1431
      %v2015 = vpop.f32.mrf.mxu0
      %v2016 = vadd.f32 0.0, %v2015
      %v2017 = vpop.f32.mrf.mxu0
      %v2018 = vadd.f32 0.0, %v2017
      %2019 = vmatmul.bf16.gmra.mxu0 %v1434
      %v2020 = vpop.f32.mrf.mxu0
      %v2021 = vadd.f32 0.0, %v2020
      %v2022 = vpop.f32.mrf.mxu0
      %v2023 = vadd.f32 0.0, %v2022
      %2024 = vmatmul.bf16.gmra.mxu0 %v1437
      %v2025 = vpop.f32.mrf.mxu0
      %v2026 = vadd.f32 0.0, %v2025
      %v2027 = vpop.f32.mrf.mxu0
      %v2028 = vadd.f32 0.0, %v2027
      %2029 = vmatmul.bf16.gmra.mxu0 %v1440
      %v2030 = vpop.f32.mrf.mxu0
      %v2031 = vadd.f32 0.0, %v2030
      %v2032 = vpop.f32.mrf.mxu0
      %v2033 = vadd.f32 0.0, %v2032
      %2034 = vmatmul.bf16.gmra.mxu0 %v1443
      %v2035 = vpop.f32.mrf.mxu0
      %v2036 = vadd.f32 0.0, %v2035
      %v2037 = vpop.f32.mrf.mxu0
      %v2038 = vadd.f32 0.0, %v2037
      %2039 = vmatmul.bf16.gmra.mxu0 %v1446
      %v2040 = vpop.f32.mrf.mxu0
      %v2041 = vadd.f32 0.0, %v2040
      %v2042 = vpop.f32.mrf.mxu0
      %v2043 = vadd.f32 0.0, %v2042
      %2044 = vmatmul.bf16.gmra.mxu0 %v1449
      %v2045 = vpop.f32.mrf.mxu0
      %v2046 = vadd.f32 0.0, %v2045
      %v2047 = vpop.f32.mrf.mxu0
      %v2048 = vadd.f32 0.0, %v2047
      %2049 = vmatmul.bf16.gmra.mxu0 %v1452
      %v2050 = vpop.f32.mrf.mxu0
      %v2051 = vadd.f32 0.0, %v2050
      %v2052 = vpop.f32.mrf.mxu0
      %v2053 = vadd.f32 0.0, %v2052
      %2054 = vmatmul.bf16.gmra.mxu0 %v1455
      %v2055 = vpop.f32.mrf.mxu0
      %v2056 = vadd.f32 0.0, %v2055
      %v2057 = vpop.f32.mrf.mxu0
      %v2058 = vadd.f32 0.0, %v2057
      %2059 = vmatmul.bf16.gmra.mxu0 %v1458
      %v2060 = vpop.f32.mrf.mxu0
      %v2061 = vadd.f32 0.0, %v2060
      %v2062 = vpop.f32.mrf.mxu0
      %v2063 = vadd.f32 0.0, %v2062
      %2064 = vmatmul.bf16.gmra.mxu0 %v1461
      %v2065 = vpop.f32.mrf.mxu0
      %v2066 = vadd.f32 0.0, %v2065
      %v2067 = vpop.f32.mrf.mxu0
      %v2068 = vadd.f32 0.0, %v2067
      %2069 = vmatmul.bf16.gmra.mxu0 %v1464
      %v2070 = vpop.f32.mrf.mxu0
      %v2071 = vadd.f32 0.0, %v2070
      %v2072 = vpop.f32.mrf.mxu0
      %v2073 = vadd.f32 0.0, %v2072
      %2074 = vmatmul.bf16.gmra.mxu0 %v1467
      %v2075 = vpop.f32.mrf.mxu0
      %v2076 = vadd.f32 0.0, %v2075
      %v2077 = vpop.f32.mrf.mxu0
      %v2078 = vadd.f32 0.0, %v2077
      %2079 = vmatmul.bf16.gmra.mxu0 %v1470
      %v2080 = vpop.f32.mrf.mxu0
      %v2081 = vadd.f32 0.0, %v2080
      %v2082 = vpop.f32.mrf.mxu0
      %v2083 = vadd.f32 0.0, %v2082
      %2084 = vmatmul.bf16.gmra.mxu0 %v1473
      %v2085 = vpop.f32.mrf.mxu0
      %v2086 = vadd.f32 0.0, %v2085
      %v2087 = vpop.f32.mrf.mxu0
      %v2088 = vadd.f32 0.0, %v2087
      %2089 = vmatmul.bf16.gmra.mxu0 %v1476
      %v2090 = vpop.f32.mrf.mxu0
      %v2091 = vadd.f32 0.0, %v2090
      %v2092 = vpop.f32.mrf.mxu0
      %v2093 = vadd.f32 0.0, %v2092
      %2094 = vmatmul.bf16.gmra.mxu0 %v1479
      %v2095 = vpop.f32.mrf.mxu0
      %v2096 = vadd.f32 0.0, %v2095
      %v2097 = vpop.f32.mrf.mxu0
      %v2098 = vadd.f32 0.0, %v2097
      %2099 = vmatmul.bf16.gmra.mxu0 %v1482
      %v2100 = vpop.f32.mrf.mxu0
      %v2101 = vadd.f32 0.0, %v2100
      %v2102 = vpop.f32.mrf.mxu0
      %v2103 = vadd.f32 0.0, %v2102
      %2104 = vmatmul.bf16.gmra.mxu0 %v1485
      %v2105 = vpop.f32.mrf.mxu0
      %v2106 = vadd.f32 0.0, %v2105
      %v2107 = vpop.f32.mrf.mxu0
      %v2108 = vadd.f32 0.0, %v2107
      %2109 = vmatmul.bf16.gmra.mxu0 %v1488
      %v2110 = vpop.f32.mrf.mxu0
      %v2111 = vadd.f32 0.0, %v2110
      %v2112 = vpop.f32.mrf.mxu0
      %v2113 = vadd.f32 0.0, %v2112
      %2114 = vmatmul.bf16.gmra.mxu0 %v1491
      %v2115 = vpop.f32.mrf.mxu0
      %v2116 = vadd.f32 0.0, %v2115
      %v2117 = vpop.f32.mrf.mxu0
      %v2118 = vadd.f32 0.0, %v2117
      %2119 = vmatmul.bf16.gmra.mxu0 %v1494
      %v2120 = vpop.f32.mrf.mxu0
      %v2121 = vadd.f32 0.0, %v2120
      %v2122 = vpop.f32.mrf.mxu0
      %v2123 = vadd.f32 0.0, %v2122
      %2124 = vmatmul.bf16.gmra.mxu0 %v1497
      %v2125 = vpop.f32.mrf.mxu0
      %v2126 = vadd.f32 0.0, %v2125
      %v2127 = vpop.f32.mrf.mxu0
      %v2128 = vadd.f32 0.0, %v2127
      %2129 = vmatmul.bf16.gmra.mxu0 %v1500
      %v2130 = vpop.f32.mrf.mxu0
      %v2131 = vadd.f32 0.0, %v2130
      %v2132 = vpop.f32.mrf.mxu0
      %v2133 = vadd.f32 0.0, %v2132
      %2134 = vmatmul.bf16.gmra.mxu0 %v1503
      %v2135 = vpop.f32.mrf.mxu0
      %v2136 = vadd.f32 0.0, %v2135
      %v2137 = vpop.f32.mrf.mxu0
      %v2138 = vadd.f32 0.0, %v2137
      %2139 = vmatmul.bf16.gmra.mxu0 %v1506
      %v2140 = vpop.f32.mrf.mxu0
      %v2141 = vadd.f32 0.0, %v2140
      %v2142 = vpop.f32.mrf.mxu0
      %v2143 = vadd.f32 0.0, %v2142
      %2144 = vmatmul.bf16.gmra.mxu0 %v1509
      %v2145 = vpop.f32.mrf.mxu0
      %v2146 = vadd.f32 0.0, %v2145
      %v2147 = vpop.f32.mrf.mxu0
      %v2148 = vadd.f32 0.0, %v2147
      %2149 = vmatmul.bf16.gmra.mxu0 %v1512
      %v2150 = vpop.f32.mrf.mxu0
      %v2151 = vadd.f32 0.0, %v2150
      %v2152 = vpop.f32.mrf.mxu0
      %v2153 = vadd.f32 0.0, %v2152
      %2154 = vmatmul.bf16.gmra.mxu0 %v1515
      %v2155 = vpop.f32.mrf.mxu0
      %v2156 = vadd.f32 0.0, %v2155
      %v2157 = vpop.f32.mrf.mxu0
      %v2158 = vadd.f32 0.0, %v2157
      %2159 = vmatmul.bf16.gmra.mxu0 %v1518
      %v2160 = vpop.f32.mrf.mxu0
      %v2161 = vadd.f32 0.0, %v2160
      %v2162 = vpop.f32.mrf.mxu0
      %v2163 = vadd.f32 0.0, %v2162
      %2164 = vmatmul.bf16.gmra.mxu0 %v1521
      %v2165 = vpop.f32.mrf.mxu0
      %v2166 = vadd.f32 0.0, %v2165
      %v2167 = vpop.f32.mrf.mxu0
      %v2168 = vadd.f32 0.0, %v2167
      %2169 = vmatmul.bf16.gmra.mxu0 %v1524
      %v2170 = vpop.f32.mrf.mxu0
      %v2171 = vadd.f32 0.0, %v2170
      %v2172 = vpop.f32.mrf.mxu0
      %v2173 = vadd.f32 0.0, %v2172
      %2174 = vdwg.mxu0
      %v2175 = vld [vmem:[%s218] sm:$0x1]
      %v2176 = vperm.slane %v2175, 0
      %v2177 = vmul.f32 %v1536, %v2176
      %v2178 = vmul.f32 %v1538, %v2176
      %v2179 = vmul.f32 %v1541, %v2176
      %v2180 = vmul.f32 %v1543, %v2176
      %v2181 = vmul.f32 %v1546, %v2176
      %v2182 = vmul.f32 %v1548, %v2176
      %v2183 = vmul.f32 %v1551, %v2176
      %v2184 = vmul.f32 %v1553, %v2176
      %v2185 = vmul.f32 %v1556, %v2176
      %v2186 = vmul.f32 %v1558, %v2176
      %v2187 = vmul.f32 %v1561, %v2176
      %v2188 = vmul.f32 %v1563, %v2176
      %v2189 = vmul.f32 %v1566, %v2176
      %v2190 = vmul.f32 %v1568, %v2176
      %v2191 = vmul.f32 %v1571, %v2176
      %v2192 = vmul.f32 %v1573, %v2176
      %v2193 = vmul.f32 %v1576, %v2176
      %v2194 = vmul.f32 %v1578, %v2176
      %v2195 = vmul.f32 %v1581, %v2176
      %v2196 = vmul.f32 %v1583, %v2176
      %v2197 = vmul.f32 %v1586, %v2176
      %v2198 = vmul.f32 %v1588, %v2176
      %v2199 = vmul.f32 %v1591, %v2176
      %v2200 = vmul.f32 %v1593, %v2176
      %v2201 = vmul.f32 %v1596, %v2176
      %v2202 = vmul.f32 %v1598, %v2176
      %v2203 = vmul.f32 %v1601, %v2176
      %v2204 = vmul.f32 %v1603, %v2176
      %v2205 = vmul.f32 %v1606, %v2176
      %v2206 = vmul.f32 %v1608, %v2176
      %v2207 = vmul.f32 %v1611, %v2176
      %v2208 = vmul.f32 %v1613, %v2176
      %v2209 = vmul.f32 %v1616, %v2176
      %v2210 = vmul.f32 %v1618, %v2176
      %v2211 = vmul.f32 %v1621, %v2176
      %v2212 = vmul.f32 %v1623, %v2176
      %v2213 = vmul.f32 %v1626, %v2176
      %v2214 = vmul.f32 %v1628, %v2176
      %v2215 = vmul.f32 %v1631, %v2176
      %v2216 = vmul.f32 %v1633, %v2176
      %v2217 = vmul.f32 %v1636, %v2176
      %v2218 = vmul.f32 %v1638, %v2176
      %v2219 = vmul.f32 %v1641, %v2176
      %v2220 = vmul.f32 %v1643, %v2176
      %v2221 = vmul.f32 %v1646, %v2176
      %v2222 = vmul.f32 %v1648, %v2176
      %v2223 = vmul.f32 %v1651, %v2176
      %v2224 = vmul.f32 %v1653, %v2176
      %v2225 = vmul.f32 %v1656, %v2176
      %v2226 = vmul.f32 %v1658, %v2176
      %v2227 = vmul.f32 %v1661, %v2176
      %v2228 = vmul.f32 %v1663, %v2176
      %v2229 = vmul.f32 %v1666, %v2176
      %v2230 = vmul.f32 %v1668, %v2176
      %v2231 = vmul.f32 %v1671, %v2176
      %v2232 = vmul.f32 %v1673, %v2176
      %v2233 = vmul.f32 %v1676, %v2176
      %v2234 = vmul.f32 %v1678, %v2176
      %v2235 = vmul.f32 %v1681, %v2176
      %v2236 = vmul.f32 %v1683, %v2176
      %v2237 = vmul.f32 %v1686, %v2176
      %v2238 = vmul.f32 %v1688, %v2176
      %v2239 = vmul.f32 %v1691, %v2176
      %v2240 = vmul.f32 %v1693, %v2176
      %v2241 = vmul.f32 %v1696, %v2176
      %v2242 = vmul.f32 %v1698, %v2176
      %v2243 = vmul.f32 %v1701, %v2176
      %v2244 = vmul.f32 %v1703, %v2176
      %v2245 = vmul.f32 %v1706, %v2176
      %v2246 = vmul.f32 %v1708, %v2176
      %v2247 = vmul.f32 %v1711, %v2176
      %v2248 = vmul.f32 %v1713, %v2176
      %v2249 = vmul.f32 %v1716, %v2176
      %v2250 = vmul.f32 %v1718, %v2176
      %v2251 = vmul.f32 %v1721, %v2176
      %v2252 = vmul.f32 %v1723, %v2176
      %v2253 = vmul.f32 %v1726, %v2176
      %v2254 = vmul.f32 %v1728, %v2176
      %v2255 = vmul.f32 %v1731, %v2176
      %v2256 = vmul.f32 %v1733, %v2176
      %v2257 = vmul.f32 %v1736, %v2176
      %v2258 = vmul.f32 %v1738, %v2176
      %v2259 = vmul.f32 %v1741, %v2176
      %v2260 = vmul.f32 %v1743, %v2176
      %v2261 = vmul.f32 %v1746, %v2176
      %v2262 = vmul.f32 %v1748, %v2176
      %v2263 = vmul.f32 %v1751, %v2176
      %v2264 = vmul.f32 %v1753, %v2176
      %v2265 = vmul.f32 %v1756, %v2176
      %v2266 = vmul.f32 %v1758, %v2176
      %v2267 = vmul.f32 %v1761, %v2176
      %v2268 = vmul.f32 %v1763, %v2176
      %v2269 = vmul.f32 %v1766, %v2176
      %v2270 = vmul.f32 %v1768, %v2176
      %v2271 = vmul.f32 %v1771, %v2176
      %v2272 = vmul.f32 %v1773, %v2176
      %v2273 = vmul.f32 %v1776, %v2176
      %v2274 = vmul.f32 %v1778, %v2176
      %v2275 = vmul.f32 %v1781, %v2176
      %v2276 = vmul.f32 %v1783, %v2176
      %v2277 = vmul.f32 %v1786, %v2176
      %v2278 = vmul.f32 %v1788, %v2176
      %v2279 = vmul.f32 %v1791, %v2176
      %v2280 = vmul.f32 %v1793, %v2176
      %v2281 = vmul.f32 %v1796, %v2176
      %v2282 = vmul.f32 %v1798, %v2176
      %v2283 = vmul.f32 %v1801, %v2176
      %v2284 = vmul.f32 %v1803, %v2176
      %v2285 = vmul.f32 %v1806, %v2176
      %v2286 = vmul.f32 %v1808, %v2176
      %v2287 = vmul.f32 %v1811, %v2176
      %v2288 = vmul.f32 %v1813, %v2176
      %v2289 = vmul.f32 %v1816, %v2176
      %v2290 = vmul.f32 %v1818, %v2176
      %v2291 = vmul.f32 %v1821, %v2176
      %v2292 = vmul.f32 %v1823, %v2176
      %v2293 = vmul.f32 %v1826, %v2176
      %v2294 = vmul.f32 %v1828, %v2176
      %v2295 = vmul.f32 %v1831, %v2176
      %v2296 = vmul.f32 %v1833, %v2176
      %v2297 = vmul.f32 %v1836, %v2176
      %v2298 = vmul.f32 %v1838, %v2176
      %v2299 = vmul.f32 %v1841, %v2176
      %v2300 = vmul.f32 %v1843, %v2176
      %v2301 = vmul.f32 %v1846, %v2176
      %v2302 = vmul.f32 %v1848, %v2176
      %v2303 = vmul.f32 %v1851, %v2176
      %v2304 = vmul.f32 %v1853, %v2176
      %v2305 = vmul.f32 %v1856, %v2176
      %v2306 = vmul.f32 %v1858, %v2176
      %v2307 = vmul.f32 %v1861, %v2176
      %v2308 = vmul.f32 %v1863, %v2176
      %v2309 = vmul.f32 %v1866, %v2176
      %v2310 = vmul.f32 %v1868, %v2176
      %v2311 = vmul.f32 %v1871, %v2176
      %v2312 = vmul.f32 %v1873, %v2176
      %v2313 = vmul.f32 %v1876, %v2176
      %v2314 = vmul.f32 %v1878, %v2176
      %v2315 = vmul.f32 %v1881, %v2176
      %v2316 = vmul.f32 %v1883, %v2176
      %v2317 = vmul.f32 %v1886, %v2176
      %v2318 = vmul.f32 %v1888, %v2176
      %v2319 = vmul.f32 %v1891, %v2176
      %v2320 = vmul.f32 %v1893, %v2176
      %v2321 = vmul.f32 %v1896, %v2176
      %v2322 = vmul.f32 %v1898, %v2176
      %v2323 = vmul.f32 %v1901, %v2176
      %v2324 = vmul.f32 %v1903, %v2176
      %v2325 = vmul.f32 %v1906, %v2176
      %v2326 = vmul.f32 %v1908, %v2176
      %v2327 = vmul.f32 %v1911, %v2176
      %v2328 = vmul.f32 %v1913, %v2176
      %v2329 = vmul.f32 %v1916, %v2176
      %v2330 = vmul.f32 %v1918, %v2176
      %v2331 = vmul.f32 %v1921, %v2176
      %v2332 = vmul.f32 %v1923, %v2176
      %v2333 = vmul.f32 %v1926, %v2176
      %v2334 = vmul.f32 %v1928, %v2176
      %v2335 = vmul.f32 %v1931, %v2176
      %v2336 = vmul.f32 %v1933, %v2176
      %v2337 = vmul.f32 %v1936, %v2176
      %v2338 = vmul.f32 %v1938, %v2176
      %v2339 = vmul.f32 %v1941, %v2176
      %v2340 = vmul.f32 %v1943, %v2176
      %v2341 = vmul.f32 %v1946, %v2176
      %v2342 = vmul.f32 %v1948, %v2176
      %v2343 = vmul.f32 %v1951, %v2176
      %v2344 = vmul.f32 %v1953, %v2176
      %v2345 = vmul.f32 %v1956, %v2176
      %v2346 = vmul.f32 %v1958, %v2176
      %v2347 = vmul.f32 %v1961, %v2176
      %v2348 = vmul.f32 %v1963, %v2176
      %v2349 = vmul.f32 %v1966, %v2176
      %v2350 = vmul.f32 %v1968, %v2176
      %v2351 = vmul.f32 %v1971, %v2176
      %v2352 = vmul.f32 %v1973, %v2176
      %v2353 = vmul.f32 %v1976, %v2176
      %v2354 = vmul.f32 %v1978, %v2176
      %v2355 = vmul.f32 %v1981, %v2176
      %v2356 = vmul.f32 %v1983, %v2176
      %v2357 = vmul.f32 %v1986, %v2176
      %v2358 = vmul.f32 %v1988, %v2176
      %v2359 = vmul.f32 %v1991, %v2176
      %v2360 = vmul.f32 %v1993, %v2176
      %v2361 = vmul.f32 %v1996, %v2176
      %v2362 = vmul.f32 %v1998, %v2176
      %v2363 = vmul.f32 %v2001, %v2176
      %v2364 = vmul.f32 %v2003, %v2176
      %v2365 = vmul.f32 %v2006, %v2176
      %v2366 = vmul.f32 %v2008, %v2176
      %v2367 = vmul.f32 %v2011, %v2176
      %v2368 = vmul.f32 %v2013, %v2176
      %v2369 = vmul.f32 %v2016, %v2176
      %v2370 = vmul.f32 %v2018, %v2176
      %v2371 = vmul.f32 %v2021, %v2176
      %v2372 = vmul.f32 %v2023, %v2176
      %v2373 = vmul.f32 %v2026, %v2176
      %v2374 = vmul.f32 %v2028, %v2176
      %v2375 = vmul.f32 %v2031, %v2176
      %v2376 = vmul.f32 %v2033, %v2176
      %v2377 = vmul.f32 %v2036, %v2176
      %v2378 = vmul.f32 %v2038, %v2176
      %v2379 = vmul.f32 %v2041, %v2176
      %v2380 = vmul.f32 %v2043, %v2176
      %v2381 = vmul.f32 %v2046, %v2176
      %v2382 = vmul.f32 %v2048, %v2176
      %v2383 = vmul.f32 %v2051, %v2176
      %v2384 = vmul.f32 %v2053, %v2176
      %v2385 = vmul.f32 %v2056, %v2176
      %v2386 = vmul.f32 %v2058, %v2176
      %v2387 = vmul.f32 %v2061, %v2176
      %v2388 = vmul.f32 %v2063, %v2176
      %v2389 = vmul.f32 %v2066, %v2176
      %v2390 = vmul.f32 %v2068, %v2176
      %v2391 = vmul.f32 %v2071, %v2176
      %v2392 = vmul.f32 %v2073, %v2176
      %v2393 = vmul.f32 %v2076, %v2176
      %v2394 = vmul.f32 %v2078, %v2176
      %v2395 = vmul.f32 %v2081, %v2176
      %v2396 = vmul.f32 %v2083, %v2176
      %v2397 = vmul.f32 %v2086, %v2176
      %v2398 = vmul.f32 %v2088, %v2176
      %v2399 = vmul.f32 %v2091, %v2176
      %v2400 = vmul.f32 %v2093, %v2176
      %v2401 = vmul.f32 %v2096, %v2176
      %v2402 = vmul.f32 %v2098, %v2176
      %v2403 = vmul.f32 %v2101, %v2176
      %v2404 = vmul.f32 %v2103, %v2176
      %v2405 = vmul.f32 %v2106, %v2176
      %v2406 = vmul.f32 %v2108, %v2176
      %v2407 = vmul.f32 %v2111, %v2176
      %v2408 = vmul.f32 %v2113, %v2176
      %v2409 = vmul.f32 %v2116, %v2176
      %v2410 = vmul.f32 %v2118, %v2176
      %v2411 = vmul.f32 %v2121, %v2176
      %v2412 = vmul.f32 %v2123, %v2176
      %v2413 = vmul.f32 %v2126, %v2176
      %v2414 = vmul.f32 %v2128, %v2176
      %v2415 = vmul.f32 %v2131, %v2176
      %v2416 = vmul.f32 %v2133, %v2176
      %v2417 = vmul.f32 %v2136, %v2176
      %v2418 = vmul.f32 %v2138, %v2176
      %v2419 = vmul.f32 %v2141, %v2176
      %v2420 = vmul.f32 %v2143, %v2176
      %v2421 = vmul.f32 %v2146, %v2176
      %v2422 = vmul.f32 %v2148, %v2176
      %v2423 = vmul.f32 %v2151, %v2176
      %v2424 = vmul.f32 %v2153, %v2176
      %v2425 = vmul.f32 %v2156, %v2176
      %v2426 = vmul.f32 %v2158, %v2176
      %v2427 = vmul.f32 %v2161, %v2176
      %v2428 = vmul.f32 %v2163, %v2176
      %v2429 = vmul.f32 %v2166, %v2176
      %v2430 = vmul.f32 %v2168, %v2176
      %v2431 = vmul.f32 %v2171, %v2176
      %v2432 = vmul.f32 %v2173, %v2176
      %v2433 = vld [vmem:[%s218 + $0x1] sm:$0x1]
      %v2434 = vperm.slane %v2433, 0
      %v2435 = vadd.f32 %v2177, %v2434
      %v2436 = vadd.f32 %v2178, %v2434
      %v2437 = vadd.f32 %v2179, %v2434
      %v2438 = vadd.f32 %v2180, %v2434
      %v2439 = vadd.f32 %v2181, %v2434
      %v2440 = vadd.f32 %v2182, %v2434
      %v2441 = vadd.f32 %v2183, %v2434
      %v2442 = vadd.f32 %v2184, %v2434
      %v2443 = vadd.f32 %v2185, %v2434
      %v2444 = vadd.f32 %v2186, %v2434
      %v2445 = vadd.f32 %v2187, %v2434
      %v2446 = vadd.f32 %v2188, %v2434
      %v2447 = vadd.f32 %v2189, %v2434
      %v2448 = vadd.f32 %v2190, %v2434
      %v2449 = vadd.f32 %v2191, %v2434
      %v2450 = vadd.f32 %v2192, %v2434
      %v2451 = vadd.f32 %v2193, %v2434
      %v2452 = vadd.f32 %v2194, %v2434
      %v2453 = vadd.f32 %v2195, %v2434
      %v2454 = vadd.f32 %v2196, %v2434
      %v2455 = vadd.f32 %v2197, %v2434
      %v2456 = vadd.f32 %v2198, %v2434
      %v2457 = vadd.f32 %v2199, %v2434
      %v2458 = vadd.f32 %v2200, %v2434
      %v2459 = vadd.f32 %v2201, %v2434
      %v2460 = vadd.f32 %v2202, %v2434
      %v2461 = vadd.f32 %v2203, %v2434
      %v2462 = vadd.f32 %v2204, %v2434
      %v2463 = vadd.f32 %v2205, %v2434
      %v2464 = vadd.f32 %v2206, %v2434
      %v2465 = vadd.f32 %v2207, %v2434
      %v2466 = vadd.f32 %v2208, %v2434
      %v2467 = vadd.f32 %v2209, %v2434
      %v2468 = vadd.f32 %v2210, %v2434
      %v2469 = vadd.f32 %v2211, %v2434
      %v2470 = vadd.f32 %v2212, %v2434
      %v2471 = vadd.f32 %v2213, %v2434
      %v2472 = vadd.f32 %v2214, %v2434
      %v2473 = vadd.f32 %v2215, %v2434
      %v2474 = vadd.f32 %v2216, %v2434
      %v2475 = vadd.f32 %v2217, %v2434
      %v2476 = vadd.f32 %v2218, %v2434
      %v2477 = vadd.f32 %v2219, %v2434
      %v2478 = vadd.f32 %v2220, %v2434
      %v2479 = vadd.f32 %v2221, %v2434
      %v2480 = vadd.f32 %v2222, %v2434
      %v2481 = vadd.f32 %v2223, %v2434
      %v2482 = vadd.f32 %v2224, %v2434
      %v2483 = vadd.f32 %v2225, %v2434
      %v2484 = vadd.f32 %v2226, %v2434
      %v2485 = vadd.f32 %v2227, %v2434
      %v2486 = vadd.f32 %v2228, %v2434
      %v2487 = vadd.f32 %v2229, %v2434
      %v2488 = vadd.f32 %v2230, %v2434
      %v2489 = vadd.f32 %v2231, %v2434
      %v2490 = vadd.f32 %v2232, %v2434
      %v2491 = vadd.f32 %v2233, %v2434
      %v2492 = vadd.f32 %v2234, %v2434
      %v2493 = vadd.f32 %v2235, %v2434
      %v2494 = vadd.f32 %v2236, %v2434
      %v2495 = vadd.f32 %v2237, %v2434
      %v2496 = vadd.f32 %v2238, %v2434
      %v2497 = vadd.f32 %v2239, %v2434
      %v2498 = vadd.f32 %v2240, %v2434
      %v2499 = vadd.f32 %v2241, %v2434
      %v2500 = vadd.f32 %v2242, %v2434
      %v2501 = vadd.f32 %v2243, %v2434
      %v2502 = vadd.f32 %v2244, %v2434
      %v2503 = vadd.f32 %v2245, %v2434
      %v2504 = vadd.f32 %v2246, %v2434
      %v2505 = vadd.f32 %v2247, %v2434
      %v2506 = vadd.f32 %v2248, %v2434
      %v2507 = vadd.f32 %v2249, %v2434
      %v2508 = vadd.f32 %v2250, %v2434
      %v2509 = vadd.f32 %v2251, %v2434
      %v2510 = vadd.f32 %v2252, %v2434
      %v2511 = vadd.f32 %v2253, %v2434
      %v2512 = vadd.f32 %v2254, %v2434
      %v2513 = vadd.f32 %v2255, %v2434
      %v2514 = vadd.f32 %v2256, %v2434
      %v2515 = vadd.f32 %v2257, %v2434
      %v2516 = vadd.f32 %v2258, %v2434
      %v2517 = vadd.f32 %v2259, %v2434
      %v2518 = vadd.f32 %v2260, %v2434
      %v2519 = vadd.f32 %v2261, %v2434
      %v2520 = vadd.f32 %v2262, %v2434
      %v2521 = vadd.f32 %v2263, %v2434
      %v2522 = vadd.f32 %v2264, %v2434
      %v2523 = vadd.f32 %v2265, %v2434
      %v2524 = vadd.f32 %v2266, %v2434
      %v2525 = vadd.f32 %v2267, %v2434
      %v2526 = vadd.f32 %v2268, %v2434
      %v2527 = vadd.f32 %v2269, %v2434
      %v2528 = vadd.f32 %v2270, %v2434
      %v2529 = vadd.f32 %v2271, %v2434
      %v2530 = vadd.f32 %v2272, %v2434
      %v2531 = vadd.f32 %v2273, %v2434
      %v2532 = vadd.f32 %v2274, %v2434
      %v2533 = vadd.f32 %v2275, %v2434
      %v2534 = vadd.f32 %v2276, %v2434
      %v2535 = vadd.f32 %v2277, %v2434
      %v2536 = vadd.f32 %v2278, %v2434
      %v2537 = vadd.f32 %v2279, %v2434
      %v2538 = vadd.f32 %v2280, %v2434
      %v2539 = vadd.f32 %v2281, %v2434
      %v2540 = vadd.f32 %v2282, %v2434
      %v2541 = vadd.f32 %v2283, %v2434
      %v2542 = vadd.f32 %v2284, %v2434
      %v2543 = vadd.f32 %v2285, %v2434
      %v2544 = vadd.f32 %v2286, %v2434
      %v2545 = vadd.f32 %v2287, %v2434
      %v2546 = vadd.f32 %v2288, %v2434
      %v2547 = vadd.f32 %v2289, %v2434
      %v2548 = vadd.f32 %v2290, %v2434
      %v2549 = vadd.f32 %v2291, %v2434
      %v2550 = vadd.f32 %v2292, %v2434
      %v2551 = vadd.f32 %v2293, %v2434
      %v2552 = vadd.f32 %v2294, %v2434
      %v2553 = vadd.f32 %v2295, %v2434
      %v2554 = vadd.f32 %v2296, %v2434
      %v2555 = vadd.f32 %v2297, %v2434
      %v2556 = vadd.f32 %v2298, %v2434
      %v2557 = vadd.f32 %v2299, %v2434
      %v2558 = vadd.f32 %v2300, %v2434
      %v2559 = vadd.f32 %v2301, %v2434
      %v2560 = vadd.f32 %v2302, %v2434
      %v2561 = vadd.f32 %v2303, %v2434
      %v2562 = vadd.f32 %v2304, %v2434
      %v2563 = vadd.f32 %v2305, %v2434
      %v2564 = vadd.f32 %v2306, %v2434
      %v2565 = vadd.f32 %v2307, %v2434
      %v2566 = vadd.f32 %v2308, %v2434
      %v2567 = vadd.f32 %v2309, %v2434
      %v2568 = vadd.f32 %v2310, %v2434
      %v2569 = vadd.f32 %v2311, %v2434
      %v2570 = vadd.f32 %v2312, %v2434
      %v2571 = vadd.f32 %v2313, %v2434
      %v2572 = vadd.f32 %v2314, %v2434
      %v2573 = vadd.f32 %v2315, %v2434
      %v2574 = vadd.f32 %v2316, %v2434
      %v2575 = vadd.f32 %v2317, %v2434
      %v2576 = vadd.f32 %v2318, %v2434
      %v2577 = vadd.f32 %v2319, %v2434
      %v2578 = vadd.f32 %v2320, %v2434
      %v2579 = vadd.f32 %v2321, %v2434
      %v2580 = vadd.f32 %v2322, %v2434
      %v2581 = vadd.f32 %v2323, %v2434
      %v2582 = vadd.f32 %v2324, %v2434
      %v2583 = vadd.f32 %v2325, %v2434
      %v2584 = vadd.f32 %v2326, %v2434
      %v2585 = vadd.f32 %v2327, %v2434
      %v2586 = vadd.f32 %v2328, %v2434
      %v2587 = vadd.f32 %v2329, %v2434
      %v2588 = vadd.f32 %v2330, %v2434
      %v2589 = vadd.f32 %v2331, %v2434
      %v2590 = vadd.f32 %v2332, %v2434
      %v2591 = vadd.f32 %v2333, %v2434
      %v2592 = vadd.f32 %v2334, %v2434
      %v2593 = vadd.f32 %v2335, %v2434
      %v2594 = vadd.f32 %v2336, %v2434
      %v2595 = vadd.f32 %v2337, %v2434
      %v2596 = vadd.f32 %v2338, %v2434
      %v2597 = vadd.f32 %v2339, %v2434
      %v2598 = vadd.f32 %v2340, %v2434
      %v2599 = vadd.f32 %v2341, %v2434
      %v2600 = vadd.f32 %v2342, %v2434
      %v2601 = vadd.f32 %v2343, %v2434
      %v2602 = vadd.f32 %v2344, %v2434
      %v2603 = vadd.f32 %v2345, %v2434
      %v2604 = vadd.f32 %v2346, %v2434
      %v2605 = vadd.f32 %v2347, %v2434
      %v2606 = vadd.f32 %v2348, %v2434
      %v2607 = vadd.f32 %v2349, %v2434
      %v2608 = vadd.f32 %v2350, %v2434
      %v2609 = vadd.f32 %v2351, %v2434
      %v2610 = vadd.f32 %v2352, %v2434
      %v2611 = vadd.f32 %v2353, %v2434
      %v2612 = vadd.f32 %v2354, %v2434
      %v2613 = vadd.f32 %v2355, %v2434
      %v2614 = vadd.f32 %v2356, %v2434
      %v2615 = vadd.f32 %v2357, %v2434
      %v2616 = vadd.f32 %v2358, %v2434
      %v2617 = vadd.f32 %v2359, %v2434
      %v2618 = vadd.f32 %v2360, %v2434
      %v2619 = vadd.f32 %v2361, %v2434
      %v2620 = vadd.f32 %v2362, %v2434
      %v2621 = vadd.f32 %v2363, %v2434
      %v2622 = vadd.f32 %v2364, %v2434
      %v2623 = vadd.f32 %v2365, %v2434
      %v2624 = vadd.f32 %v2366, %v2434
      %v2625 = vadd.f32 %v2367, %v2434
      %v2626 = vadd.f32 %v2368, %v2434
      %v2627 = vadd.f32 %v2369, %v2434
      %v2628 = vadd.f32 %v2370, %v2434
      %v2629 = vadd.f32 %v2371, %v2434
      %v2630 = vadd.f32 %v2372, %v2434
      %v2631 = vadd.f32 %v2373, %v2434
      %v2632 = vadd.f32 %v2374, %v2434
      %v2633 = vadd.f32 %v2375, %v2434
      %v2634 = vadd.f32 %v2376, %v2434
      %v2635 = vadd.f32 %v2377, %v2434
      %v2636 = vadd.f32 %v2378, %v2434
      %v2637 = vadd.f32 %v2379, %v2434
      %v2638 = vadd.f32 %v2380, %v2434
      %v2639 = vadd.f32 %v2381, %v2434
      %v2640 = vadd.f32 %v2382, %v2434
      %v2641 = vadd.f32 %v2383, %v2434
      %v2642 = vadd.f32 %v2384, %v2434
      %v2643 = vadd.f32 %v2385, %v2434
      %v2644 = vadd.f32 %v2386, %v2434
      %v2645 = vadd.f32 %v2387, %v2434
      %v2646 = vadd.f32 %v2388, %v2434
      %v2647 = vadd.f32 %v2389, %v2434
      %v2648 = vadd.f32 %v2390, %v2434
      %v2649 = vadd.f32 %v2391, %v2434
      %v2650 = vadd.f32 %v2392, %v2434
      %v2651 = vadd.f32 %v2393, %v2434
      %v2652 = vadd.f32 %v2394, %v2434
      %v2653 = vadd.f32 %v2395, %v2434
      %v2654 = vadd.f32 %v2396, %v2434
      %v2655 = vadd.f32 %v2397, %v2434
      %v2656 = vadd.f32 %v2398, %v2434
      %v2657 = vadd.f32 %v2399, %v2434
      %v2658 = vadd.f32 %v2400, %v2434
      %v2659 = vadd.f32 %v2401, %v2434
      %v2660 = vadd.f32 %v2402, %v2434
      %v2661 = vadd.f32 %v2403, %v2434
      %v2662 = vadd.f32 %v2404, %v2434
      %v2663 = vadd.f32 %v2405, %v2434
      %v2664 = vadd.f32 %v2406, %v2434
      %v2665 = vadd.f32 %v2407, %v2434
      %v2666 = vadd.f32 %v2408, %v2434
      %v2667 = vadd.f32 %v2409, %v2434
      %v2668 = vadd.f32 %v2410, %v2434
      %v2669 = vadd.f32 %v2411, %v2434
      %v2670 = vadd.f32 %v2412, %v2434
      %v2671 = vadd.f32 %v2413, %v2434
      %v2672 = vadd.f32 %v2414, %v2434
      %v2673 = vadd.f32 %v2415, %v2434
      %v2674 = vadd.f32 %v2416, %v2434
      %v2675 = vadd.f32 %v2417, %v2434
      %v2676 = vadd.f32 %v2418, %v2434
      %v2677 = vadd.f32 %v2419, %v2434
      %v2678 = vadd.f32 %v2420, %v2434
      %v2679 = vadd.f32 %v2421, %v2434
      %v2680 = vadd.f32 %v2422, %v2434
      %v2681 = vadd.f32 %v2423, %v2434
      %v2682 = vadd.f32 %v2424, %v2434
      %v2683 = vadd.f32 %v2425, %v2434
      %v2684 = vadd.f32 %v2426, %v2434
      %v2685 = vadd.f32 %v2427, %v2434
      %v2686 = vadd.f32 %v2428, %v2434
      %v2687 = vadd.f32 %v2429, %v2434
      %v2688 = vadd.f32 %v2430, %v2434
      %v2689 = vadd.f32 %v2431, %v2434
      %v2690 = vadd.f32 %v2432, %v2434
      %vm2691 = vcmp.gt.f32.partialorder %v2435, 0.0
      %vm2692 = vcmp.gt.f32.partialorder %v2436, 0.0
      %vm2693 = vcmp.gt.f32.partialorder %v2437, 0.0
      %vm2694 = vcmp.gt.f32.partialorder %v2438, 0.0
      %vm2695 = vcmp.gt.f32.partialorder %v2439, 0.0
      %vm2696 = vcmp.gt.f32.partialorder %v2440, 0.0
      %vm2697 = vcmp.gt.f32.partialorder %v2441, 0.0
      %vm2698 = vcmp.gt.f32.partialorder %v2442, 0.0
      %vm2699 = vcmp.gt.f32.partialorder %v2443, 0.0
      %vm2700 = vcmp.gt.f32.partialorder %v2444, 0.0
      %vm2701 = vcmp.gt.f32.partialorder %v2445, 0.0
      %vm2702 = vcmp.gt.f32.partialorder %v2446, 0.0
      %vm2703 = vcmp.gt.f32.partialorder %v2447, 0.0
      %vm2704 = vcmp.gt.f32.partialorder %v2448, 0.0
      %vm2705 = vcmp.gt.f32.partialorder %v2449, 0.0
      %vm2706 = vcmp.gt.f32.partialorder %v2450, 0.0
      %vm2707 = vcmp.gt.f32.partialorder %v2451, 0.0
      %vm2708 = vcmp.gt.f32.partialorder %v2452, 0.0
      %vm2709 = vcmp.gt.f32.partialorder %v2453, 0.0
      %vm2710 = vcmp.gt.f32.partialorder %v2454, 0.0
      %vm2711 = vcmp.gt.f32.partialorder %v2455, 0.0
      %vm2712 = vcmp.gt.f32.partialorder %v2456, 0.0
      %vm2713 = vcmp.gt.f32.partialorder %v2457, 0.0
      %vm2714 = vcmp.gt.f32.partialorder %v2458, 0.0
      %vm2715 = vcmp.gt.f32.partialorder %v2459, 0.0
      %vm2716 = vcmp.gt.f32.partialorder %v2460, 0.0
      %vm2717 = vcmp.gt.f32.partialorder %v2461, 0.0
      %vm2718 = vcmp.gt.f32.partialorder %v2462, 0.0
      %vm2719 = vcmp.gt.f32.partialorder %v2463, 0.0
      %vm2720 = vcmp.gt.f32.partialorder %v2464, 0.0
      %vm2721 = vcmp.gt.f32.partialorder %v2465, 0.0
      %vm2722 = vcmp.gt.f32.partialorder %v2466, 0.0
      %vm2723 = vcmp.gt.f32.partialorder %v2467, 0.0
      %vm2724 = vcmp.gt.f32.partialorder %v2468, 0.0
      %vm2725 = vcmp.gt.f32.partialorder %v2469, 0.0
      %vm2726 = vcmp.gt.f32.partialorder %v2470, 0.0
      %vm2727 = vcmp.gt.f32.partialorder %v2471, 0.0
      %vm2728 = vcmp.gt.f32.partialorder %v2472, 0.0
      %vm2729 = vcmp.gt.f32.partialorder %v2473, 0.0
      %vm2730 = vcmp.gt.f32.partialorder %v2474, 0.0
      %vm2731 = vcmp.gt.f32.partialorder %v2475, 0.0
      %vm2732 = vcmp.gt.f32.partialorder %v2476, 0.0
      %vm2733 = vcmp.gt.f32.partialorder %v2477, 0.0
      %vm2734 = vcmp.gt.f32.partialorder %v2478, 0.0
      %vm2735 = vcmp.gt.f32.partialorder %v2479, 0.0
      %vm2736 = vcmp.gt.f32.partialorder %v2480, 0.0
      %vm2737 = vcmp.gt.f32.partialorder %v2481, 0.0
      %vm2738 = vcmp.gt.f32.partialorder %v2482, 0.0
      %vm2739 = vcmp.gt.f32.partialorder %v2483, 0.0
      %vm2740 = vcmp.gt.f32.partialorder %v2484, 0.0
      %vm2741 = vcmp.gt.f32.partialorder %v2485, 0.0
      %vm2742 = vcmp.gt.f32.partialorder %v2486, 0.0
      %vm2743 = vcmp.gt.f32.partialorder %v2487, 0.0
      %vm2744 = vcmp.gt.f32.partialorder %v2488, 0.0
      %vm2745 = vcmp.gt.f32.partialorder %v2489, 0.0
      %vm2746 = vcmp.gt.f32.partialorder %v2490, 0.0
      %vm2747 = vcmp.gt.f32.partialorder %v2491, 0.0
      %vm2748 = vcmp.gt.f32.partialorder %v2492, 0.0
      %vm2749 = vcmp.gt.f32.partialorder %v2493, 0.0
      %vm2750 = vcmp.gt.f32.partialorder %v2494, 0.0
      %vm2751 = vcmp.gt.f32.partialorder %v2495, 0.0
      %vm2752 = vcmp.gt.f32.partialorder %v2496, 0.0
      %vm2753 = vcmp.gt.f32.partialorder %v2497, 0.0
      %vm2754 = vcmp.gt.f32.partialorder %v2498, 0.0
      %vm2755 = vcmp.gt.f32.partialorder %v2499, 0.0
      %vm2756 = vcmp.gt.f32.partialorder %v2500, 0.0
      %vm2757 = vcmp.gt.f32.partialorder %v2501, 0.0
      %vm2758 = vcmp.gt.f32.partialorder %v2502, 0.0
      %vm2759 = vcmp.gt.f32.partialorder %v2503, 0.0
      %vm2760 = vcmp.gt.f32.partialorder %v2504, 0.0
      %vm2761 = vcmp.gt.f32.partialorder %v2505, 0.0
      %vm2762 = vcmp.gt.f32.partialorder %v2506, 0.0
      %vm2763 = vcmp.gt.f32.partialorder %v2507, 0.0
      %vm2764 = vcmp.gt.f32.partialorder %v2508, 0.0
      %vm2765 = vcmp.gt.f32.partialorder %v2509, 0.0
      %vm2766 = vcmp.gt.f32.partialorder %v2510, 0.0
      %vm2767 = vcmp.gt.f32.partialorder %v2511, 0.0
      %vm2768 = vcmp.gt.f32.partialorder %v2512, 0.0
      %vm2769 = vcmp.gt.f32.partialorder %v2513, 0.0
      %vm2770 = vcmp.gt.f32.partialorder %v2514, 0.0
      %vm2771 = vcmp.gt.f32.partialorder %v2515, 0.0
      %vm2772 = vcmp.gt.f32.partialorder %v2516, 0.0
      %vm2773 = vcmp.gt.f32.partialorder %v2517, 0.0
      %vm2774 = vcmp.gt.f32.partialorder %v2518, 0.0
      %vm2775 = vcmp.gt.f32.partialorder %v2519, 0.0
      %vm2776 = vcmp.gt.f32.partialorder %v2520, 0.0
      %vm2777 = vcmp.gt.f32.partialorder %v2521, 0.0
      %vm2778 = vcmp.gt.f32.partialorder %v2522, 0.0
      %vm2779 = vcmp.gt.f32.partialorder %v2523, 0.0
      %vm2780 = vcmp.gt.f32.partialorder %v2524, 0.0
      %vm2781 = vcmp.gt.f32.partialorder %v2525, 0.0
      %vm2782 = vcmp.gt.f32.partialorder %v2526, 0.0
      %vm2783 = vcmp.gt.f32.partialorder %v2527, 0.0
      %vm2784 = vcmp.gt.f32.partialorder %v2528, 0.0
      %vm2785 = vcmp.gt.f32.partialorder %v2529, 0.0
      %vm2786 = vcmp.gt.f32.partialorder %v2530, 0.0
      %vm2787 = vcmp.gt.f32.partialorder %v2531, 0.0
      %vm2788 = vcmp.gt.f32.partialorder %v2532, 0.0
      %vm2789 = vcmp.gt.f32.partialorder %v2533, 0.0
      %vm2790 = vcmp.gt.f32.partialorder %v2534, 0.0
      %vm2791 = vcmp.gt.f32.partialorder %v2535, 0.0
      %vm2792 = vcmp.gt.f32.partialorder %v2536, 0.0
      %vm2793 = vcmp.gt.f32.partialorder %v2537, 0.0
      %vm2794 = vcmp.gt.f32.partialorder %v2538, 0.0
      %vm2795 = vcmp.gt.f32.partialorder %v2539, 0.0
      %vm2796 = vcmp.gt.f32.partialorder %v2540, 0.0
      %vm2797 = vcmp.gt.f32.partialorder %v2541, 0.0
      %vm2798 = vcmp.gt.f32.partialorder %v2542, 0.0
      %vm2799 = vcmp.gt.f32.partialorder %v2543, 0.0
      %vm2800 = vcmp.gt.f32.partialorder %v2544, 0.0
      %vm2801 = vcmp.gt.f32.partialorder %v2545, 0.0
      %vm2802 = vcmp.gt.f32.partialorder %v2546, 0.0
      %vm2803 = vcmp.gt.f32.partialorder %v2547, 0.0
      %vm2804 = vcmp.gt.f32.partialorder %v2548, 0.0
      %vm2805 = vcmp.gt.f32.partialorder %v2549, 0.0
      %vm2806 = vcmp.gt.f32.partialorder %v2550, 0.0
      %vm2807 = vcmp.gt.f32.partialorder %v2551, 0.0
      %vm2808 = vcmp.gt.f32.partialorder %v2552, 0.0
      %vm2809 = vcmp.gt.f32.partialorder %v2553, 0.0
      %vm2810 = vcmp.gt.f32.partialorder %v2554, 0.0
      %vm2811 = vcmp.gt.f32.partialorder %v2555, 0.0
      %vm2812 = vcmp.gt.f32.partialorder %v2556, 0.0
      %vm2813 = vcmp.gt.f32.partialorder %v2557, 0.0
      %vm2814 = vcmp.gt.f32.partialorder %v2558, 0.0
      %vm2815 = vcmp.gt.f32.partialorder %v2559, 0.0
      %vm2816 = vcmp.gt.f32.partialorder %v2560, 0.0
      %vm2817 = vcmp.gt.f32.partialorder %v2561, 0.0
      %vm2818 = vcmp.gt.f32.partialorder %v2562, 0.0
      %vm2819 = vcmp.gt.f32.partialorder %v2563, 0.0
      %vm2820 = vcmp.gt.f32.partialorder %v2564, 0.0
      %vm2821 = vcmp.gt.f32.partialorder %v2565, 0.0
      %vm2822 = vcmp.gt.f32.partialorder %v2566, 0.0
      %vm2823 = vcmp.gt.f32.partialorder %v2567, 0.0
      %vm2824 = vcmp.gt.f32.partialorder %v2568, 0.0
      %vm2825 = vcmp.gt.f32.partialorder %v2569, 0.0
      %vm2826 = vcmp.gt.f32.partialorder %v2570, 0.0
      %vm2827 = vcmp.gt.f32.partialorder %v2571, 0.0
      %vm2828 = vcmp.gt.f32.partialorder %v2572, 0.0
      %vm2829 = vcmp.gt.f32.partialorder %v2573, 0.0
      %vm2830 = vcmp.gt.f32.partialorder %v2574, 0.0
      %vm2831 = vcmp.gt.f32.partialorder %v2575, 0.0
      %vm2832 = vcmp.gt.f32.partialorder %v2576, 0.0
      %vm2833 = vcmp.gt.f32.partialorder %v2577, 0.0
      %vm2834 = vcmp.gt.f32.partialorder %v2578, 0.0
      %vm2835 = vcmp.gt.f32.partialorder %v2579, 0.0
      %vm2836 = vcmp.gt.f32.partialorder %v2580, 0.0
      %vm2837 = vcmp.gt.f32.partialorder %v2581, 0.0
      %vm2838 = vcmp.gt.f32.partialorder %v2582, 0.0
      %vm2839 = vcmp.gt.f32.partialorder %v2583, 0.0
      %vm2840 = vcmp.gt.f32.partialorder %v2584, 0.0
      %vm2841 = vcmp.gt.f32.partialorder %v2585, 0.0
      %vm2842 = vcmp.gt.f32.partialorder %v2586, 0.0
      %vm2843 = vcmp.gt.f32.partialorder %v2587, 0.0
      %vm2844 = vcmp.gt.f32.partialorder %v2588, 0.0
      %vm2845 = vcmp.gt.f32.partialorder %v2589, 0.0
      %vm2846 = vcmp.gt.f32.partialorder %v2590, 0.0
      %vm2847 = vcmp.gt.f32.partialorder %v2591, 0.0
      %vm2848 = vcmp.gt.f32.partialorder %v2592, 0.0
      %vm2849 = vcmp.gt.f32.partialorder %v2593, 0.0
      %vm2850 = vcmp.gt.f32.partialorder %v2594, 0.0
      %vm2851 = vcmp.gt.f32.partialorder %v2595, 0.0
      %vm2852 = vcmp.gt.f32.partialorder %v2596, 0.0
      %vm2853 = vcmp.gt.f32.partialorder %v2597, 0.0
      %vm2854 = vcmp.gt.f32.partialorder %v2598, 0.0
      %vm2855 = vcmp.gt.f32.partialorder %v2599, 0.0
      %vm2856 = vcmp.gt.f32.partialorder %v2600, 0.0
      %vm2857 = vcmp.gt.f32.partialorder %v2601, 0.0
      %vm2858 = vcmp.gt.f32.partialorder %v2602, 0.0
      %vm2859 = vcmp.gt.f32.partialorder %v2603, 0.0
      %vm2860 = vcmp.gt.f32.partialorder %v2604, 0.0
      %vm2861 = vcmp.gt.f32.partialorder %v2605, 0.0
      %vm2862 = vcmp.gt.f32.partialorder %v2606, 0.0
      %vm2863 = vcmp.gt.f32.partialorder %v2607, 0.0
      %vm2864 = vcmp.gt.f32.partialorder %v2608, 0.0
      %vm2865 = vcmp.gt.f32.partialorder %v2609, 0.0
      %vm2866 = vcmp.gt.f32.partialorder %v2610, 0.0
      %vm2867 = vcmp.gt.f32.partialorder %v2611, 0.0
      %vm2868 = vcmp.gt.f32.partialorder %v2612, 0.0
      %vm2869 = vcmp.gt.f32.partialorder %v2613, 0.0
      %vm2870 = vcmp.gt.f32.partialorder %v2614, 0.0
      %vm2871 = vcmp.gt.f32.partialorder %v2615, 0.0
      %vm2872 = vcmp.gt.f32.partialorder %v2616, 0.0
      %vm2873 = vcmp.gt.f32.partialorder %v2617, 0.0
      %vm2874 = vcmp.gt.f32.partialorder %v2618, 0.0
      %vm2875 = vcmp.gt.f32.partialorder %v2619, 0.0
      %vm2876 = vcmp.gt.f32.partialorder %v2620, 0.0
      %vm2877 = vcmp.gt.f32.partialorder %v2621, 0.0
      %vm2878 = vcmp.gt.f32.partialorder %v2622, 0.0
      %vm2879 = vcmp.gt.f32.partialorder %v2623, 0.0
      %vm2880 = vcmp.gt.f32.partialorder %v2624, 0.0
      %vm2881 = vcmp.gt.f32.partialorder %v2625, 0.0
      %vm2882 = vcmp.gt.f32.partialorder %v2626, 0.0
      %vm2883 = vcmp.gt.f32.partialorder %v2627, 0.0
      %vm2884 = vcmp.gt.f32.partialorder %v2628, 0.0
      %vm2885 = vcmp.gt.f32.partialorder %v2629, 0.0
      %vm2886 = vcmp.gt.f32.partialorder %v2630, 0.0
      %vm2887 = vcmp.gt.f32.partialorder %v2631, 0.0
      %vm2888 = vcmp.gt.f32.partialorder %v2632, 0.0
      %vm2889 = vcmp.gt.f32.partialorder %v2633, 0.0
      %vm2890 = vcmp.gt.f32.partialorder %v2634, 0.0
      %vm2891 = vcmp.gt.f32.partialorder %v2635, 0.0
      %vm2892 = vcmp.gt.f32.partialorder %v2636, 0.0
      %vm2893 = vcmp.gt.f32.partialorder %v2637, 0.0
      %vm2894 = vcmp.gt.f32.partialorder %v2638, 0.0
      %vm2895 = vcmp.gt.f32.partialorder %v2639, 0.0
      %vm2896 = vcmp.gt.f32.partialorder %v2640, 0.0
      %vm2897 = vcmp.gt.f32.partialorder %v2641, 0.0
      %vm2898 = vcmp.gt.f32.partialorder %v2642, 0.0
      %vm2899 = vcmp.gt.f32.partialorder %v2643, 0.0
      %vm2900 = vcmp.gt.f32.partialorder %v2644, 0.0
      %vm2901 = vcmp.gt.f32.partialorder %v2645, 0.0
      %vm2902 = vcmp.gt.f32.partialorder %v2646, 0.0
      %vm2903 = vcmp.gt.f32.partialorder %v2647, 0.0
      %vm2904 = vcmp.gt.f32.partialorder %v2648, 0.0
      %vm2905 = vcmp.gt.f32.partialorder %v2649, 0.0
      %vm2906 = vcmp.gt.f32.partialorder %v2650, 0.0
      %vm2907 = vcmp.gt.f32.partialorder %v2651, 0.0
      %vm2908 = vcmp.gt.f32.partialorder %v2652, 0.0
      %vm2909 = vcmp.gt.f32.partialorder %v2653, 0.0
      %vm2910 = vcmp.gt.f32.partialorder %v2654, 0.0
      %vm2911 = vcmp.gt.f32.partialorder %v2655, 0.0
      %vm2912 = vcmp.gt.f32.partialorder %v2656, 0.0
      %vm2913 = vcmp.gt.f32.partialorder %v2657, 0.0
      %vm2914 = vcmp.gt.f32.partialorder %v2658, 0.0
      %vm2915 = vcmp.gt.f32.partialorder %v2659, 0.0
      %vm2916 = vcmp.gt.f32.partialorder %v2660, 0.0
      %vm2917 = vcmp.gt.f32.partialorder %v2661, 0.0
      %vm2918 = vcmp.gt.f32.partialorder %v2662, 0.0
      %vm2919 = vcmp.gt.f32.partialorder %v2663, 0.0
      %vm2920 = vcmp.gt.f32.partialorder %v2664, 0.0
      %vm2921 = vcmp.gt.f32.partialorder %v2665, 0.0
      %vm2922 = vcmp.gt.f32.partialorder %v2666, 0.0
      %vm2923 = vcmp.gt.f32.partialorder %v2667, 0.0
      %vm2924 = vcmp.gt.f32.partialorder %v2668, 0.0
      %vm2925 = vcmp.gt.f32.partialorder %v2669, 0.0
      %vm2926 = vcmp.gt.f32.partialorder %v2670, 0.0
      %vm2927 = vcmp.gt.f32.partialorder %v2671, 0.0
      %vm2928 = vcmp.gt.f32.partialorder %v2672, 0.0
      %vm2929 = vcmp.gt.f32.partialorder %v2673, 0.0
      %vm2930 = vcmp.gt.f32.partialorder %v2674, 0.0
      %vm2931 = vcmp.gt.f32.partialorder %v2675, 0.0
      %vm2932 = vcmp.gt.f32.partialorder %v2676, 0.0
      %vm2933 = vcmp.gt.f32.partialorder %v2677, 0.0
      %vm2934 = vcmp.gt.f32.partialorder %v2678, 0.0
      %vm2935 = vcmp.gt.f32.partialorder %v2679, 0.0
      %vm2936 = vcmp.gt.f32.partialorder %v2680, 0.0
      %vm2937 = vcmp.gt.f32.partialorder %v2681, 0.0
      %vm2938 = vcmp.gt.f32.partialorder %v2682, 0.0
      %vm2939 = vcmp.gt.f32.partialorder %v2683, 0.0
      %vm2940 = vcmp.gt.f32.partialorder %v2684, 0.0
      %vm2941 = vcmp.gt.f32.partialorder %v2685, 0.0
      %vm2942 = vcmp.gt.f32.partialorder %v2686, 0.0
      %vm2943 = vcmp.gt.f32.partialorder %v2687, 0.0
      %vm2944 = vcmp.gt.f32.partialorder %v2688, 0.0
      %vm2945 = vcmp.gt.f32.partialorder %v2689, 0.0
      %vm2946 = vcmp.gt.f32.partialorder %v2690, 0.0
      %v2947 = vld [vmem:[%s218 + $0x2] sm:$0x1]
      %v2948 = vperm.slane %v2947, 0
      %v2949 = vmul.f32 %v2435, %v2948
      %v2950 = vmul.f32 %v2436, %v2948
      %v2951 = vmul.f32 %v2437, %v2948
      %v2952 = vmul.f32 %v2438, %v2948
      %v2953 = vmul.f32 %v2439, %v2948
      %v2954 = vmul.f32 %v2440, %v2948
      %v2955 = vmul.f32 %v2441, %v2948
      %v2956 = vmul.f32 %v2442, %v2948
      %v2957 = vmul.f32 %v2443, %v2948
      %v2958 = vmul.f32 %v2444, %v2948
      %v2959 = vmul.f32 %v2445, %v2948
      %v2960 = vmul.f32 %v2446, %v2948
      %v2961 = vmul.f32 %v2447, %v2948
      %v2962 = vmul.f32 %v2448, %v2948
      %v2963 = vmul.f32 %v2449, %v2948
      %v2964 = vmul.f32 %v2450, %v2948
      %v2965 = vmul.f32 %v2451, %v2948
      %v2966 = vmul.f32 %v2452, %v2948
      %v2967 = vmul.f32 %v2453, %v2948
      %v2968 = vmul.f32 %v2454, %v2948
      %v2969 = vmul.f32 %v2455, %v2948
      %v2970 = vmul.f32 %v2456, %v2948
      %v2971 = vmul.f32 %v2457, %v2948
      %v2972 = vmul.f32 %v2458, %v2948
      %v2973 = vmul.f32 %v2459, %v2948
      %v2974 = vmul.f32 %v2460, %v2948
      %v2975 = vmul.f32 %v2461, %v2948
      %v2976 = vmul.f32 %v2462, %v2948
      %v2977 = vmul.f32 %v2463, %v2948
      %v2978 = vmul.f32 %v2464, %v2948
      %v2979 = vmul.f32 %v2465, %v2948
      %v2980 = vmul.f32 %v2466, %v2948
      %v2981 = vmul.f32 %v2467, %v2948
      %v2982 = vmul.f32 %v2468, %v2948
      %v2983 = vmul.f32 %v2469, %v2948
      %v2984 = vmul.f32 %v2470, %v2948
      %v2985 = vmul.f32 %v2471, %v2948
      %v2986 = vmul.f32 %v2472, %v2948
      %v2987 = vmul.f32 %v2473, %v2948
      %v2988 = vmul.f32 %v2474, %v2948
      %v2989 = vmul.f32 %v2475, %v2948
      %v2990 = vmul.f32 %v2476, %v2948
      %v2991 = vmul.f32 %v2477, %v2948
      %v2992 = vmul.f32 %v2478, %v2948
      %v2993 = vmul.f32 %v2479, %v2948
      %v2994 = vmul.f32 %v2480, %v2948
      %v2995 = vmul.f32 %v2481, %v2948
      %v2996 = vmul.f32 %v2482, %v2948
      %v2997 = vmul.f32 %v2483, %v2948
      %v2998 = vmul.f32 %v2484, %v2948
      %v2999 = vmul.f32 %v2485, %v2948
      %v3000 = vmul.f32 %v2486, %v2948
      %v3001 = vmul.f32 %v2487, %v2948
      %v3002 = vmul.f32 %v2488, %v2948
      %v3003 = vmul.f32 %v2489, %v2948
      %v3004 = vmul.f32 %v2490, %v2948
      %v3005 = vmul.f32 %v2491, %v2948
      %v3006 = vmul.f32 %v2492, %v2948
      %v3007 = vmul.f32 %v2493, %v2948
      %v3008 = vmul.f32 %v2494, %v2948
      %v3009 = vmul.f32 %v2495, %v2948
      %v3010 = vmul.f32 %v2496, %v2948
      %v3011 = vmul.f32 %v2497, %v2948
      %v3012 = vmul.f32 %v2498, %v2948
      %v3013 = vmul.f32 %v2499, %v2948
      %v3014 = vmul.f32 %v2500, %v2948
      %v3015 = vmul.f32 %v2501, %v2948
      %v3016 = vmul.f32 %v2502, %v2948
      %v3017 = vmul.f32 %v2503, %v2948
      %v3018 = vmul.f32 %v2504, %v2948
      %v3019 = vmul.f32 %v2505, %v2948
      %v3020 = vmul.f32 %v2506, %v2948
      %v3021 = vmul.f32 %v2507, %v2948
      %v3022 = vmul.f32 %v2508, %v2948
      %v3023 = vmul.f32 %v2509, %v2948
      %v3024 = vmul.f32 %v2510, %v2948
      %v3025 = vmul.f32 %v2511, %v2948
      %v3026 = vmul.f32 %v2512, %v2948
      %v3027 = vmul.f32 %v2513, %v2948
      %v3028 = vmul.f32 %v2514, %v2948
      %v3029 = vmul.f32 %v2515, %v2948
      %v3030 = vmul.f32 %v2516, %v2948
      %v3031 = vmul.f32 %v2517, %v2948
      %v3032 = vmul.f32 %v2518, %v2948
      %v3033 = vmul.f32 %v2519, %v2948
      %v3034 = vmul.f32 %v2520, %v2948
      %v3035 = vmul.f32 %v2521, %v2948
      %v3036 = vmul.f32 %v2522, %v2948
      %v3037 = vmul.f32 %v2523, %v2948
      %v3038 = vmul.f32 %v2524, %v2948
      %v3039 = vmul.f32 %v2525, %v2948
      %v3040 = vmul.f32 %v2526, %v2948
      %v3041 = vmul.f32 %v2527, %v2948
      %v3042 = vmul.f32 %v2528, %v2948
      %v3043 = vmul.f32 %v2529, %v2948
      %v3044 = vmul.f32 %v2530, %v2948
      %v3045 = vmul.f32 %v2531, %v2948
      %v3046 = vmul.f32 %v2532, %v2948
      %v3047 = vmul.f32 %v2533, %v2948
      %v3048 = vmul.f32 %v2534, %v2948
      %v3049 = vmul.f32 %v2535, %v2948
      %v3050 = vmul.f32 %v2536, %v2948
      %v3051 = vmul.f32 %v2537, %v2948
      %v3052 = vmul.f32 %v2538, %v2948
      %v3053 = vmul.f32 %v2539, %v2948
      %v3054 = vmul.f32 %v2540, %v2948
      %v3055 = vmul.f32 %v2541, %v2948
      %v3056 = vmul.f32 %v2542, %v2948
      %v3057 = vmul.f32 %v2543, %v2948
      %v3058 = vmul.f32 %v2544, %v2948
      %v3059 = vmul.f32 %v2545, %v2948
      %v3060 = vmul.f32 %v2546, %v2948
      %v3061 = vmul.f32 %v2547, %v2948
      %v3062 = vmul.f32 %v2548, %v2948
      %v3063 = vmul.f32 %v2549, %v2948
      %v3064 = vmul.f32 %v2550, %v2948
      %v3065 = vmul.f32 %v2551, %v2948
      %v3066 = vmul.f32 %v2552, %v2948
      %v3067 = vmul.f32 %v2553, %v2948
      %v3068 = vmul.f32 %v2554, %v2948
      %v3069 = vmul.f32 %v2555, %v2948
      %v3070 = vmul.f32 %v2556, %v2948
      %v3071 = vmul.f32 %v2557, %v2948
      %v3072 = vmul.f32 %v2558, %v2948
      %v3073 = vmul.f32 %v2559, %v2948
      %v3074 = vmul.f32 %v2560, %v2948
      %v3075 = vmul.f32 %v2561, %v2948
      %v3076 = vmul.f32 %v2562, %v2948
      %v3077 = vmul.f32 %v2563, %v2948
      %v3078 = vmul.f32 %v2564, %v2948
      %v3079 = vmul.f32 %v2565, %v2948
      %v3080 = vmul.f32 %v2566, %v2948
      %v3081 = vmul.f32 %v2567, %v2948
      %v3082 = vmul.f32 %v2568, %v2948
      %v3083 = vmul.f32 %v2569, %v2948
      %v3084 = vmul.f32 %v2570, %v2948
      %v3085 = vmul.f32 %v2571, %v2948
      %v3086 = vmul.f32 %v2572, %v2948
      %v3087 = vmul.f32 %v2573, %v2948
      %v3088 = vmul.f32 %v2574, %v2948
      %v3089 = vmul.f32 %v2575, %v2948
      %v3090 = vmul.f32 %v2576, %v2948
      %v3091 = vmul.f32 %v2577, %v2948
      %v3092 = vmul.f32 %v2578, %v2948
      %v3093 = vmul.f32 %v2579, %v2948
      %v3094 = vmul.f32 %v2580, %v2948
      %v3095 = vmul.f32 %v2581, %v2948
      %v3096 = vmul.f32 %v2582, %v2948
      %v3097 = vmul.f32 %v2583, %v2948
      %v3098 = vmul.f32 %v2584, %v2948
      %v3099 = vmul.f32 %v2585, %v2948
      %v3100 = vmul.f32 %v2586, %v2948
      %v3101 = vmul.f32 %v2587, %v2948
      %v3102 = vmul.f32 %v2588, %v2948
      %v3103 = vmul.f32 %v2589, %v2948
      %v3104 = vmul.f32 %v2590, %v2948
      %v3105 = vmul.f32 %v2591, %v2948
      %v3106 = vmul.f32 %v2592, %v2948
      %v3107 = vmul.f32 %v2593, %v2948
      %v3108 = vmul.f32 %v2594, %v2948
      %v3109 = vmul.f32 %v2595, %v2948
      %v3110 = vmul.f32 %v2596, %v2948
      %v3111 = vmul.f32 %v2597, %v2948
      %v3112 = vmul.f32 %v2598, %v2948
      %v3113 = vmul.f32 %v2599, %v2948
      %v3114 = vmul.f32 %v2600, %v2948
      %v3115 = vmul.f32 %v2601, %v2948
      %v3116 = vmul.f32 %v2602, %v2948
      %v3117 = vmul.f32 %v2603, %v2948
      %v3118 = vmul.f32 %v2604, %v2948
      %v3119 = vmul.f32 %v2605, %v2948
      %v3120 = vmul.f32 %v2606, %v2948
      %v3121 = vmul.f32 %v2607, %v2948
      %v3122 = vmul.f32 %v2608, %v2948
      %v3123 = vmul.f32 %v2609, %v2948
      %v3124 = vmul.f32 %v2610, %v2948
      %v3125 = vmul.f32 %v2611, %v2948
      %v3126 = vmul.f32 %v2612, %v2948
      %v3127 = vmul.f32 %v2613, %v2948
      %v3128 = vmul.f32 %v2614, %v2948
      %v3129 = vmul.f32 %v2615, %v2948
      %v3130 = vmul.f32 %v2616, %v2948
      %v3131 = vmul.f32 %v2617, %v2948
      %v3132 = vmul.f32 %v2618, %v2948
      %v3133 = vmul.f32 %v2619, %v2948
      %v3134 = vmul.f32 %v2620, %v2948
      %v3135 = vmul.f32 %v2621, %v2948
      %v3136 = vmul.f32 %v2622, %v2948
      %v3137 = vmul.f32 %v2623, %v2948
      %v3138 = vmul.f32 %v2624, %v2948
      %v3139 = vmul.f32 %v2625, %v2948
      %v3140 = vmul.f32 %v2626, %v2948
      %v3141 = vmul.f32 %v2627, %v2948
      %v3142 = vmul.f32 %v2628, %v2948
      %v3143 = vmul.f32 %v2629, %v2948
      %v3144 = vmul.f32 %v2630, %v2948
      %v3145 = vmul.f32 %v2631, %v2948
      %v3146 = vmul.f32 %v2632, %v2948
      %v3147 = vmul.f32 %v2633, %v2948
      %v3148 = vmul.f32 %v2634, %v2948
      %v3149 = vmul.f32 %v2635, %v2948
      %v3150 = vmul.f32 %v2636, %v2948
      %v3151 = vmul.f32 %v2637, %v2948
      %v3152 = vmul.f32 %v2638, %v2948
      %v3153 = vmul.f32 %v2639, %v2948
      %v3154 = vmul.f32 %v2640, %v2948
      %v3155 = vmul.f32 %v2641, %v2948
      %v3156 = vmul.f32 %v2642, %v2948
      %v3157 = vmul.f32 %v2643, %v2948
      %v3158 = vmul.f32 %v2644, %v2948
      %v3159 = vmul.f32 %v2645, %v2948
      %v3160 = vmul.f32 %v2646, %v2948
      %v3161 = vmul.f32 %v2647, %v2948
      %v3162 = vmul.f32 %v2648, %v2948
      %v3163 = vmul.f32 %v2649, %v2948
      %v3164 = vmul.f32 %v2650, %v2948
      %v3165 = vmul.f32 %v2651, %v2948
      %v3166 = vmul.f32 %v2652, %v2948
      %v3167 = vmul.f32 %v2653, %v2948
      %v3168 = vmul.f32 %v2654, %v2948
      %v3169 = vmul.f32 %v2655, %v2948
      %v3170 = vmul.f32 %v2656, %v2948
      %v3171 = vmul.f32 %v2657, %v2948
      %v3172 = vmul.f32 %v2658, %v2948
      %v3173 = vmul.f32 %v2659, %v2948
      %v3174 = vmul.f32 %v2660, %v2948
      %v3175 = vmul.f32 %v2661, %v2948
      %v3176 = vmul.f32 %v2662, %v2948
      %v3177 = vmul.f32 %v2663, %v2948
      %v3178 = vmul.f32 %v2664, %v2948
      %v3179 = vmul.f32 %v2665, %v2948
      %v3180 = vmul.f32 %v2666, %v2948
      %v3181 = vmul.f32 %v2667, %v2948
      %v3182 = vmul.f32 %v2668, %v2948
      %v3183 = vmul.f32 %v2669, %v2948
      %v3184 = vmul.f32 %v2670, %v2948
      %v3185 = vmul.f32 %v2671, %v2948
      %v3186 = vmul.f32 %v2672, %v2948
      %v3187 = vmul.f32 %v2673, %v2948
      %v3188 = vmul.f32 %v2674, %v2948
      %v3189 = vmul.f32 %v2675, %v2948
      %v3190 = vmul.f32 %v2676, %v2948
      %v3191 = vmul.f32 %v2677, %v2948
      %v3192 = vmul.f32 %v2678, %v2948
      %v3193 = vmul.f32 %v2679, %v2948
      %v3194 = vmul.f32 %v2680, %v2948
      %v3195 = vmul.f32 %v2681, %v2948
      %v3196 = vmul.f32 %v2682, %v2948
      %v3197 = vmul.f32 %v2683, %v2948
      %v3198 = vmul.f32 %v2684, %v2948
      %v3199 = vmul.f32 %v2685, %v2948
      %v3200 = vmul.f32 %v2686, %v2948
      %v3201 = vmul.f32 %v2687, %v2948
      %v3202 = vmul.f32 %v2688, %v2948
      %v3203 = vmul.f32 %v2689, %v2948
      %v3204 = vmul.f32 %v2690, %v2948
      %v3205 = vsel %vm2691, %v2435, %v2949
      %v3206 = vsel %vm2692, %v2436, %v2950
      %v3207 = vsel %vm2693, %v2437, %v2951
      %v3208 = vsel %vm2694, %v2438, %v2952
      %v3209 = vsel %vm2695, %v2439, %v2953
      %v3210 = vsel %vm2696, %v2440, %v2954
      %v3211 = vsel %vm2697, %v2441, %v2955
      %v3212 = vsel %vm2698, %v2442, %v2956
      %v3213 = vsel %vm2699, %v2443, %v2957
      %v3214 = vsel %vm2700, %v2444, %v2958
      %v3215 = vsel %vm2701, %v2445, %v2959
      %v3216 = vsel %vm2702, %v2446, %v2960
      %v3217 = vsel %vm2703, %v2447, %v2961
      %v3218 = vsel %vm2704, %v2448, %v2962
      %v3219 = vsel %vm2705, %v2449, %v2963
      %v3220 = vsel %vm2706, %v2450, %v2964
      %v3221 = vsel %vm2707, %v2451, %v2965
      %v3222 = vsel %vm2708, %v2452, %v2966
      %v3223 = vsel %vm2709, %v2453, %v2967
      %v3224 = vsel %vm2710, %v2454, %v2968
      %v3225 = vsel %vm2711, %v2455, %v2969
      %v3226 = vsel %vm2712, %v2456, %v2970
      %v3227 = vsel %vm2713, %v2457, %v2971
      %v3228 = vsel %vm2714, %v2458, %v2972
      %v3229 = vsel %vm2715, %v2459, %v2973
      %v3230 = vsel %vm2716, %v2460, %v2974
      %v3231 = vsel %vm2717, %v2461, %v2975
      %v3232 = vsel %vm2718, %v2462, %v2976
      %v3233 = vsel %vm2719, %v2463, %v2977
      %v3234 = vsel %vm2720, %v2464, %v2978
      %v3235 = vsel %vm2721, %v2465, %v2979
      %v3236 = vsel %vm2722, %v2466, %v2980
      %v3237 = vsel %vm2723, %v2467, %v2981
      %v3238 = vsel %vm2724, %v2468, %v2982
      %v3239 = vsel %vm2725, %v2469, %v2983
      %v3240 = vsel %vm2726, %v2470, %v2984
      %v3241 = vsel %vm2727, %v2471, %v2985
      %v3242 = vsel %vm2728, %v2472, %v2986
      %v3243 = vsel %vm2729, %v2473, %v2987
      %v3244 = vsel %vm2730, %v2474, %v2988
      %v3245 = vsel %vm2731, %v2475, %v2989
      %v3246 = vsel %vm2732, %v2476, %v2990
      %v3247 = vsel %vm2733, %v2477, %v2991
      %v3248 = vsel %vm2734, %v2478, %v2992
      %v3249 = vsel %vm2735, %v2479, %v2993
      %v3250 = vsel %vm2736, %v2480, %v2994
      %v3251 = vsel %vm2737, %v2481, %v2995
      %v3252 = vsel %vm2738, %v2482, %v2996
      %v3253 = vsel %vm2739, %v2483, %v2997
      %v3254 = vsel %vm2740, %v2484, %v2998
      %v3255 = vsel %vm2741, %v2485, %v2999
      %v3256 = vsel %vm2742, %v2486, %v3000
      %v3257 = vsel %vm2743, %v2487, %v3001
      %v3258 = vsel %vm2744, %v2488, %v3002
      %v3259 = vsel %vm2745, %v2489, %v3003
      %v3260 = vsel %vm2746, %v2490, %v3004
      %v3261 = vsel %vm2747, %v2491, %v3005
      %v3262 = vsel %vm2748, %v2492, %v3006
      %v3263 = vsel %vm2749, %v2493, %v3007
      %v3264 = vsel %vm2750, %v2494, %v3008
      %v3265 = vsel %vm2751, %v2495, %v3009
      %v3266 = vsel %vm2752, %v2496, %v3010
      %v3267 = vsel %vm2753, %v2497, %v3011
      %v3268 = vsel %vm2754, %v2498, %v3012
      %v3269 = vsel %vm2755, %v2499, %v3013
      %v3270 = vsel %vm2756, %v2500, %v3014
      %v3271 = vsel %vm2757, %v2501, %v3015
      %v3272 = vsel %vm2758, %v2502, %v3016
      %v3273 = vsel %vm2759, %v2503, %v3017
      %v3274 = vsel %vm2760, %v2504, %v3018
      %v3275 = vsel %vm2761, %v2505, %v3019
      %v3276 = vsel %vm2762, %v2506, %v3020
      %v3277 = vsel %vm2763, %v2507, %v3021
      %v3278 = vsel %vm2764, %v2508, %v3022
      %v3279 = vsel %vm2765, %v2509, %v3023
      %v3280 = vsel %vm2766, %v2510, %v3024
      %v3281 = vsel %vm2767, %v2511, %v3025
      %v3282 = vsel %vm2768, %v2512, %v3026
      %v3283 = vsel %vm2769, %v2513, %v3027
      %v3284 = vsel %vm2770, %v2514, %v3028
      %v3285 = vsel %vm2771, %v2515, %v3029
      %v3286 = vsel %vm2772, %v2516, %v3030
      %v3287 = vsel %vm2773, %v2517, %v3031
      %v3288 = vsel %vm2774, %v2518, %v3032
      %v3289 = vsel %vm2775, %v2519, %v3033
      %v3290 = vsel %vm2776, %v2520, %v3034
      %v3291 = vsel %vm2777, %v2521, %v3035
      %v3292 = vsel %vm2778, %v2522, %v3036
      %v3293 = vsel %vm2779, %v2523, %v3037
      %v3294 = vsel %vm2780, %v2524, %v3038
      %v3295 = vsel %vm2781, %v2525, %v3039
      %v3296 = vsel %vm2782, %v2526, %v3040
      %v3297 = vsel %vm2783, %v2527, %v3041
      %v3298 = vsel %vm2784, %v2528, %v3042
      %v3299 = vsel %vm2785, %v2529, %v3043
      %v3300 = vsel %vm2786, %v2530, %v3044
      %v3301 = vsel %vm2787, %v2531, %v3045
      %v3302 = vsel %vm2788, %v2532, %v3046
      %v3303 = vsel %vm2789, %v2533, %v3047
      %v3304 = vsel %vm2790, %v2534, %v3048
      %v3305 = vsel %vm2791, %v2535, %v3049
      %v3306 = vsel %vm2792, %v2536, %v3050
      %v3307 = vsel %vm2793, %v2537, %v3051
      %v3308 = vsel %vm2794, %v2538, %v3052
      %v3309 = vsel %vm2795, %v2539, %v3053
      %v3310 = vsel %vm2796, %v2540, %v3054
      %v3311 = vsel %vm2797, %v2541, %v3055
      %v3312 = vsel %vm2798, %v2542, %v3056
      %v3313 = vsel %vm2799, %v2543, %v3057
      %v3314 = vsel %vm2800, %v2544, %v3058
      %v3315 = vsel %vm2801, %v2545, %v3059
      %v3316 = vsel %vm2802, %v2546, %v3060
      %v3317 = vsel %vm2803, %v2547, %v3061
      %v3318 = vsel %vm2804, %v2548, %v3062
      %v3319 = vsel %vm2805, %v2549, %v3063
      %v3320 = vsel %vm2806, %v2550, %v3064
      %v3321 = vsel %vm2807, %v2551, %v3065
      %v3322 = vsel %vm2808, %v2552, %v3066
      %v3323 = vsel %vm2809, %v2553, %v3067
      %v3324 = vsel %vm2810, %v2554, %v3068
      %v3325 = vsel %vm2811, %v2555, %v3069
      %v3326 = vsel %vm2812, %v2556, %v3070
      %v3327 = vsel %vm2813, %v2557, %v3071
      %v3328 = vsel %vm2814, %v2558, %v3072
      %v3329 = vsel %vm2815, %v2559, %v3073
      %v3330 = vsel %vm2816, %v2560, %v3074
      %v3331 = vsel %vm2817, %v2561, %v3075
      %v3332 = vsel %vm2818, %v2562, %v3076
      %v3333 = vsel %vm2819, %v2563, %v3077
      %v3334 = vsel %vm2820, %v2564, %v3078
      %v3335 = vsel %vm2821, %v2565, %v3079
      %v3336 = vsel %vm2822, %v2566, %v3080
      %v3337 = vsel %vm2823, %v2567, %v3081
      %v3338 = vsel %vm2824, %v2568, %v3082
      %v3339 = vsel %vm2825, %v2569, %v3083
      %v3340 = vsel %vm2826, %v2570, %v3084
      %v3341 = vsel %vm2827, %v2571, %v3085
      %v3342 = vsel %vm2828, %v2572, %v3086
      %v3343 = vsel %vm2829, %v2573, %v3087
      %v3344 = vsel %vm2830, %v2574, %v3088
      %v3345 = vsel %vm2831, %v2575, %v3089
      %v3346 = vsel %vm2832, %v2576, %v3090
      %v3347 = vsel %vm2833, %v2577, %v3091
      %v3348 = vsel %vm2834, %v2578, %v3092
      %v3349 = vsel %vm2835, %v2579, %v3093
      %v3350 = vsel %vm2836, %v2580, %v3094
      %v3351 = vsel %vm2837, %v2581, %v3095
      %v3352 = vsel %vm2838, %v2582, %v3096
      %v3353 = vsel %vm2839, %v2583, %v3097
      %v3354 = vsel %vm2840, %v2584, %v3098
      %v3355 = vsel %vm2841, %v2585, %v3099
      %v3356 = vsel %vm2842, %v2586, %v3100
      %v3357 = vsel %vm2843, %v2587, %v3101
      %v3358 = vsel %vm2844, %v2588, %v3102
      %v3359 = vsel %vm2845, %v2589, %v3103
      %v3360 = vsel %vm2846, %v2590, %v3104
      %v3361 = vsel %vm2847, %v2591, %v3105
      %v3362 = vsel %vm2848, %v2592, %v3106
      %v3363 = vsel %vm2849, %v2593, %v3107
      %v3364 = vsel %vm2850, %v2594, %v3108
      %v3365 = vsel %vm2851, %v2595, %v3109
      %v3366 = vsel %vm2852, %v2596, %v3110
      %v3367 = vsel %vm2853, %v2597, %v3111
      %v3368 = vsel %vm2854, %v2598, %v3112
      %v3369 = vsel %vm2855, %v2599, %v3113
      %v3370 = vsel %vm2856, %v2600, %v3114
      %v3371 = vsel %vm2857, %v2601, %v3115
      %v3372 = vsel %vm2858, %v2602, %v3116
      %v3373 = vsel %vm2859, %v2603, %v3117
      %v3374 = vsel %vm2860, %v2604, %v3118
      %v3375 = vsel %vm2861, %v2605, %v3119
      %v3376 = vsel %vm2862, %v2606, %v3120
      %v3377 = vsel %vm2863, %v2607, %v3121
      %v3378 = vsel %vm2864, %v2608, %v3122
      %v3379 = vsel %vm2865, %v2609, %v3123
      %v3380 = vsel %vm2866, %v2610, %v3124
      %v3381 = vsel %vm2867, %v2611, %v3125
      %v3382 = vsel %vm2868, %v2612, %v3126
      %v3383 = vsel %vm2869, %v2613, %v3127
      %v3384 = vsel %vm2870, %v2614, %v3128
      %v3385 = vsel %vm2871, %v2615, %v3129
      %v3386 = vsel %vm2872, %v2616, %v3130
      %v3387 = vsel %vm2873, %v2617, %v3131
      %v3388 = vsel %vm2874, %v2618, %v3132
      %v3389 = vsel %vm2875, %v2619, %v3133
      %v3390 = vsel %vm2876, %v2620, %v3134
      %v3391 = vsel %vm2877, %v2621, %v3135
      %v3392 = vsel %vm2878, %v2622, %v3136
      %v3393 = vsel %vm2879, %v2623, %v3137
      %v3394 = vsel %vm2880, %v2624, %v3138
      %v3395 = vsel %vm2881, %v2625, %v3139
      %v3396 = vsel %vm2882, %v2626, %v3140
      %v3397 = vsel %vm2883, %v2627, %v3141
      %v3398 = vsel %vm2884, %v2628, %v3142
      %v3399 = vsel %vm2885, %v2629, %v3143
      %v3400 = vsel %vm2886, %v2630, %v3144
      %v3401 = vsel %vm2887, %v2631, %v3145
      %v3402 = vsel %vm2888, %v2632, %v3146
      %v3403 = vsel %vm2889, %v2633, %v3147
      %v3404 = vsel %vm2890, %v2634, %v3148
      %v3405 = vsel %vm2891, %v2635, %v3149
      %v3406 = vsel %vm2892, %v2636, %v3150
      %v3407 = vsel %vm2893, %v2637, %v3151
      %v3408 = vsel %vm2894, %v2638, %v3152
      %v3409 = vsel %vm2895, %v2639, %v3153
      %v3410 = vsel %vm2896, %v2640, %v3154
      %v3411 = vsel %vm2897, %v2641, %v3155
      %v3412 = vsel %vm2898, %v2642, %v3156
      %v3413 = vsel %vm2899, %v2643, %v3157
      %v3414 = vsel %vm2900, %v2644, %v3158
      %v3415 = vsel %vm2901, %v2645, %v3159
      %v3416 = vsel %vm2902, %v2646, %v3160
      %v3417 = vsel %vm2903, %v2647, %v3161
      %v3418 = vsel %vm2904, %v2648, %v3162
      %v3419 = vsel %vm2905, %v2649, %v3163
      %v3420 = vsel %vm2906, %v2650, %v3164
      %v3421 = vsel %vm2907, %v2651, %v3165
      %v3422 = vsel %vm2908, %v2652, %v3166
      %v3423 = vsel %vm2909, %v2653, %v3167
      %v3424 = vsel %vm2910, %v2654, %v3168
      %v3425 = vsel %vm2911, %v2655, %v3169
      %v3426 = vsel %vm2912, %v2656, %v3170
      %v3427 = vsel %vm2913, %v2657, %v3171
      %v3428 = vsel %vm2914, %v2658, %v3172
      %v3429 = vsel %vm2915, %v2659, %v3173
      %v3430 = vsel %vm2916, %v2660, %v3174
      %v3431 = vsel %vm2917, %v2661, %v3175
      %v3432 = vsel %vm2918, %v2662, %v3176
      %v3433 = vsel %vm2919, %v2663, %v3177
      %v3434 = vsel %vm2920, %v2664, %v3178
      %v3435 = vsel %vm2921, %v2665, %v3179
      %v3436 = vsel %vm2922, %v2666, %v3180
      %v3437 = vsel %vm2923, %v2667, %v3181
      %v3438 = vsel %vm2924, %v2668, %v3182
      %v3439 = vsel %vm2925, %v2669, %v3183
      %v3440 = vsel %vm2926, %v2670, %v3184
      %v3441 = vsel %vm2927, %v2671, %v3185
      %v3442 = vsel %vm2928, %v2672, %v3186
      %v3443 = vsel %vm2929, %v2673, %v3187
      %v3444 = vsel %vm2930, %v2674, %v3188
      %v3445 = vsel %vm2931, %v2675, %v3189
      %v3446 = vsel %vm2932, %v2676, %v3190
      %v3447 = vsel %vm2933, %v2677, %v3191
      %v3448 = vsel %vm2934, %v2678, %v3192
      %v3449 = vsel %vm2935, %v2679, %v3193
      %v3450 = vsel %vm2936, %v2680, %v3194
      %v3451 = vsel %vm2937, %v2681, %v3195
      %v3452 = vsel %vm2938, %v2682, %v3196
      %v3453 = vsel %vm2939, %v2683, %v3197
      %v3454 = vsel %vm2940, %v2684, %v3198
      %v3455 = vsel %vm2941, %v2685, %v3199
      %v3456 = vsel %vm2942, %v2686, %v3200
      %v3457 = vsel %vm2943, %v2687, %v3201
      %v3458 = vsel %vm2944, %v2688, %v3202
      %v3459 = vsel %vm2945, %v2689, %v3203
      %v3460 = vsel %vm2946, %v2690, %v3204
      %v3461 = vpack.c.bf16 %v3205, %v3205
      %v3462 = vpack.c.bf16 %v3206, %v3206
      %v3463 = vpack.c.bf16 %v3207, %v3207
      %v3464 = vpack.c.bf16 %v3208, %v3208
      %v3465 = vpack.c.bf16 %v3209, %v3209
      %v3466 = vpack.c.bf16 %v3210, %v3210
      %v3467 = vpack.c.bf16 %v3211, %v3211
      %v3468 = vpack.c.bf16 %v3212, %v3212
      %v3469 = vpack.c.bf16 %v3213, %v3213
      %v3470 = vpack.c.bf16 %v3214, %v3214
      %v3471 = vpack.c.bf16 %v3215, %v3215
      %v3472 = vpack.c.bf16 %v3216, %v3216
      %v3473 = vpack.c.bf16 %v3217, %v3217
      %v3474 = vpack.c.bf16 %v3218, %v3218
      %v3475 = vpack.c.bf16 %v3219, %v3219
      %v3476 = vpack.c.bf16 %v3220, %v3220
      %v3477 = vpack.c.bf16 %v3221, %v3221
      %v3478 = vpack.c.bf16 %v3222, %v3222
      %v3479 = vpack.c.bf16 %v3223, %v3223
      %v3480 = vpack.c.bf16 %v3224, %v3224
      %v3481 = vpack.c.bf16 %v3225, %v3225
      %v3482 = vpack.c.bf16 %v3226, %v3226
      %v3483 = vpack.c.bf16 %v3227, %v3227
      %v3484 = vpack.c.bf16 %v3228, %v3228
      %v3485 = vpack.c.bf16 %v3229, %v3229
      %v3486 = vpack.c.bf16 %v3230, %v3230
      %v3487 = vpack.c.bf16 %v3231, %v3231
      %v3488 = vpack.c.bf16 %v3232, %v3232
      %v3489 = vpack.c.bf16 %v3233, %v3233
      %v3490 = vpack.c.bf16 %v3234, %v3234
      %v3491 = vpack.c.bf16 %v3235, %v3235
      %v3492 = vpack.c.bf16 %v3236, %v3236
      %v3493 = vpack.c.bf16 %v3237, %v3237
      %v3494 = vpack.c.bf16 %v3238, %v3238
      %v3495 = vpack.c.bf16 %v3239, %v3239
      %v3496 = vpack.c.bf16 %v3240, %v3240
      %v3497 = vpack.c.bf16 %v3241, %v3241
      %v3498 = vpack.c.bf16 %v3242, %v3242
      %v3499 = vpack.c.bf16 %v3243, %v3243
      %v3500 = vpack.c.bf16 %v3244, %v3244
      %v3501 = vpack.c.bf16 %v3245, %v3245
      %v3502 = vpack.c.bf16 %v3246, %v3246
      %v3503 = vpack.c.bf16 %v3247, %v3247
      %v3504 = vpack.c.bf16 %v3248, %v3248
      %v3505 = vpack.c.bf16 %v3249, %v3249
      %v3506 = vpack.c.bf16 %v3250, %v3250
      %v3507 = vpack.c.bf16 %v3251, %v3251
      %v3508 = vpack.c.bf16 %v3252, %v3252
      %v3509 = vpack.c.bf16 %v3253, %v3253
      %v3510 = vpack.c.bf16 %v3254, %v3254
      %v3511 = vpack.c.bf16 %v3255, %v3255
      %v3512 = vpack.c.bf16 %v3256, %v3256
      %v3513 = vpack.c.bf16 %v3257, %v3257
      %v3514 = vpack.c.bf16 %v3258, %v3258
      %v3515 = vpack.c.bf16 %v3259, %v3259
      %v3516 = vpack.c.bf16 %v3260, %v3260
      %v3517 = vpack.c.bf16 %v3261, %v3261
      %v3518 = vpack.c.bf16 %v3262, %v3262
      %v3519 = vpack.c.bf16 %v3263, %v3263
      %v3520 = vpack.c.bf16 %v3264, %v3264
      %v3521 = vpack.c.bf16 %v3265, %v3265
      %v3522 = vpack.c.bf16 %v3266, %v3266
      %v3523 = vpack.c.bf16 %v3267, %v3267
      %v3524 = vpack.c.bf16 %v3268, %v3268
      %v3525 = vpack.c.bf16 %v3269, %v3269
      %v3526 = vpack.c.bf16 %v3270, %v3270
      %v3527 = vpack.c.bf16 %v3271, %v3271
      %v3528 = vpack.c.bf16 %v3272, %v3272
      %v3529 = vpack.c.bf16 %v3273, %v3273
      %v3530 = vpack.c.bf16 %v3274, %v3274
      %v3531 = vpack.c.bf16 %v3275, %v3275
      %v3532 = vpack.c.bf16 %v3276, %v3276
      %v3533 = vpack.c.bf16 %v3277, %v3277
      %v3534 = vpack.c.bf16 %v3278, %v3278
      %v3535 = vpack.c.bf16 %v3279, %v3279
      %v3536 = vpack.c.bf16 %v3280, %v3280
      %v3537 = vpack.c.bf16 %v3281, %v3281
      %v3538 = vpack.c.bf16 %v3282, %v3282
      %v3539 = vpack.c.bf16 %v3283, %v3283
      %v3540 = vpack.c.bf16 %v3284, %v3284
      %v3541 = vpack.c.bf16 %v3285, %v3285
      %v3542 = vpack.c.bf16 %v3286, %v3286
      %v3543 = vpack.c.bf16 %v3287, %v3287
      %v3544 = vpack.c.bf16 %v3288, %v3288
      %v3545 = vpack.c.bf16 %v3289, %v3289
      %v3546 = vpack.c.bf16 %v3290, %v3290
      %v3547 = vpack.c.bf16 %v3291, %v3291
      %v3548 = vpack.c.bf16 %v3292, %v3292
      %v3549 = vpack.c.bf16 %v3293, %v3293
      %v3550 = vpack.c.bf16 %v3294, %v3294
      %v3551 = vpack.c.bf16 %v3295, %v3295
      %v3552 = vpack.c.bf16 %v3296, %v3296
      %v3553 = vpack.c.bf16 %v3297, %v3297
      %v3554 = vpack.c.bf16 %v3298, %v3298
      %v3555 = vpack.c.bf16 %v3299, %v3299
      %v3556 = vpack.c.bf16 %v3300, %v3300
      %v3557 = vpack.c.bf16 %v3301, %v3301
      %v3558 = vpack.c.bf16 %v3302, %v3302
      %v3559 = vpack.c.bf16 %v3303, %v3303
      %v3560 = vpack.c.bf16 %v3304, %v3304
      %v3561 = vpack.c.bf16 %v3305, %v3305
      %v3562 = vpack.c.bf16 %v3306, %v3306
      %v3563 = vpack.c.bf16 %v3307, %v3307
      %v3564 = vpack.c.bf16 %v3308, %v3308
      %v3565 = vpack.c.bf16 %v3309, %v3309
      %v3566 = vpack.c.bf16 %v3310, %v3310
      %v3567 = vpack.c.bf16 %v3311, %v3311
      %v3568 = vpack.c.bf16 %v3312, %v3312
      %v3569 = vpack.c.bf16 %v3313, %v3313
      %v3570 = vpack.c.bf16 %v3314, %v3314
      %v3571 = vpack.c.bf16 %v3315, %v3315
      %v3572 = vpack.c.bf16 %v3316, %v3316
      %v3573 = vpack.c.bf16 %v3317, %v3317
      %v3574 = vpack.c.bf16 %v3318, %v3318
      %v3575 = vpack.c.bf16 %v3319, %v3319
      %v3576 = vpack.c.bf16 %v3320, %v3320
      %v3577 = vpack.c.bf16 %v3321, %v3321
      %v3578 = vpack.c.bf16 %v3322, %v3322
      %v3579 = vpack.c.bf16 %v3323, %v3323
      %v3580 = vpack.c.bf16 %v3324, %v3324
      %v3581 = vpack.c.bf16 %v3325, %v3325
      %v3582 = vpack.c.bf16 %v3326, %v3326
      %v3583 = vpack.c.bf16 %v3327, %v3327
      %v3584 = vpack.c.bf16 %v3328, %v3328
      %v3585 = vpack.c.bf16 %v3329, %v3329
      %v3586 = vpack.c.bf16 %v3330, %v3330
      %v3587 = vpack.c.bf16 %v3331, %v3331
      %v3588 = vpack.c.bf16 %v3332, %v3332
      %v3589 = vpack.c.bf16 %v3333, %v3333
      %v3590 = vpack.c.bf16 %v3334, %v3334
      %v3591 = vpack.c.bf16 %v3335, %v3335
      %v3592 = vpack.c.bf16 %v3336, %v3336
      %v3593 = vpack.c.bf16 %v3337, %v3337
      %v3594 = vpack.c.bf16 %v3338, %v3338
      %v3595 = vpack.c.bf16 %v3339, %v3339
      %v3596 = vpack.c.bf16 %v3340, %v3340
      %v3597 = vpack.c.bf16 %v3341, %v3341
      %v3598 = vpack.c.bf16 %v3342, %v3342
      %v3599 = vpack.c.bf16 %v3343, %v3343
      %v3600 = vpack.c.bf16 %v3344, %v3344
      %v3601 = vpack.c.bf16 %v3345, %v3345
      %v3602 = vpack.c.bf16 %v3346, %v3346
      %v3603 = vpack.c.bf16 %v3347, %v3347
      %v3604 = vpack.c.bf16 %v3348, %v3348
      %v3605 = vpack.c.bf16 %v3349, %v3349
      %v3606 = vpack.c.bf16 %v3350, %v3350
      %v3607 = vpack.c.bf16 %v3351, %v3351
      %v3608 = vpack.c.bf16 %v3352, %v3352
      %v3609 = vpack.c.bf16 %v3353, %v3353
      %v3610 = vpack.c.bf16 %v3354, %v3354
      %v3611 = vpack.c.bf16 %v3355, %v3355
      %v3612 = vpack.c.bf16 %v3356, %v3356
      %v3613 = vpack.c.bf16 %v3357, %v3357
      %v3614 = vpack.c.bf16 %v3358, %v3358
      %v3615 = vpack.c.bf16 %v3359, %v3359
      %v3616 = vpack.c.bf16 %v3360, %v3360
      %v3617 = vpack.c.bf16 %v3361, %v3361
      %v3618 = vpack.c.bf16 %v3362, %v3362
      %v3619 = vpack.c.bf16 %v3363, %v3363
      %v3620 = vpack.c.bf16 %v3364, %v3364
      %v3621 = vpack.c.bf16 %v3365, %v3365
      %v3622 = vpack.c.bf16 %v3366, %v3366
      %v3623 = vpack.c.bf16 %v3367, %v3367
      %v3624 = vpack.c.bf16 %v3368, %v3368
      %v3625 = vpack.c.bf16 %v3369, %v3369
      %v3626 = vpack.c.bf16 %v3370, %v3370
      %v3627 = vpack.c.bf16 %v3371, %v3371
      %v3628 = vpack.c.bf16 %v3372, %v3372
      %v3629 = vpack.c.bf16 %v3373, %v3373
      %v3630 = vpack.c.bf16 %v3374, %v3374
      %v3631 = vpack.c.bf16 %v3375, %v3375
      %v3632 = vpack.c.bf16 %v3376, %v3376
      %v3633 = vpack.c.bf16 %v3377, %v3377
      %v3634 = vpack.c.bf16 %v3378, %v3378
      %v3635 = vpack.c.bf16 %v3379, %v3379
      %v3636 = vpack.c.bf16 %v3380, %v3380
      %v3637 = vpack.c.bf16 %v3381, %v3381
      %v3638 = vpack.c.bf16 %v3382, %v3382
      %v3639 = vpack.c.bf16 %v3383, %v3383
      %v3640 = vpack.c.bf16 %v3384, %v3384
      %v3641 = vpack.c.bf16 %v3385, %v3385
      %v3642 = vpack.c.bf16 %v3386, %v3386
      %v3643 = vpack.c.bf16 %v3387, %v3387
      %v3644 = vpack.c.bf16 %v3388, %v3388
      %v3645 = vpack.c.bf16 %v3389, %v3389
      %v3646 = vpack.c.bf16 %v3390, %v3390
      %v3647 = vpack.c.bf16 %v3391, %v3391
      %v3648 = vpack.c.bf16 %v3392, %v3392
      %v3649 = vpack.c.bf16 %v3393, %v3393
      %v3650 = vpack.c.bf16 %v3394, %v3394
      %v3651 = vpack.c.bf16 %v3395, %v3395
      %v3652 = vpack.c.bf16 %v3396, %v3396
      %v3653 = vpack.c.bf16 %v3397, %v3397
      %v3654 = vpack.c.bf16 %v3398, %v3398
      %v3655 = vpack.c.bf16 %v3399, %v3399
      %v3656 = vpack.c.bf16 %v3400, %v3400
      %v3657 = vpack.c.bf16 %v3401, %v3401
      %v3658 = vpack.c.bf16 %v3402, %v3402
      %v3659 = vpack.c.bf16 %v3403, %v3403
      %v3660 = vpack.c.bf16 %v3404, %v3404
      %v3661 = vpack.c.bf16 %v3405, %v3405
      %v3662 = vpack.c.bf16 %v3406, %v3406
      %v3663 = vpack.c.bf16 %v3407, %v3407
      %v3664 = vpack.c.bf16 %v3408, %v3408
      %v3665 = vpack.c.bf16 %v3409, %v3409
      %v3666 = vpack.c.bf16 %v3410, %v3410
      %v3667 = vpack.c.bf16 %v3411, %v3411
      %v3668 = vpack.c.bf16 %v3412, %v3412
      %v3669 = vpack.c.bf16 %v3413, %v3413
      %v3670 = vpack.c.bf16 %v3414, %v3414
      %v3671 = vpack.c.bf16 %v3415, %v3415
      %v3672 = vpack.c.bf16 %v3416, %v3416
      %v3673 = vpack.c.bf16 %v3417, %v3417
      %v3674 = vpack.c.bf16 %v3418, %v3418
      %v3675 = vpack.c.bf16 %v3419, %v3419
      %v3676 = vpack.c.bf16 %v3420, %v3420
      %v3677 = vpack.c.bf16 %v3421, %v3421
      %v3678 = vpack.c.bf16 %v3422, %v3422
      %v3679 = vpack.c.bf16 %v3423, %v3423
      %v3680 = vpack.c.bf16 %v3424, %v3424
      %v3681 = vpack.c.bf16 %v3425, %v3425
      %v3682 = vpack.c.bf16 %v3426, %v3426
      %v3683 = vpack.c.bf16 %v3427, %v3427
      %v3684 = vpack.c.bf16 %v3428, %v3428
      %v3685 = vpack.c.bf16 %v3429, %v3429
      %v3686 = vpack.c.bf16 %v3430, %v3430
      %v3687 = vpack.c.bf16 %v3431, %v3431
      %v3688 = vpack.c.bf16 %v3432, %v3432
      %v3689 = vpack.c.bf16 %v3433, %v3433
      %v3690 = vpack.c.bf16 %v3434, %v3434
      %v3691 = vpack.c.bf16 %v3435, %v3435
      %v3692 = vpack.c.bf16 %v3436, %v3436
      %v3693 = vpack.c.bf16 %v3437, %v3437
      %v3694 = vpack.c.bf16 %v3438, %v3438
      %v3695 = vpack.c.bf16 %v3439, %v3439
      %v3696 = vpack.c.bf16 %v3440, %v3440
      %v3697 = vpack.c.bf16 %v3441, %v3441
      %v3698 = vpack.c.bf16 %v3442, %v3442
      %v3699 = vpack.c.bf16 %v3443, %v3443
      %v3700 = vpack.c.bf16 %v3444, %v3444
      %v3701 = vpack.c.bf16 %v3445, %v3445
      %v3702 = vpack.c.bf16 %v3446, %v3446
      %v3703 = vpack.c.bf16 %v3447, %v3447
      %v3704 = vpack.c.bf16 %v3448, %v3448
      %v3705 = vpack.c.bf16 %v3449, %v3449
      %v3706 = vpack.c.bf16 %v3450, %v3450
      %v3707 = vpack.c.bf16 %v3451, %v3451
      %v3708 = vpack.c.bf16 %v3452, %v3452
      %v3709 = vpack.c.bf16 %v3453, %v3453
      %v3710 = vpack.c.bf16 %v3454, %v3454
      %v3711 = vpack.c.bf16 %v3455, %v3455
      %v3712 = vpack.c.bf16 %v3456, %v3456
      %v3713 = vpack.c.bf16 %v3457, %v3457
      %v3714 = vpack.c.bf16 %v3458, %v3458
      %v3715 = vpack.c.bf16 %v3459, %v3459
      %v3716 = vpack.c.bf16 %v3460, %v3460
      %vm3717 = vcmask 519168
      %3718 = vst.msk [vmem:[%s226] sm:$0xf] %vm3717, %v3461
      %3719 = vst.msk [vmem:[%s226 + $0x4] sm:$0xf] %vm3717, %v3462
      %3720 = vst.msk [vmem:[%s226 + $0x8] sm:$0xf] %vm3717, %v3463
      %3721 = vst.msk [vmem:[%s226 + $0xc] sm:$0xf] %vm3717, %v3464
      %3722 = vst.msk [vmem:[%s226 + $0x10] sm:$0xf] %vm3717, %v3465
      %3723 = vst.msk [vmem:[%s226 + $0x14] sm:$0xf] %vm3717, %v3466
      %3724 = vst.msk [vmem:[%s226 + $0x18] sm:$0xf] %vm3717, %v3467
      %3725 = vst.msk [vmem:[%s226 + $0x1c] sm:$0xf] %vm3717, %v3468
      %3726 = vst.msk [vmem:[%s226 + $0x20] sm:$0xf] %vm3717, %v3469
      %3727 = vst.msk [vmem:[%s226 + $0x24] sm:$0xf] %vm3717, %v3470
      %3728 = vst.msk [vmem:[%s226 + $0x28] sm:$0xf] %vm3717, %v3471
      %3729 = vst.msk [vmem:[%s226 + $0x2c] sm:$0xf] %vm3717, %v3472
      %3730 = vst.msk [vmem:[%s226 + $0x30] sm:$0xf] %vm3717, %v3473
      %3731 = vst.msk [vmem:[%s226 + $0x34] sm:$0xf] %vm3717, %v3474
      %3732 = vst.msk [vmem:[%s226 + $0x38] sm:$0xf] %vm3717, %v3475
      %3733 = vst.msk [vmem:[%s226 + $0x3c] sm:$0xf] %vm3717, %v3476
      %3734 = vst.msk [vmem:[%s226 + $0x40] sm:$0xf] %vm3717, %v3477
      %3735 = vst.msk [vmem:[%s226 + $0x44] sm:$0xf] %vm3717, %v3478
      %3736 = vst.msk [vmem:[%s226 + $0x48] sm:$0xf] %vm3717, %v3479
      %3737 = vst.msk [vmem:[%s226 + $0x4c] sm:$0xf] %vm3717, %v3480
      %3738 = vst.msk [vmem:[%s226 + $0x50] sm:$0xf] %vm3717, %v3481
      %3739 = vst.msk [vmem:[%s226 + $0x54] sm:$0xf] %vm3717, %v3482
      %3740 = vst.msk [vmem:[%s226 + $0x58] sm:$0xf] %vm3717, %v3483
      %3741 = vst.msk [vmem:[%s226 + $0x5c] sm:$0xf] %vm3717, %v3484
      %3742 = vst.msk [vmem:[%s226 + $0x60] sm:$0xf] %vm3717, %v3485
      %3743 = vst.msk [vmem:[%s226 + $0x64] sm:$0xf] %vm3717, %v3486
      %3744 = vst.msk [vmem:[%s226 + $0x68] sm:$0xf] %vm3717, %v3487
      %3745 = vst.msk [vmem:[%s226 + $0x6c] sm:$0xf] %vm3717, %v3488
      %3746 = vst.msk [vmem:[%s226 + $0x70] sm:$0xf] %vm3717, %v3489
      %3747 = vst.msk [vmem:[%s226 + $0x74] sm:$0xf] %vm3717, %v3490
      %3748 = vst.msk [vmem:[%s226 + $0x78] sm:$0xf] %vm3717, %v3491
      %3749 = vst.msk [vmem:[%s226 + $0x7c] sm:$0xf] %vm3717, %v3492
      %3750 = vst.msk [vmem:[%s226 + $0x80] sm:$0xf] %vm3717, %v3493
      %3751 = vst.msk [vmem:[%s226 + $0x84] sm:$0xf] %vm3717, %v3494
      %3752 = vst.msk [vmem:[%s226 + $0x88] sm:$0xf] %vm3717, %v3495
      %3753 = vst.msk [vmem:[%s226 + $0x8c] sm:$0xf] %vm3717, %v3496
      %3754 = vst.msk [vmem:[%s226 + $0x90] sm:$0xf] %vm3717, %v3497
      %3755 = vst.msk [vmem:[%s226 + $0x94] sm:$0xf] %vm3717, %v3498
      %3756 = vst.msk [vmem:[%s226 + $0x98] sm:$0xf] %vm3717, %v3499
      %3757 = vst.msk [vmem:[%s226 + $0x9c] sm:$0xf] %vm3717, %v3500
      %3758 = vst.msk [vmem:[%s226 + $0xa0] sm:$0xf] %vm3717, %v3501
      %3759 = vst.msk [vmem:[%s226 + $0xa4] sm:$0xf] %vm3717, %v3502
      %3760 = vst.msk [vmem:[%s226 + $0xa8] sm:$0xf] %vm3717, %v3503
      %3761 = vst.msk [vmem:[%s226 + $0xac] sm:$0xf] %vm3717, %v3504
      %3762 = vst.msk [vmem:[%s226 + $0xb0] sm:$0xf] %vm3717, %v3505
      %3763 = vst.msk [vmem:[%s226 + $0xb4] sm:$0xf] %vm3717, %v3506
      %3764 = vst.msk [vmem:[%s226 + $0xb8] sm:$0xf] %vm3717, %v3507
      %3765 = vst.msk [vmem:[%s226 + $0xbc] sm:$0xf] %vm3717, %v3508
      %3766 = vst.msk [vmem:[%s226 + $0xc0] sm:$0xf] %vm3717, %v3509
      %3767 = vst.msk [vmem:[%s226 + $0xc4] sm:$0xf] %vm3717, %v3510
      %3768 = vst.msk [vmem:[%s226 + $0xc8] sm:$0xf] %vm3717, %v3511
      %3769 = vst.msk [vmem:[%s226 + $0xcc] sm:$0xf] %vm3717, %v3512
      %3770 = vst.msk [vmem:[%s226 + $0xd0] sm:$0xf] %vm3717, %v3513
      %3771 = vst.msk [vmem:[%s226 + $0xd4] sm:$0xf] %vm3717, %v3514
      %3772 = vst.msk [vmem:[%s226 + $0xd8] sm:$0xf] %vm3717, %v3515
      %3773 = vst.msk [vmem:[%s226 + $0xdc] sm:$0xf] %vm3717, %v3516
      %3774 = vst.msk [vmem:[%s226 + $0xe0] sm:$0xf] %vm3717, %v3517
      %3775 = vst.msk [vmem:[%s226 + $0xe4] sm:$0xf] %vm3717, %v3518
      %3776 = vst.msk [vmem:[%s226 + $0xe8] sm:$0xf] %vm3717, %v3519
      %3777 = vst.msk [vmem:[%s226 + $0xec] sm:$0xf] %vm3717, %v3520
      %3778 = vst.msk [vmem:[%s226 + $0xf0] sm:$0xf] %vm3717, %v3521
      %3779 = vst.msk [vmem:[%s226 + $0xf4] sm:$0xf] %vm3717, %v3522
      %3780 = vst.msk [vmem:[%s226 + $0xf8] sm:$0xf] %vm3717, %v3523
      %3781 = vst.msk [vmem:[%s226 + $0xfc] sm:$0xf] %vm3717, %v3524
      %3782 = vst.msk [vmem:[%s226 + $0x100] sm:$0xf] %vm3717, %v3525
      %3783 = vst.msk [vmem:[%s226 + $0x104] sm:$0xf] %vm3717, %v3526
      %3784 = vst.msk [vmem:[%s226 + $0x108] sm:$0xf] %vm3717, %v3527
      %3785 = vst.msk [vmem:[%s226 + $0x10c] sm:$0xf] %vm3717, %v3528
      %3786 = vst.msk [vmem:[%s226 + $0x110] sm:$0xf] %vm3717, %v3529
      %3787 = vst.msk [vmem:[%s226 + $0x114] sm:$0xf] %vm3717, %v3530
      %3788 = vst.msk [vmem:[%s226 + $0x118] sm:$0xf] %vm3717, %v3531
      %3789 = vst.msk [vmem:[%s226 + $0x11c] sm:$0xf] %vm3717, %v3532
      %3790 = vst.msk [vmem:[%s226 + $0x120] sm:$0xf] %vm3717, %v3533
      %3791 = vst.msk [vmem:[%s226 + $0x124] sm:$0xf] %vm3717, %v3534
      %3792 = vst.msk [vmem:[%s226 + $0x128] sm:$0xf] %vm3717, %v3535
      %3793 = vst.msk [vmem:[%s226 + $0x12c] sm:$0xf] %vm3717, %v3536
      %3794 = vst.msk [vmem:[%s226 + $0x130] sm:$0xf] %vm3717, %v3537
      %3795 = vst.msk [vmem:[%s226 + $0x134] sm:$0xf] %vm3717, %v3538
      %3796 = vst.msk [vmem:[%s226 + $0x138] sm:$0xf] %vm3717, %v3539
      %3797 = vst.msk [vmem:[%s226 + $0x13c] sm:$0xf] %vm3717, %v3540
      %3798 = vst.msk [vmem:[%s226 + $0x140] sm:$0xf] %vm3717, %v3541
      %3799 = vst.msk [vmem:[%s226 + $0x144] sm:$0xf] %vm3717, %v3542
      %3800 = vst.msk [vmem:[%s226 + $0x148] sm:$0xf] %vm3717, %v3543
      %3801 = vst.msk [vmem:[%s226 + $0x14c] sm:$0xf] %vm3717, %v3544
      %3802 = vst.msk [vmem:[%s226 + $0x150] sm:$0xf] %vm3717, %v3545
      %3803 = vst.msk [vmem:[%s226 + $0x154] sm:$0xf] %vm3717, %v3546
      %3804 = vst.msk [vmem:[%s226 + $0x158] sm:$0xf] %vm3717, %v3547
      %3805 = vst.msk [vmem:[%s226 + $0x15c] sm:$0xf] %vm3717, %v3548
      %3806 = vst.msk [vmem:[%s226 + $0x160] sm:$0xf] %vm3717, %v3549
      %3807 = vst.msk [vmem:[%s226 + $0x164] sm:$0xf] %vm3717, %v3550
      %3808 = vst.msk [vmem:[%s226 + $0x168] sm:$0xf] %vm3717, %v3551
      %3809 = vst.msk [vmem:[%s226 + $0x16c] sm:$0xf] %vm3717, %v3552
      %3810 = vst.msk [vmem:[%s226 + $0x170] sm:$0xf] %vm3717, %v3553
      %3811 = vst.msk [vmem:[%s226 + $0x174] sm:$0xf] %vm3717, %v3554
      %3812 = vst.msk [vmem:[%s226 + $0x178] sm:$0xf] %vm3717, %v3555
      %3813 = vst.msk [vmem:[%s226 + $0x17c] sm:$0xf] %vm3717, %v3556
      %3814 = vst.msk [vmem:[%s226 + $0x180] sm:$0xf] %vm3717, %v3557
      %3815 = vst.msk [vmem:[%s226 + $0x184] sm:$0xf] %vm3717, %v3558
      %3816 = vst.msk [vmem:[%s226 + $0x188] sm:$0xf] %vm3717, %v3559
      %3817 = vst.msk [vmem:[%s226 + $0x18c] sm:$0xf] %vm3717, %v3560
      %3818 = vst.msk [vmem:[%s226 + $0x190] sm:$0xf] %vm3717, %v3561
      %3819 = vst.msk [vmem:[%s226 + $0x194] sm:$0xf] %vm3717, %v3562
      %3820 = vst.msk [vmem:[%s226 + $0x198] sm:$0xf] %vm3717, %v3563
      %3821 = vst.msk [vmem:[%s226 + $0x19c] sm:$0xf] %vm3717, %v3564
      %3822 = vst.msk [vmem:[%s226 + $0x1a0] sm:$0xf] %vm3717, %v3565
      %3823 = vst.msk [vmem:[%s226 + $0x1a4] sm:$0xf] %vm3717, %v3566
      %3824 = vst.msk [vmem:[%s226 + $0x1a8] sm:$0xf] %vm3717, %v3567
      %3825 = vst.msk [vmem:[%s226 + $0x1ac] sm:$0xf] %vm3717, %v3568
      %3826 = vst.msk [vmem:[%s226 + $0x1b0] sm:$0xf] %vm3717, %v3569
      %3827 = vst.msk [vmem:[%s226 + $0x1b4] sm:$0xf] %vm3717, %v3570
      %3828 = vst.msk [vmem:[%s226 + $0x1b8] sm:$0xf] %vm3717, %v3571
      %3829 = vst.msk [vmem:[%s226 + $0x1bc] sm:$0xf] %vm3717, %v3572
      %3830 = vst.msk [vmem:[%s226 + $0x1c0] sm:$0xf] %vm3717, %v3573
      %3831 = vst.msk [vmem:[%s226 + $0x1c4] sm:$0xf] %vm3717, %v3574
      %3832 = vst.msk [vmem:[%s226 + $0x1c8] sm:$0xf] %vm3717, %v3575
      %3833 = vst.msk [vmem:[%s226 + $0x1cc] sm:$0xf] %vm3717, %v3576
      %3834 = vst.msk [vmem:[%s226 + $0x1d0] sm:$0xf] %vm3717, %v3577
      %3835 = vst.msk [vmem:[%s226 + $0x1d4] sm:$0xf] %vm3717, %v3578
      %3836 = vst.msk [vmem:[%s226 + $0x1d8] sm:$0xf] %vm3717, %v3579
      %3837 = vst.msk [vmem:[%s226 + $0x1dc] sm:$0xf] %vm3717, %v3580
      %3838 = vst.msk [vmem:[%s226 + $0x1e0] sm:$0xf] %vm3717, %v3581
      %3839 = vst.msk [vmem:[%s226 + $0x1e4] sm:$0xf] %vm3717, %v3582
      %3840 = vst.msk [vmem:[%s226 + $0x1e8] sm:$0xf] %vm3717, %v3583
      %3841 = vst.msk [vmem:[%s226 + $0x1ec] sm:$0xf] %vm3717, %v3584
      %3842 = vst.msk [vmem:[%s226 + $0x1f0] sm:$0xf] %vm3717, %v3585
      %3843 = vst.msk [vmem:[%s226 + $0x1f4] sm:$0xf] %vm3717, %v3586
      %3844 = vst.msk [vmem:[%s226 + $0x1f8] sm:$0xf] %vm3717, %v3587
      %3845 = vst.msk [vmem:[%s226 + $0x1fc] sm:$0xf] %vm3717, %v3588
      %3846 = vst.msk [vmem:[%s226 + $0x200] sm:$0xf] %vm3717, %v3589
      %3847 = vst.msk [vmem:[%s226 + $0x204] sm:$0xf] %vm3717, %v3590
      %3848 = vst.msk [vmem:[%s226 + $0x208] sm:$0xf] %vm3717, %v3591
      %3849 = vst.msk [vmem:[%s226 + $0x20c] sm:$0xf] %vm3717, %v3592
      %3850 = vst.msk [vmem:[%s226 + $0x210] sm:$0xf] %vm3717, %v3593
      %3851 = vst.msk [vmem:[%s226 + $0x214] sm:$0xf] %vm3717, %v3594
      %3852 = vst.msk [vmem:[%s226 + $0x218] sm:$0xf] %vm3717, %v3595
      %3853 = vst.msk [vmem:[%s226 + $0x21c] sm:$0xf] %vm3717, %v3596
      %3854 = vst.msk [vmem:[%s226 + $0x220] sm:$0xf] %vm3717, %v3597
      %3855 = vst.msk [vmem:[%s226 + $0x224] sm:$0xf] %vm3717, %v3598
      %3856 = vst.msk [vmem:[%s226 + $0x228] sm:$0xf] %vm3717, %v3599
      %3857 = vst.msk [vmem:[%s226 + $0x22c] sm:$0xf] %vm3717, %v3600
      %3858 = vst.msk [vmem:[%s226 + $0x230] sm:$0xf] %vm3717, %v3601
      %3859 = vst.msk [vmem:[%s226 + $0x234] sm:$0xf] %vm3717, %v3602
      %3860 = vst.msk [vmem:[%s226 + $0x238] sm:$0xf] %vm3717, %v3603
      %3861 = vst.msk [vmem:[%s226 + $0x23c] sm:$0xf] %vm3717, %v3604
      %3862 = vst.msk [vmem:[%s226 + $0x240] sm:$0xf] %vm3717, %v3605
      %3863 = vst.msk [vmem:[%s226 + $0x244] sm:$0xf] %vm3717, %v3606
      %3864 = vst.msk [vmem:[%s226 + $0x248] sm:$0xf] %vm3717, %v3607
      %3865 = vst.msk [vmem:[%s226 + $0x24c] sm:$0xf] %vm3717, %v3608
      %3866 = vst.msk [vmem:[%s226 + $0x250] sm:$0xf] %vm3717, %v3609
      %3867 = vst.msk [vmem:[%s226 + $0x254] sm:$0xf] %vm3717, %v3610
      %3868 = vst.msk [vmem:[%s226 + $0x258] sm:$0xf] %vm3717, %v3611
      %3869 = vst.msk [vmem:[%s226 + $0x25c] sm:$0xf] %vm3717, %v3612
      %3870 = vst.msk [vmem:[%s226 + $0x260] sm:$0xf] %vm3717, %v3613
      %3871 = vst.msk [vmem:[%s226 + $0x264] sm:$0xf] %vm3717, %v3614
      %3872 = vst.msk [vmem:[%s226 + $0x268] sm:$0xf] %vm3717, %v3615
      %3873 = vst.msk [vmem:[%s226 + $0x26c] sm:$0xf] %vm3717, %v3616
      %3874 = vst.msk [vmem:[%s226 + $0x270] sm:$0xf] %vm3717, %v3617
      %3875 = vst.msk [vmem:[%s226 + $0x274] sm:$0xf] %vm3717, %v3618
      %3876 = vst.msk [vmem:[%s226 + $0x278] sm:$0xf] %vm3717, %v3619
      %3877 = vst.msk [vmem:[%s226 + $0x27c] sm:$0xf] %vm3717, %v3620
      %3878 = vst.msk [vmem:[%s226 + $0x280] sm:$0xf] %vm3717, %v3621
      %3879 = vst.msk [vmem:[%s226 + $0x284] sm:$0xf] %vm3717, %v3622
      %3880 = vst.msk [vmem:[%s226 + $0x288] sm:$0xf] %vm3717, %v3623
      %3881 = vst.msk [vmem:[%s226 + $0x28c] sm:$0xf] %vm3717, %v3624
      %3882 = vst.msk [vmem:[%s226 + $0x290] sm:$0xf] %vm3717, %v3625
      %3883 = vst.msk [vmem:[%s226 + $0x294] sm:$0xf] %vm3717, %v3626
      %3884 = vst.msk [vmem:[%s226 + $0x298] sm:$0xf] %vm3717, %v3627
      %3885 = vst.msk [vmem:[%s226 + $0x29c] sm:$0xf] %vm3717, %v3628
      %3886 = vst.msk [vmem:[%s226 + $0x2a0] sm:$0xf] %vm3717, %v3629
      %3887 = vst.msk [vmem:[%s226 + $0x2a4] sm:$0xf] %vm3717, %v3630
      %3888 = vst.msk [vmem:[%s226 + $0x2a8] sm:$0xf] %vm3717, %v3631
      %3889 = vst.msk [vmem:[%s226 + $0x2ac] sm:$0xf] %vm3717, %v3632
      %3890 = vst.msk [vmem:[%s226 + $0x2b0] sm:$0xf] %vm3717, %v3633
      %3891 = vst.msk [vmem:[%s226 + $0x2b4] sm:$0xf] %vm3717, %v3634
      %3892 = vst.msk [vmem:[%s226 + $0x2b8] sm:$0xf] %vm3717, %v3635
      %3893 = vst.msk [vmem:[%s226 + $0x2bc] sm:$0xf] %vm3717, %v3636
      %3894 = vst.msk [vmem:[%s226 + $0x2c0] sm:$0xf] %vm3717, %v3637
      %3895 = vst.msk [vmem:[%s226 + $0x2c4] sm:$0xf] %vm3717, %v3638
      %3896 = vst.msk [vmem:[%s226 + $0x2c8] sm:$0xf] %vm3717, %v3639
      %3897 = vst.msk [vmem:[%s226 + $0x2cc] sm:$0xf] %vm3717, %v3640
      %3898 = vst.msk [vmem:[%s226 + $0x2d0] sm:$0xf] %vm3717, %v3641
      %3899 = vst.msk [vmem:[%s226 + $0x2d4] sm:$0xf] %vm3717, %v3642
      %3900 = vst.msk [vmem:[%s226 + $0x2d8] sm:$0xf] %vm3717, %v3643
      %3901 = vst.msk [vmem:[%s226 + $0x2dc] sm:$0xf] %vm3717, %v3644
      %3902 = vst.msk [vmem:[%s226 + $0x2e0] sm:$0xf] %vm3717, %v3645
      %3903 = vst.msk [vmem:[%s226 + $0x2e4] sm:$0xf] %vm3717, %v3646
      %3904 = vst.msk [vmem:[%s226 + $0x2e8] sm:$0xf] %vm3717, %v3647
      %3905 = vst.msk [vmem:[%s226 + $0x2ec] sm:$0xf] %vm3717, %v3648
      %3906 = vst.msk [vmem:[%s226 + $0x2f0] sm:$0xf] %vm3717, %v3649
      %3907 = vst.msk [vmem:[%s226 + $0x2f4] sm:$0xf] %vm3717, %v3650
      %3908 = vst.msk [vmem:[%s226 + $0x2f8] sm:$0xf] %vm3717, %v3651
      %3909 = vst.msk [vmem:[%s226 + $0x2fc] sm:$0xf] %vm3717, %v3652
      %3910 = vst.msk [vmem:[%s226 + $0x300] sm:$0xf] %vm3717, %v3653
      %3911 = vst.msk [vmem:[%s226 + $0x304] sm:$0xf] %vm3717, %v3654
      %3912 = vst.msk [vmem:[%s226 + $0x308] sm:$0xf] %vm3717, %v3655
      %3913 = vst.msk [vmem:[%s226 + $0x30c] sm:$0xf] %vm3717, %v3656
      %3914 = vst.msk [vmem:[%s226 + $0x310] sm:$0xf] %vm3717, %v3657
      %3915 = vst.msk [vmem:[%s226 + $0x314] sm:$0xf] %vm3717, %v3658
      %3916 = vst.msk [vmem:[%s226 + $0x318] sm:$0xf] %vm3717, %v3659
      %3917 = vst.msk [vmem:[%s226 + $0x31c] sm:$0xf] %vm3717, %v3660
      %3918 = vst.msk [vmem:[%s226 + $0x320] sm:$0xf] %vm3717, %v3661
      %3919 = vst.msk [vmem:[%s226 + $0x324] sm:$0xf] %vm3717, %v3662
      %3920 = vst.msk [vmem:[%s226 + $0x328] sm:$0xf] %vm3717, %v3663
      %3921 = vst.msk [vmem:[%s226 + $0x32c] sm:$0xf] %vm3717, %v3664
      %3922 = vst.msk [vmem:[%s226 + $0x330] sm:$0xf] %vm3717, %v3665
      %3923 = vst.msk [vmem:[%s226 + $0x334] sm:$0xf] %vm3717, %v3666
      %3924 = vst.msk [vmem:[%s226 + $0x338] sm:$0xf] %vm3717, %v3667
      %3925 = vst.msk [vmem:[%s226 + $0x33c] sm:$0xf] %vm3717, %v3668
      %3926 = vst.msk [vmem:[%s226 + $0x340] sm:$0xf] %vm3717, %v3669
      %3927 = vst.msk [vmem:[%s226 + $0x344] sm:$0xf] %vm3717, %v3670
      %3928 = vst.msk [vmem:[%s226 + $0x348] sm:$0xf] %vm3717, %v3671
      %3929 = vst.msk [vmem:[%s226 + $0x34c] sm:$0xf] %vm3717, %v3672
      %3930 = vst.msk [vmem:[%s226 + $0x350] sm:$0xf] %vm3717, %v3673
      %3931 = vst.msk [vmem:[%s226 + $0x354] sm:$0xf] %vm3717, %v3674
      %3932 = vst.msk [vmem:[%s226 + $0x358] sm:$0xf] %vm3717, %v3675
      %3933 = vst.msk [vmem:[%s226 + $0x35c] sm:$0xf] %vm3717, %v3676
      %3934 = vst.msk [vmem:[%s226 + $0x360] sm:$0xf] %vm3717, %v3677
      %3935 = vst.msk [vmem:[%s226 + $0x364] sm:$0xf] %vm3717, %v3678
      %3936 = vst.msk [vmem:[%s226 + $0x368] sm:$0xf] %vm3717, %v3679
      %3937 = vst.msk [vmem:[%s226 + $0x36c] sm:$0xf] %vm3717, %v3680
      %3938 = vst.msk [vmem:[%s226 + $0x370] sm:$0xf] %vm3717, %v3681
      %3939 = vst.msk [vmem:[%s226 + $0x374] sm:$0xf] %vm3717, %v3682
      %3940 = vst.msk [vmem:[%s226 + $0x378] sm:$0xf] %vm3717, %v3683
      %3941 = vst.msk [vmem:[%s226 + $0x37c] sm:$0xf] %vm3717, %v3684
      %3942 = vst.msk [vmem:[%s226 + $0x380] sm:$0xf] %vm3717, %v3685
      %3943 = vst.msk [vmem:[%s226 + $0x384] sm:$0xf] %vm3717, %v3686
      %3944 = vst.msk [vmem:[%s226 + $0x388] sm:$0xf] %vm3717, %v3687
      %3945 = vst.msk [vmem:[%s226 + $0x38c] sm:$0xf] %vm3717, %v3688
      %3946 = vst.msk [vmem:[%s226 + $0x390] sm:$0xf] %vm3717, %v3689
      %3947 = vst.msk [vmem:[%s226 + $0x394] sm:$0xf] %vm3717, %v3690
      %3948 = vst.msk [vmem:[%s226 + $0x398] sm:$0xf] %vm3717, %v3691
      %3949 = vst.msk [vmem:[%s226 + $0x39c] sm:$0xf] %vm3717, %v3692
      %3950 = vst.msk [vmem:[%s226 + $0x3a0] sm:$0xf] %vm3717, %v3693
      %3951 = vst.msk [vmem:[%s226 + $0x3a4] sm:$0xf] %vm3717, %v3694
      %3952 = vst.msk [vmem:[%s226 + $0x3a8] sm:$0xf] %vm3717, %v3695
      %3953 = vst.msk [vmem:[%s226 + $0x3ac] sm:$0xf] %vm3717, %v3696
      %3954 = vst.msk [vmem:[%s226 + $0x3b0] sm:$0xf] %vm3717, %v3697
      %3955 = vst.msk [vmem:[%s226 + $0x3b4] sm:$0xf] %vm3717, %v3698
      %3956 = vst.msk [vmem:[%s226 + $0x3b8] sm:$0xf] %vm3717, %v3699
      %3957 = vst.msk [vmem:[%s226 + $0x3bc] sm:$0xf] %vm3717, %v3700
      %3958 = vst.msk [vmem:[%s226 + $0x3c0] sm:$0xf] %vm3717, %v3701
      %3959 = vst.msk [vmem:[%s226 + $0x3c4] sm:$0xf] %vm3717, %v3702
      %3960 = vst.msk [vmem:[%s226 + $0x3c8] sm:$0xf] %vm3717, %v3703
      %3961 = vst.msk [vmem:[%s226 + $0x3cc] sm:$0xf] %vm3717, %v3704
      %3962 = vst.msk [vmem:[%s226 + $0x3d0] sm:$0xf] %vm3717, %v3705
      %3963 = vst.msk [vmem:[%s226 + $0x3d4] sm:$0xf] %vm3717, %v3706
      %3964 = vst.msk [vmem:[%s226 + $0x3d8] sm:$0xf] %vm3717, %v3707
      %3965 = vst.msk [vmem:[%s226 + $0x3dc] sm:$0xf] %vm3717, %v3708
      %3966 = vst.msk [vmem:[%s226 + $0x3e0] sm:$0xf] %vm3717, %v3709
      %3967 = vst.msk [vmem:[%s226 + $0x3e4] sm:$0xf] %vm3717, %v3710
      %3968 = vst.msk [vmem:[%s226 + $0x3e8] sm:$0xf] %vm3717, %v3711
      %3969 = vst.msk [vmem:[%s226 + $0x3ec] sm:$0xf] %vm3717, %v3712
      %3970 = vst.msk [vmem:[%s226 + $0x3f0] sm:$0xf] %vm3717, %v3713
      %3971 = vst.msk [vmem:[%s226 + $0x3f4] sm:$0xf] %vm3717, %v3714
      %3972 = vst.msk [vmem:[%s226 + $0x3f8] sm:$0xf] %vm3717, %v3715
      %3973 = vst.msk [vmem:[%s226 + $0x3fc] sm:$0xf] %vm3717, %v3716
      %s3974 = smul.u32 256, %s18
      %p3975 = scmp.lt.s32.totalorder %s3974, 8191
      %s3976 = scalar_select %p3975, %s3974, 8191
      %p3977 = scmp.lt.s32.totalorder %s19, 0
      %s3978 = scalar_select %p3977, %s19, 0
      %s3979 = sadd.s32 %s3978, %s3976
      %s3980 = smul.addr %s3979, 4
      %s3981 = scalar_lea.vmem %s3, %s3980
      // Predicated region
      $region33: #{_stem_impl.1} parent=31 // pred_check
        %p3982 = pneg %p124
      $region34: #{_stem_impl.1} parent=31 // pred_check_branch
        %3984 = sbr.rel (%p3982) target = $region36
      $region35: #{_stem_impl.1} parent=31 // pred_region
        %s3985 = smul.u32 256, %s18
      $region36: #{_stem_impl.1} parent=31 // pred_fallthru
        _
    $region32: #{_stem_impl.1} parent=5 // pred_fallthru
      _
    %p3986 = scmp.le.s32.totalorder 2, %s9
    // Predicated region
    $region37: #{_stem_impl.1} parent=5 // pred_check
      %p3987 = pneg %p3986
    $region38: #{_stem_impl.1} parent=5 // pred_check_branch
      %3989 = sbr.rel (%p3987) target = $region40
    $region39: #{_stem_impl.1} parent=5 // pred_region
      %s3990 = ssub.s32 %s9, 2
      // Predicated region
      $region41: #{_stem_impl.1} parent=39 // pred_check
        %p3991 = pneg %p130
      $region42: #{_stem_impl.1} parent=39 // pred_check_branch
        %3993 = sbr.rel (%p3991) target = $region44
      $region43: #{_stem_impl.1} parent=39 // pred_region
        %s3994 = smul.u32 256, %s20
        %p3995 = scmp.lt.s32.totalorder %s3994, 8191
        %s3996 = scalar_select %p3995, %s3994, 8191
        %p3997 = scmp.lt.s32.totalorder %s21, 0
        %s3998 = scalar_select %p3997, %s21, 0
        %s3999 = sadd.s32 %s3998, %s3996
        %s4000 = smul.addr %s3999, 4
        %s4001 = scalar_lea.vmem %s3, %s4000
      $region44: #{_stem_impl.1} parent=39 // pred_fallthru
        _
    $region40: #{_stem_impl.1} parent=5 // pred_fallthru
      _
  $region6: #{_stem_impl.1} parent=0 // loop_footer
    %s13 = sadd.s32 1, %s9
  $region7: #{_stem_impl.1} parent=0 // loop_footer_branch
    %8 = sbr.rel target = $region3
  $region8: #{_stem_impl.1} parent=0 // loop_exit
    _

</llo_original>
